<compile_context>
chip_gen: v6e
topology: v6e:2x2x1
jax: 0.10.0
libtpu: 0.0.40
codegen_flags: <defaults>
</compile_context>

<pallas_src>
import jax
import jax.numpy as jnp
from jax.experimental import pallas as pl
from jax.experimental.pallas import tpu as pltpu

_HIDDEN = (512, 512, 256, 64, 16)   # widths of the 5 ReLU layers (output layer = 1)


def _round_up(n, m):
    return ((n + m - 1) // m) * m


# --------------------------------------------------------------------------- #
# Kernel
# --------------------------------------------------------------------------- #
def icnn_kernel(x_ref, w1_ref, w2_ref, w3_ref, w4_ref, w5_ref,
                w6x_ref, w6z_ref, out_ref, z_scr):
    """One batch tile of the 6-layer ICNN forward.

    x_ref   : (ID, TILE_B) bf16 feature-major extended input:
              rows [0:input_dim] = x^T, row input_dim = 1.0 (folded biases), rest 0
    w*_ref  : fused, bias-folded weights (see make_icnn_params), whole-VMEM residents
    z_scr   : (ID + 512, TILE_B) bf16 persistent slab holding [x_ext ; z_prev]
    out_ref : (1, TILE_B) f32 lane-dense output row
    """
    f32, bf16 = jnp.float32, jnp.bfloat16
    ID = x_ref.shape[0]

    x = x_ref[...]                               # (ID, TILE_B) bf16
    z_scr[0:ID, :] = x                           # skip path stays resident for all layers

    def fused_layer(w_ref, k):
        # One MXU matmul over the contiguous [x_ext ; z_prev] slab, f32 accumulation.
        a = z_scr[0:k, :]
        return jnp.maximum(jnp.dot(w_ref[...], a, preferred_element_type=f32), 0.0)

    # Layer 1: relu(W1 @ x_ext)                  (bias folded via the ones row)
    z1 = jnp.maximum(jnp.dot(w1_ref[...], x, preferred_element_type=f32), 0.0)
    z_scr[ID:ID + 512, :] = z1.astype(bf16)

    # Layers 2..5: fused [W_skip+bias | W_prim] matmuls on contiguous scratch slices.
    z2 = fused_layer(w2_ref, ID + 512)
    z_scr[ID:ID + 512, :] = z2.astype(bf16)

    z3 = fused_layer(w3_ref, ID + 512)
    z_scr[ID:ID + 256, :] = z3.astype(bf16)

    z4 = fused_layer(w4_ref, ID + 256)
    z_scr[ID:ID + 64, :] = z4.astype(bf16)

    z5 = fused_layer(w5_ref, ID + 64)            # (16, TILE_B) f32, stays in registers

    # Output layer (out_dim == 1): split VPU multiply + sublane (XLU) reductions;
    # bias folded into w6x at the ones row.  Lane-dense (1, TILE_B) result.
    px = jnp.sum(w6x_ref[...] * x.astype(f32), axis=0, keepdims=True)
    pz = jnp.sum(w6z_ref[...] * z5, axis=0, keepdims=True)
    out_ref[...] = (px + pz).astype(out_ref.dtype)


# --------------------------------------------------------------------------- #
# Parameters
# --------------------------------------------------------------------------- #
def make_icnn_params(key, input_dim):
    """PyTorch-style init (U(+-1/sqrt(fan_in)) for weight & bias of every Linear),
    'prim' weights clamped >= 0 (ICNN.clamp_nonneg_weights), then packed:
      * biases folded into the constant ones row of the extended input
        (column `input_dim` of each skip block),
      * skip + prim weights fused along fan-in as [W_skip_ext | W_prim],
        matching the kernel's [x_ext ; z_prev] scratch layout,
      * layers 1..5 stored bf16, the 1-row output layer as two f32 columns.
    Returns (packed_params, raw_f32_params)."""
    id_ext = _round_up(input_dim + 1, 16)        # +1 ones row, pad to bf16 sublane pack

    def linear(k, out_dim, in_dim, nonneg):
        kw, kb = jax.random.split(k)
        bound = 1.0 / (in_dim ** 0.5)
        w = jax.random.uniform(kw, (out_dim, in_dim), jnp.float32, -bound, bound)
        b = jax.random.uniform(kb, (out_dim,), jnp.float32, -bound, bound)
        if nonneg:
            w = jnp.clip(w, 0.0, None)           # clamp_nonneg_weights()
        return w, b

    def skip_ext(w_skip, bias):
        out_dim = w_skip.shape[0]
        ext = jnp.zeros((out_dim, id_ext), jnp.float32)
        ext = ext.at[:, :input_dim].set(w_skip)
        ext = ext.at[:, input_dim].set(bias)     # bias column multiplied by the ones row
        return ext

    keys = jax.random.split(key, 11)
    w1, b1 = linear(keys[0], _HIDDEN[0], input_dim, nonneg=False)

    fused = [skip_ext(w1, b1)]                   # (512, id_ext)
    raw_rest = []
    prev = _HIDDEN[0]
    ki = 1
    for out_dim in (*_HIDDEN[1:], 1):
        wp, bp = linear(keys[ki], out_dim, prev, nonneg=True)            # *_prim
        wk, bk = linear(keys[ki + 1], out_dim, input_dim, nonneg=False)  # *_skip
        ki += 2
        fused.append(jnp.concatenate([skip_ext(wk, bp + bk), wp], axis=1))
        raw_rest.append((wp, bp, wk, bk))
        prev = out_dim

    packed = [w.astype(jnp.bfloat16) for w in fused[:5]]
    w6 = fused[5]                                # (1, id_ext + 16) f32
    packed.append(jnp.asarray(w6[:, :id_ext].T))  # w6x: (id_ext, 1) f32, bias folded
    packed.append(jnp.asarray(w6[:, id_ext:].T))  # w6z: (16, 1) f32
    raw = (w1, b1, raw_rest)
    return packed, raw


# --------------------------------------------------------------------------- #
# Wrapper
# --------------------------------------------------------------------------- #
def _pick_tile_b(B):
    """Lane-dense batch tile: multiples of 128; >= 2 grid steps whenever B allows
    (so the 'parallel' axis shards across both v7x TensorCores); 256-512 lanes
    per tile to fill the 256-wide v6e/v7x MXU; capped at 256 on v5e."""
    try:
        kind = jax.devices()[0].device_kind.lower()
    except Exception:
        kind = ""
    is_v5e = ("v5e" in kind) or ("v5 lite" in kind) or ("v5litepod" in kind)
    max_tile = 256 if is_v5e else 512
    if B <= 128:
        return 128
    half = (B // 2) // 128 * 128                 # largest tile that keeps >= 2 steps
    return max(128, min(max_tile, half))


def icnn_forward(x, params, tile_b=None):
    """x: [B, C, H, W] (NCHW, as in PyTorch) or already-flat [B, input_dim] -> [B, 1]."""
    w1, w2, w3, w4, w5, w6x, w6z = params
    id_ext = w6x.shape[0]
    B = x.shape[0]
    x_flat = x.reshape(B, -1)
    input_dim = x_flat.shape[1]
    assert id_ext == _round_up(input_dim + 1, 16), (id_ext, input_dim)

    if tile_b is None:
        tile_b = _pick_tile_b(B)
    n_tiles = pl.cdiv(B, tile_b)
    b_pad = n_tiles * tile_b

    # Feature-major extended input: rows [0:input_dim] = x^T, row input_dim = 1.0
    # (drives the folded biases), remaining rows / batch columns zero-padded.
    xt = jnp.zeros((id_ext, b_pad), jnp.float32)
    xt = xt.at[:input_dim, :B].set(x_flat.T)
    xt = xt.at[input_dim, :].set(1.0)
    xt = xt.astype(jnp.bfloat16)

    # Weights: whole-array, single-buffered VMEM residents (constant over the grid).
    # TODO(synk): for image-sized input_dim on v7x's 64 MiB VMEM, stream W1..W3 over
    # the K axis (extra 'arbitrary' grid axis) instead of keeping them resident.
    weight_spec = pl.BlockSpec(memory_space=pltpu.MemorySpace.VMEM)
    in_specs = [pl.BlockSpec((id_ext, tile_b), lambda i: (0, i))]
    in_specs += [weight_spec] * len(params)

    macs_per_col = (512 * id_ext + 512 * (id_ext + 512) + 256 * (id_ext + 512)
                    + 64 * (id_ext + 256) + 16 * (id_ext + 64) + (id_ext + 16))
    weight_bytes = sum(int(p.size) * p.dtype.itemsize for p in params)
    cost = pl.CostEstimate(
        flops=int(2 * macs_per_col * b_pad),
        transcendentals=0,
        bytes_accessed=int(xt.size * 2 + weight_bytes + b_pad * 4),
    )

    out = pl.pallas_call(
        icnn_kernel,
        out_shape=jax.ShapeDtypeStruct((1, b_pad), jnp.float32),
        grid=(n_tiles,),
        in_specs=in_specs,
        out_specs=pl.BlockSpec((1, tile_b), lambda i: (0, i)),
        scratch_shapes=[pltpu.VMEM((id_ext + 512, tile_b), jnp.bfloat16)],
        compiler_params=pltpu.CompilerParams(dimension_semantics=("parallel",)),
        cost_estimate=cost,
    )(xt, *params)

    return out[0, :B].reshape(B, 1)


# --------------------------------------------------------------------------- #
# References
# --------------------------------------------------------------------------- #
def icnn_reference_packed(x, params):
    """Plain-JAX reference with the kernel's exact packing / dtypes (bf16 weights &
    activations, f32 accumulation, folded biases)."""
    w1, w2, w3, w4, w5, w6x, w6z = params
    id_ext = w6x.shape[0]
    B = x.shape[0]
    xf = x.reshape(B, -1)
    input_dim = xf.shape[1]

    xe = jnp.zeros((id_ext, B), jnp.float32)
    xe = xe.at[:input_dim, :].set(xf.T)
    xe = xe.at[input_dim, :].set(1.0)
    xe = xe.astype(jnp.bfloat16)

    def mm(w, a):
        return jnp.maximum(jnp.dot(w, a, preferred_element_type=jnp.float32), 0.0)

    z1 = mm(w1, xe)
    z2 = mm(w2, jnp.concatenate([xe, z1.astype(jnp.bfloat16)], axis=0))
    z3 = mm(w3, jnp.concatenate([xe, z2.astype(jnp.bfloat16)], axis=0))
    z4 = mm(w4, jnp.concatenate([xe, z3.astype(jnp.bfloat16)], axis=0))
    z5 = mm(w5, jnp.concatenate([xe, z4.astype(jnp.bfloat16)], axis=0))
    out = (jnp.sum(w6x * xe.astype(jnp.float32), axis=0, keepdims=True)
           + jnp.sum(w6z * z5, axis=0, keepdims=True))
    return out.T


def icnn_reference_f32(x, raw):
    """Independent pure-f32 reference mirroring PyTorch ICNN.forward exactly
    (unfused prim/skip Linears, explicit biases)."""
    w1, b1, rest = raw
    xf = x.reshape(x.shape[0], -1)
    z = jax.nn.relu(xf @ w1.T + b1)
    for li, (wp, bp, wk, bk) in enumerate(rest):
        pre = z @ wp.T + bp + xf @ wk.T + bk
        z = pre if li == len(rest) - 1 else jax.nn.relu(pre)   # no ReLU on output layer
    return z                                                    # (B, 1)


# --------------------------------------------------------------------------- #
if __name__ == "__main__":
    key = jax.random.PRNGKey(0)
    k_x, k_p = jax.random.split(key)

    # Small NCHW input: batch=2, channels=4, spatial=4x4 -> input_dim = 64
    B, C, H, W = 2, 4, 4, 4
    input_dim = C * H * W
    x = jax.random.normal(k_x, (B, C, H, W), jnp.float32)

    params, raw = make_icnn_params(k_p, input_dim)

    out = jax.block_until_ready(icnn_forward(x, params))
    ref_packed = icnn_reference_packed(x, params)
    ref_f32 = icnn_reference_f32(x, raw)

    assert out.shape == (B, 1), out.shape
    # Same-precision reference (tight): catches wiring / packing bugs.
    assert jnp.allclose(out, ref_packed, rtol=1e-2, atol=1e-2), (out, ref_packed)
    # Independent pure-f32 reference (loose, bf16 weights/activations in kernel).
    assert jnp.allclose(out, ref_f32, rtol=5e-2, atol=1e-1), (out, ref_f32)

    print("KERNEL_OK")
</pallas_src>

<mosaic_0001>
module attributes {stable_mosaic.version = 11 : i64} {
  func.func @icnn_kernel(%arg0: i32, %arg1: memref<80x128xbf16, #tpu.memory_space<vmem>>, %arg2: memref<512x80xbf16, #tpu.memory_space<vmem>>, %arg3: memref<512x592xbf16, #tpu.memory_space<vmem>>, %arg4: memref<256x592xbf16, #tpu.memory_space<vmem>>, %arg5: memref<64x336xbf16, #tpu.memory_space<vmem>>, %arg6: memref<16x144xbf16, #tpu.memory_space<vmem>>, %arg7: memref<80x1xf32, #tpu.memory_space<vmem>>, %arg8: memref<16x1xf32, #tpu.memory_space<vmem>>, %arg9: memref<1x128xf32, #tpu.memory_space<vmem>>, %arg10: memref<592x128xbf16, #tpu.memory_space<vmem>>) attributes {dimension_semantics = [#tpu.dimension_semantics<parallel>], iteration_bounds = array<i64: 1>, scalar_prefetch = 0 : i64, scratch_operands = 1 : i64, tpu.core_type = #tpu.core_type<tc>, window_params = [{transform_indices = @transform_0, window_bounds = array<i64: 80, 128>}, {pipeline_mode = #tpu.pipeline_mode<synchronous>, transform_indices = @transform_1, window_bounds = array<i64: 512, 80>}, {pipeline_mode = #tpu.pipeline_mode<synchronous>, transform_indices = @transform_2, window_bounds = array<i64: 512, 592>}, {pipeline_mode = #tpu.pipeline_mode<synchronous>, transform_indices = @transform_3, window_bounds = array<i64: 256, 592>}, {pipeline_mode = #tpu.pipeline_mode<synchronous>, transform_indices = @transform_4, window_bounds = array<i64: 64, 336>}, {pipeline_mode = #tpu.pipeline_mode<synchronous>, transform_indices = @transform_5, window_bounds = array<i64: 16, 144>}, {pipeline_mode = #tpu.pipeline_mode<synchronous>, transform_indices = @transform_6, window_bounds = array<i64: 80, 1>}, {pipeline_mode = #tpu.pipeline_mode<synchronous>, transform_indices = @transform_7, window_bounds = array<i64: 16, 1>}, {transform_indices = @transform_8, window_bounds = array<i64: 1, 128>}]} {
    %c0 = arith.constant 0 : index
    %c0_0 = arith.constant 0 : index
    %0 = vector.load %arg1[%c0, %c0_0] : memref<80x128xbf16, #tpu.memory_space<vmem>>, vector<80x128xbf16>
    %c0_1 = arith.constant 0 : index
    %c0_2 = arith.constant 0 : index
    %1 = vector.load %arg10[%c0_1, %c0_2] : memref<592x128xbf16, #tpu.memory_space<vmem>>, vector<80x128xbf16>
    tpu.vector_store %arg10[%c0_1, %c0_2], %0 {strides = array<i32>} : memref<592x128xbf16, #tpu.memory_space<vmem>>, vector<80x128xbf16>,
    %c0_3 = arith.constant 0 : index
    %c0_4 = arith.constant 0 : index
    %2 = vector.load %arg2[%c0_3, %c0_4] : memref<512x80xbf16, #tpu.memory_space<vmem>>, vector<512x80xbf16>
    %cst = arith.constant dense<0.000000e+00> : vector<512x128xf32>
    %3 = tpu.matmul %2, %0, %cst {dimension_numbers = #tpu.dot_dimension_numbers<[1], [0], [0], [1], [0, 0, 1, 1], [], []>} : vector<512x80xbf16>, vector<80x128xbf16>, vector<512x128xf32> -> vector<512x128xf32>
    %cst_5 = arith.constant 0.000000e+00 : f32
    %4 = vector.broadcast %cst_5 : f32 to vector<512x128xf32>
    %5 = arith.maximumf %3, %4 : vector<512x128xf32>
    %6 = arith.truncf %5 : vector<512x128xf32> to vector<512x128xbf16>
    %c80 = arith.constant 80 : index
    %c0_6 = arith.constant 0 : index
    %7 = vector.load %arg10[%c80, %c0_6] : memref<592x128xbf16, #tpu.memory_space<vmem>>, vector<512x128xbf16>
    tpu.vector_store %arg10[%c80, %c0_6], %6 {strides = array<i32>} : memref<592x128xbf16, #tpu.memory_space<vmem>>, vector<512x128xbf16>,
    %c0_7 = arith.constant 0 : index
    %c0_8 = arith.constant 0 : index
    %8 = vector.load %arg10[%c0_7, %c0_8] : memref<592x128xbf16, #tpu.memory_space<vmem>>, vector<592x128xbf16>
    %c0_9 = arith.constant 0 : index
    %c0_10 = arith.constant 0 : index
    %9 = vector.load %arg3[%c0_9, %c0_10] : memref<512x592xbf16, #tpu.memory_space<vmem>>, vector<512x592xbf16>
    %cst_11 = arith.constant dense<0.000000e+00> : vector<512x128xf32>
    %10 = tpu.matmul %9, %8, %cst_11 {dimension_numbers = #tpu.dot_dimension_numbers<[1], [0], [0], [1], [0, 0, 1, 1], [], []>} : vector<512x592xbf16>, vector<592x128xbf16>, vector<512x128xf32> -> vector<512x128xf32>
    %cst_12 = arith.constant 0.000000e+00 : f32
    %11 = vector.broadcast %cst_12 : f32 to vector<512x128xf32>
    %12 = arith.maximumf %10, %11 : vector<512x128xf32>
    %13 = arith.truncf %12 : vector<512x128xf32> to vector<512x128xbf16>
    %c80_13 = arith.constant 80 : index
    %c0_14 = arith.constant 0 : index
    %14 = vector.load %arg10[%c80_13, %c0_14] : memref<592x128xbf16, #tpu.memory_space<vmem>>, vector<512x128xbf16>
    tpu.vector_store %arg10[%c80_13, %c0_14], %13 {strides = array<i32>} : memref<592x128xbf16, #tpu.memory_space<vmem>>, vector<512x128xbf16>,
    %c0_15 = arith.constant 0 : index
    %c0_16 = arith.constant 0 : index
    %15 = vector.load %arg10[%c0_15, %c0_16] : memref<592x128xbf16, #tpu.memory_space<vmem>>, vector<592x128xbf16>
    %c0_17 = arith.constant 0 : index
    %c0_18 = arith.constant 0 : index
    %16 = vector.load %arg4[%c0_17, %c0_18] : memref<256x592xbf16, #tpu.memory_space<vmem>>, vector<256x592xbf16>
    %cst_19 = arith.constant dense<0.000000e+00> : vector<256x128xf32>
    %17 = tpu.matmul %16, %15, %cst_19 {dimension_numbers = #tpu.dot_dimension_numbers<[1], [0], [0], [1], [0, 0, 1, 1], [], []>} : vector<256x592xbf16>, vector<592x128xbf16>, vector<256x128xf32> -> vector<256x128xf32>
    %cst_20 = arith.constant 0.000000e+00 : f32
    %18 = vector.broadcast %cst_20 : f32 to vector<256x128xf32>
    %19 = arith.maximumf %17, %18 : vector<256x128xf32>
    %20 = arith.truncf %19 : vector<256x128xf32> to vector<256x128xbf16>
    %c80_21 = arith.constant 80 : index
    %c0_22 = arith.constant 0 : index
    %21 = vector.load %arg10[%c80_21, %c0_22] : memref<592x128xbf16, #tpu.memory_space<vmem>>, vector<256x128xbf16>
    tpu.vector_store %arg10[%c80_21, %c0_22], %20 {strides = array<i32>} : memref<592x128xbf16, #tpu.memory_space<vmem>>, vector<256x128xbf16>,
    %c0_23 = arith.constant 0 : index
    %c0_24 = arith.constant 0 : index
    %22 = vector.load %arg10[%c0_23, %c0_24] : memref<592x128xbf16, #tpu.memory_space<vmem>>, vector<336x128xbf16>
    %c0_25 = arith.constant 0 : index
    %c0_26 = arith.constant 0 : index
    %23 = vector.load %arg5[%c0_25, %c0_26] : memref<64x336xbf16, #tpu.memory_space<vmem>>, vector<64x336xbf16>
    %cst_27 = arith.constant dense<0.000000e+00> : vector<64x128xf32>
    %24 = tpu.matmul %23, %22, %cst_27 {dimension_numbers = #tpu.dot_dimension_numbers<[1], [0], [0], [1], [0, 0, 1, 1], [], []>} : vector<64x336xbf16>, vector<336x128xbf16>, vector<64x128xf32> -> vector<64x128xf32>
    %cst_28 = arith.constant 0.000000e+00 : f32
    %25 = vector.broadcast %cst_28 : f32 to vector<64x128xf32>
    %26 = arith.maximumf %24, %25 : vector<64x128xf32>
    %27 = arith.truncf %26 : vector<64x128xf32> to vector<64x128xbf16>
    %c80_29 = arith.constant 80 : index
    %c0_30 = arith.constant 0 : index
    %28 = vector.load %arg10[%c80_29, %c0_30] : memref<592x128xbf16, #tpu.memory_space<vmem>>, vector<64x128xbf16>
    tpu.vector_store %arg10[%c80_29, %c0_30], %27 {strides = array<i32>} : memref<592x128xbf16, #tpu.memory_space<vmem>>, vector<64x128xbf16>,
    %c0_31 = arith.constant 0 : index
    %c0_32 = arith.constant 0 : index
    %29 = vector.load %arg10[%c0_31, %c0_32] : memref<592x128xbf16, #tpu.memory_space<vmem>>, vector<144x128xbf16>
    %c0_33 = arith.constant 0 : index
    %c0_34 = arith.constant 0 : index
    %30 = vector.load %arg6[%c0_33, %c0_34] : memref<16x144xbf16, #tpu.memory_space<vmem>>, vector<16x144xbf16>
    %cst_35 = arith.constant dense<0.000000e+00> : vector<16x128xf32>
    %31 = tpu.matmul %30, %29, %cst_35 {dimension_numbers = #tpu.dot_dimension_numbers<[1], [0], [0], [1], [0, 0, 1, 1], [], []>} : vector<16x144xbf16>, vector<144x128xbf16>, vector<16x128xf32> -> vector<16x128xf32>
    %cst_36 = arith.constant 0.000000e+00 : f32
    %32 = vector.broadcast %cst_36 : f32 to vector<16x128xf32>
    %33 = arith.maximumf %31, %32 : vector<16x128xf32>
    %c0_37 = arith.constant 0 : index
    %c0_38 = arith.constant 0 : index
    %34 = vector.load %arg7[%c0_37, %c0_38] : memref<80x1xf32, #tpu.memory_space<vmem>>, vector<80x1xf32>
    %35 = arith.extf %0 : vector<80x128xbf16> to vector<80x128xf32>
    %36 = vector.broadcast %34 : vector<80x1xf32> to vector<80x128xf32>
    %37 = arith.mulf %36, %35 : vector<80x128xf32>
    %cst_39 = arith.constant dense<0.000000e+00> : vector<128xf32>
    %38 = vector.multi_reduction <add>, %37, %cst_39 [0] : vector<80x128xf32> to vector<128xf32>
    %39 = vector.shape_cast %38 : vector<128xf32> to vector<1x128xf32>
    %c0_40 = arith.constant 0 : index
    %c0_41 = arith.constant 0 : index
    %40 = vector.load %arg8[%c0_40, %c0_41] : memref<16x1xf32, #tpu.memory_space<vmem>>, vector<16x1xf32>
    %41 = vector.broadcast %40 : vector<16x1xf32> to vector<16x128xf32>
    %42 = arith.mulf %41, %33 : vector<16x128xf32>
    %cst_42 = arith.constant dense<0.000000e+00> : vector<128xf32>
    %43 = vector.multi_reduction <add>, %42, %cst_42 [0] : vector<16x128xf32> to vector<128xf32>
    %44 = vector.shape_cast %43 : vector<128xf32> to vector<1x128xf32>
    %45 = arith.addf %39, %44 : vector<1x128xf32>
    %c0_43 = arith.constant 0 : index
    %c0_44 = arith.constant 0 : index
    %46 = vector.load %arg9[%c0_43, %c0_44] : memref<1x128xf32, #tpu.memory_space<vmem>>, vector<1x128xf32>
    tpu.vector_store %arg9[%c0_43, %c0_44], %45 {strides = array<i32>} : memref<1x128xf32, #tpu.memory_space<vmem>>, vector<1x128xf32>,
    return
  }
  func.func @transform_0(%arg0: i32) -> (i32, i32) {
    %c0_i32 = arith.constant 0 : i32
    %c0_i32_0 = arith.constant 0 : i32
    return %c0_i32, %arg0 : i32, i32
  }
  func.func @transform_1(%arg0: i32) -> (i32, i32) {
    %c0_i32 = arith.constant 0 : i32
    %c0_i32_0 = arith.constant 0 : i32
    %c0_i32_1 = arith.constant 0 : i32
    return %c0_i32, %c0_i32_0 : i32, i32
  }
  func.func @transform_2(%arg0: i32) -> (i32, i32) {
    %c0_i32 = arith.constant 0 : i32
    %c0_i32_0 = arith.constant 0 : i32
    %c0_i32_1 = arith.constant 0 : i32
    return %c0_i32, %c0_i32_0 : i32, i32
  }
  func.func @transform_3(%arg0: i32) -> (i32, i32) {
    %c0_i32 = arith.constant 0 : i32
    %c0_i32_0 = arith.constant 0 : i32
    %c0_i32_1 = arith.constant 0 : i32
    return %c0_i32, %c0_i32_0 : i32, i32
  }
  func.func @transform_4(%arg0: i32) -> (i32, i32) {
    %c0_i32 = arith.constant 0 : i32
    %c0_i32_0 = arith.constant 0 : i32
    %c0_i32_1 = arith.constant 0 : i32
    return %c0_i32, %c0_i32_0 : i32, i32
  }
  func.func @transform_5(%arg0: i32) -> (i32, i32) {
    %c0_i32 = arith.constant 0 : i32
    %c0_i32_0 = arith.constant 0 : i32
    %c0_i32_1 = arith.constant 0 : i32
    return %c0_i32, %c0_i32_0 : i32, i32
  }
  func.func @transform_6(%arg0: i32) -> (i32, i32) {
    %c0_i32 = arith.constant 0 : i32
    %c0_i32_0 = arith.constant 0 : i32
    %c0_i32_1 = arith.constant 0 : i32
    return %c0_i32, %c0_i32_0 : i32, i32
  }
  func.func @transform_7(%arg0: i32) -> (i32, i32) {
    %c0_i32 = arith.constant 0 : i32
    %c0_i32_0 = arith.constant 0 : i32
    %c0_i32_1 = arith.constant 0 : i32
    return %c0_i32, %c0_i32_0 : i32, i32
  }
  func.func @transform_8(%arg0: i32) -> (i32, i32) {
    %c0_i32 = arith.constant 0 : i32
    %c0_i32_0 = arith.constant 0 : i32
    return %c0_i32, %arg0 : i32, i32
  }
}

</mosaic_0001>

<llo_original>
// kernel: tpu_custom_call.1
$region0: #{tpu_custom_call.1}
  #allocation0 [shape = 'u32[]', space=smem, size = 0x4, offset = 0x4, fixed_abs, tag = 'smem constant byte address 0x4 - core index']
  #allocation1 [shape = 'u32[144,128]{1,0:T(1,128)}', space=vmem, size = 0x12000, scoped, tag = 'internal scratch']
  #allocation2 [shape = 'bf16[592,128]{1,0:T(8,128)(2,1)}', space=vmem, size = 0x25000, scoped, tag = 'scratch operand']
  %s0 = inlined_call_operand.vmem [shape: bf16[80,128], index: 0, kind: input, shape index: {}]
  %s1 = inlined_call_operand.vmem [shape: bf16[512,80], index: 1, kind: input, shape index: {}]
  %s2 = inlined_call_operand.vmem [shape: bf16[512,592], index: 2, kind: input, shape index: {}]
  %s3 = inlined_call_operand.vmem [shape: bf16[256,592], index: 3, kind: input, shape index: {}]
  %s4 = inlined_call_operand.vmem [shape: bf16[64,336], index: 4, kind: input, shape index: {}]
  %s5 = inlined_call_operand.vmem [shape: bf16[16,144], index: 5, kind: input, shape index: {}]
  %s6 = inlined_call_operand.vmem [shape: f32[80,1], index: 6, kind: input, shape index: {}]
  %s7 = inlined_call_operand.vmem [shape: f32[16,1], index: 7, kind: input, shape index: {}]
  %s8 = inlined_call_operand.hbm [shape: f32[1,128], index: 8, kind: output, shape index: {}]
  %s9 = sld [smem:[#allocation0]]
  $region42: #{tpu_custom_call.1} parent=0
    _
  %s11 = ssub.s32 1, %s9
  %s12 = scalar_select 0, %s11, %s9
  $region1: #{tpu_custom_call.1} parent=0
    #allocation3 [shape = 'u8[512]{0}', space=vmem, size = 0x400, scoped, tag = 'output window, operand 0, single buffered']
    #allocation4 [shape = 's32[1]{0}', space=sflag, size = 0x4, scoped, tag = 'scoped memory for tpu_custom_call.1']
    %13 = vsyncpa [#allocation4], 0
    // Predicated region
    $region2: #{tpu_custom_call.1} parent=1 // pred_check
      _
    $region3: #{tpu_custom_call.1} parent=1 // pred_check_branch
      %15 = sbr.rel (0) target = $region5
    $region4: #{tpu_custom_call.1} parent=1 // pred_region
      _
    $region5: #{tpu_custom_call.1} parent=1 // pred_fallthru
      _
    // Predicated region
    $region6: #{tpu_custom_call.1} parent=1 // pred_check
      _
    $region7: #{tpu_custom_call.1} parent=1 // pred_check_branch
      %17 = sbr.rel (0) target = $region9
    $region8: #{tpu_custom_call.1} parent=1 // pred_region
      _
    $region9: #{tpu_custom_call.1} parent=1 // pred_fallthru
      _
    // Predicated region
    $region10: #{tpu_custom_call.1} parent=1 // pred_check
      _
    $region11: #{tpu_custom_call.1} parent=1 // pred_check_branch
      %19 = sbr.rel (0) target = $region13
    $region12: #{tpu_custom_call.1} parent=1 // pred_region
      _
    $region13: #{tpu_custom_call.1} parent=1 // pred_fallthru
      _
    // Predicated region
    $region14: #{tpu_custom_call.1} parent=1 // pred_check
      _
    $region15: #{tpu_custom_call.1} parent=1 // pred_check_branch
      %21 = sbr.rel (0) target = $region17
    $region16: #{tpu_custom_call.1} parent=1 // pred_region
      _
    $region17: #{tpu_custom_call.1} parent=1 // pred_fallthru
      _
    // Predicated region
    $region18: #{tpu_custom_call.1} parent=1 // pred_check
      _
    $region19: #{tpu_custom_call.1} parent=1 // pred_check_branch
      %23 = sbr.rel (0) target = $region21
    $region20: #{tpu_custom_call.1} parent=1 // pred_region
      _
    $region21: #{tpu_custom_call.1} parent=1 // pred_fallthru
      _
    // Predicated region
    $region22: #{tpu_custom_call.1} parent=1 // pred_check
      _
    $region23: #{tpu_custom_call.1} parent=1 // pred_check_branch
      %25 = sbr.rel (0) target = $region25
    $region24: #{tpu_custom_call.1} parent=1 // pred_region
      _
    $region25: #{tpu_custom_call.1} parent=1 // pred_fallthru
      _
    // Predicated region
    $region26: #{tpu_custom_call.1} parent=1 // pred_check
      _
    $region27: #{tpu_custom_call.1} parent=1 // pred_check_branch
      %27 = sbr.rel (0) target = $region29
    $region28: #{tpu_custom_call.1} parent=1 // pred_region
      _
    $region29: #{tpu_custom_call.1} parent=1 // pred_fallthru
      _
    // Predicated region
    $region30: #{tpu_custom_call.1} parent=1 // pred_check
      _
    $region31: #{tpu_custom_call.1} parent=1 // pred_check_branch
      %29 = sbr.rel (0) target = $region33
    $region32: #{tpu_custom_call.1} parent=1 // pred_region
      _
    $region33: #{tpu_custom_call.1} parent=1 // pred_fallthru
      _
    %v31 = vld [vmem:[%s0] sm:$0xf]
    %v32 = vld [vmem:[%s0 + $0x4] sm:$0xf]
    %v33 = vld [vmem:[%s0 + $0x8] sm:$0xf]
    %v34 = vld [vmem:[%s0 + $0xc] sm:$0xf]
    %v35 = vld [vmem:[%s0 + $0x10] sm:$0xf]
    %v36 = vld [vmem:[%s0 + $0x14] sm:$0xf]
    %v37 = vld [vmem:[%s0 + $0x18] sm:$0xf]
    %v38 = vld [vmem:[%s0 + $0x1c] sm:$0xf]
    %v39 = vld [vmem:[%s0 + $0x20] sm:$0xf]
    %v40 = vld [vmem:[%s0 + $0x24] sm:$0xf]
    %41 = vst [vmem:[#allocation2] sm:$0xf] %v31
    %42 = vst [vmem:[#allocation2 + $0x4] sm:$0xf] %v32
    %43 = vst [vmem:[#allocation2 + $0x8] sm:$0xf] %v33
    %44 = vst [vmem:[#allocation2 + $0xc] sm:$0xf] %v34
    %45 = vst [vmem:[#allocation2 + $0x10] sm:$0xf] %v35
    %46 = vst [vmem:[#allocation2 + $0x14] sm:$0xf] %v36
    %47 = vst [vmem:[#allocation2 + $0x18] sm:$0xf] %v37
    %48 = vst [vmem:[#allocation2 + $0x1c] sm:$0xf] %v38
    %49 = vst [vmem:[#allocation2 + $0x20] sm:$0xf] %v39
    %50 = vst [vmem:[#allocation2 + $0x24] sm:$0xf] %v40
    %v51 = vld [vmem:[%s1] sm:$0xf]
    %v52 = vld [vmem:[%s1 + $0x4] sm:$0xf]
    %v53 = vld [vmem:[%s1 + $0x8] sm:$0xf]
    %v54 = vld [vmem:[%s1 + $0xc] sm:$0xf]
    %v55 = vld [vmem:[%s1 + $0x10] sm:$0xf]
    %v56 = vld [vmem:[%s1 + $0x14] sm:$0xf]
    %v57 = vld [vmem:[%s1 + $0x18] sm:$0xf]
    %v58 = vld [vmem:[%s1 + $0x1c] sm:$0xf]
    %v59 = vld [vmem:[%s1 + $0x20] sm:$0xf]
    %v60 = vld [vmem:[%s1 + $0x24] sm:$0xf]
    %v61 = vld [vmem:[%s1 + $0x28] sm:$0xf]
    %v62 = vld [vmem:[%s1 + $0x2c] sm:$0xf]
    %v63 = vld [vmem:[%s1 + $0x30] sm:$0xf]
    %v64 = vld [vmem:[%s1 + $0x34] sm:$0xf]
    %v65 = vld [vmem:[%s1 + $0x38] sm:$0xf]
    %v66 = vld [vmem:[%s1 + $0x3c] sm:$0xf]
    %v67 = vld [vmem:[%s1 + $0x40] sm:$0xf]
    %v68 = vld [vmem:[%s1 + $0x44] sm:$0xf]
    %v69 = vld [vmem:[%s1 + $0x48] sm:$0xf]
    %v70 = vld [vmem:[%s1 + $0x4c] sm:$0xf]
    %v71 = vld [vmem:[%s1 + $0x50] sm:$0xf]
    %v72 = vld [vmem:[%s1 + $0x54] sm:$0xf]
    %v73 = vld [vmem:[%s1 + $0x58] sm:$0xf]
    %v74 = vld [vmem:[%s1 + $0x5c] sm:$0xf]
    %v75 = vld [vmem:[%s1 + $0x60] sm:$0xf]
    %v76 = vld [vmem:[%s1 + $0x64] sm:$0xf]
    %v77 = vld [vmem:[%s1 + $0x68] sm:$0xf]
    %v78 = vld [vmem:[%s1 + $0x6c] sm:$0xf]
    %v79 = vld [vmem:[%s1 + $0x70] sm:$0xf]
    %v80 = vld [vmem:[%s1 + $0x74] sm:$0xf]
    %v81 = vld [vmem:[%s1 + $0x78] sm:$0xf]
    %v82 = vld [vmem:[%s1 + $0x7c] sm:$0xf]
    %v83 = vld [vmem:[%s1 + $0x80] sm:$0xf]
    %v84 = vld [vmem:[%s1 + $0x84] sm:$0xf]
    %v85 = vld [vmem:[%s1 + $0x88] sm:$0xf]
    %v86 = vld [vmem:[%s1 + $0x8c] sm:$0xf]
    %v87 = vld [vmem:[%s1 + $0x90] sm:$0xf]
    %v88 = vld [vmem:[%s1 + $0x94] sm:$0xf]
    %v89 = vld [vmem:[%s1 + $0x98] sm:$0xf]
    %v90 = vld [vmem:[%s1 + $0x9c] sm:$0xf]
    %v91 = vld [vmem:[%s1 + $0xa0] sm:$0xf]
    %v92 = vld [vmem:[%s1 + $0xa4] sm:$0xf]
    %v93 = vld [vmem:[%s1 + $0xa8] sm:$0xf]
    %v94 = vld [vmem:[%s1 + $0xac] sm:$0xf]
    %v95 = vld [vmem:[%s1 + $0xb0] sm:$0xf]
    %v96 = vld [vmem:[%s1 + $0xb4] sm:$0xf]
    %v97 = vld [vmem:[%s1 + $0xb8] sm:$0xf]
    %v98 = vld [vmem:[%s1 + $0xbc] sm:$0xf]
    %v99 = vld [vmem:[%s1 + $0xc0] sm:$0xf]
    %v100 = vld [vmem:[%s1 + $0xc4] sm:$0xf]
    %v101 = vld [vmem:[%s1 + $0xc8] sm:$0xf]
    %v102 = vld [vmem:[%s1 + $0xcc] sm:$0xf]
    %v103 = vld [vmem:[%s1 + $0xd0] sm:$0xf]
    %v104 = vld [vmem:[%s1 + $0xd4] sm:$0xf]
    %v105 = vld [vmem:[%s1 + $0xd8] sm:$0xf]
    %v106 = vld [vmem:[%s1 + $0xdc] sm:$0xf]
    %v107 = vld [vmem:[%s1 + $0xe0] sm:$0xf]
    %v108 = vld [vmem:[%s1 + $0xe4] sm:$0xf]
    %v109 = vld [vmem:[%s1 + $0xe8] sm:$0xf]
    %v110 = vld [vmem:[%s1 + $0xec] sm:$0xf]
    %v111 = vld [vmem:[%s1 + $0xf0] sm:$0xf]
    %v112 = vld [vmem:[%s1 + $0xf4] sm:$0xf]
    %v113 = vld [vmem:[%s1 + $0xf8] sm:$0xf]
    %v114 = vld [vmem:[%s1 + $0xfc] sm:$0xf]
    %v179 = vunpack.c.l.b16 %v51
    %v180 = vunpack.c.l.b16 %v52
    %v181 = vunpack.c.l.b16 %v53
    %v182 = vunpack.c.l.b16 %v54
    %v183 = vunpack.c.l.b16 %v55
    %v184 = vunpack.c.l.b16 %v56
    %v185 = vunpack.c.l.b16 %v57
    %v186 = vunpack.c.l.b16 %v58
    %v187 = vunpack.c.l.b16 %v59
    %v188 = vunpack.c.l.b16 %v60
    %v189 = vunpack.c.l.b16 %v61
    %v190 = vunpack.c.l.b16 %v62
    %v191 = vunpack.c.l.b16 %v63
    %v192 = vunpack.c.l.b16 %v64
    %v193 = vunpack.c.l.b16 %v65
    %v194 = vunpack.c.l.b16 %v66
    %v195 = vunpack.c.l.b16 %v67
    %v196 = vunpack.c.l.b16 %v68
    %v197 = vunpack.c.l.b16 %v69
    %v198 = vunpack.c.l.b16 %v70
    %v199 = vunpack.c.l.b16 %v71
    %v200 = vunpack.c.l.b16 %v72
    %v201 = vunpack.c.l.b16 %v73
    %v202 = vunpack.c.l.b16 %v74
    %v203 = vunpack.c.l.b16 %v75
    %v204 = vunpack.c.l.b16 %v76
    %v205 = vunpack.c.l.b16 %v77
    %v206 = vunpack.c.l.b16 %v78
    %v207 = vunpack.c.l.b16 %v79
    %v208 = vunpack.c.l.b16 %v80
    %v209 = vunpack.c.l.b16 %v81
    %v210 = vunpack.c.l.b16 %v82
    %v211 = vunpack.c.l.b16 %v83
    %v212 = vunpack.c.l.b16 %v84
    %v213 = vunpack.c.l.b16 %v85
    %v214 = vunpack.c.l.b16 %v86
    %v215 = vunpack.c.l.b16 %v87
    %v216 = vunpack.c.l.b16 %v88
    %v217 = vunpack.c.l.b16 %v89
    %v218 = vunpack.c.l.b16 %v90
    %v219 = vunpack.c.l.b16 %v91
    %v220 = vunpack.c.l.b16 %v92
    %v221 = vunpack.c.l.b16 %v93
    %v222 = vunpack.c.l.b16 %v94
    %v223 = vunpack.c.l.b16 %v95
    %v224 = vunpack.c.l.b16 %v96
    %v225 = vunpack.c.l.b16 %v97
    %v226 = vunpack.c.l.b16 %v98
    %v227 = vunpack.c.l.b16 %v99
    %v228 = vunpack.c.l.b16 %v100
    %v229 = vunpack.c.l.b16 %v101
    %v230 = vunpack.c.l.b16 %v102
    %v231 = vunpack.c.l.b16 %v103
    %v232 = vunpack.c.l.b16 %v104
    %v233 = vunpack.c.l.b16 %v105
    %v234 = vunpack.c.l.b16 %v106
    %v235 = vunpack.c.l.b16 %v107
    %v236 = vunpack.c.l.b16 %v108
    %v237 = vunpack.c.l.b16 %v109
    %v238 = vunpack.c.l.b16 %v110
    %v239 = vunpack.c.l.b16 %v111
    %v240 = vunpack.c.l.b16 %v112
    %v241 = vunpack.c.l.b16 %v113
    %v242 = vunpack.c.l.b16 %v114
    %v243 = vpack.c.b16 %v180, %v179
    %v244 = vpack.c.b16 %v182, %v181
    %v245 = vpack.c.b16 %v184, %v183
    %v246 = vpack.c.b16 %v186, %v185
    %v247 = vpack.c.b16 %v188, %v187
    %v248 = vpack.c.b16 %v190, %v189
    %v249 = vpack.c.b16 %v192, %v191
    %v250 = vpack.c.b16 %v194, %v193
    %v251 = vpack.c.b16 %v196, %v195
    %v252 = vpack.c.b16 %v198, %v197
    %v253 = vpack.c.b16 %v200, %v199
    %v254 = vpack.c.b16 %v202, %v201
    %v255 = vpack.c.b16 %v204, %v203
    %v256 = vpack.c.b16 %v206, %v205
    %v257 = vpack.c.b16 %v208, %v207
    %v258 = vpack.c.b16 %v210, %v209
    %v259 = vpack.c.b16 %v212, %v211
    %v260 = vpack.c.b16 %v214, %v213
    %v261 = vpack.c.b16 %v216, %v215
    %v262 = vpack.c.b16 %v218, %v217
    %v263 = vpack.c.b16 %v220, %v219
    %v264 = vpack.c.b16 %v222, %v221
    %v265 = vpack.c.b16 %v224, %v223
    %v266 = vpack.c.b16 %v226, %v225
    %v267 = vpack.c.b16 %v228, %v227
    %v268 = vpack.c.b16 %v230, %v229
    %v269 = vpack.c.b16 %v232, %v231
    %v270 = vpack.c.b16 %v234, %v233
    %v271 = vpack.c.b16 %v236, %v235
    %v272 = vpack.c.b16 %v238, %v237
    %v273 = vpack.c.b16 %v240, %v239
    %v274 = vpack.c.b16 %v242, %v241
    %v285 = vunpack.c.l.b16 %v31
    %v286 = vunpack.c.l.b16 %v32
    %v287 = vunpack.c.l.b16 %v33
    %v288 = vunpack.c.l.b16 %v34
    %v289 = vunpack.c.l.b16 %v35
    %v290 = vunpack.c.l.b16 %v36
    %v291 = vunpack.c.l.b16 %v37
    %v292 = vunpack.c.l.b16 %v38
    %v293 = vunpack.c.l.b16 %v39
    %v294 = vunpack.c.l.b16 %v40
    %v295 = vpack.c.b16 %v286, %v285
    %v296 = vpack.c.b16 %v288, %v287
    %v297 = vpack.c.b16 %v290, %v289
    %v298 = vpack.c.b16 %v292, %v291
    %v299 = vpack.c.b16 %v294, %v293
    %vm305 = vcmask 654336
    %v307 = vsel %vm305, %v243, 0
    %v310 = vsel %vm305, %v244, 0
    %v313 = vsel %vm305, %v245, 0
    %v316 = vsel %vm305, %v246, 0
    %v319 = vsel %vm305, %v247, 0
    %v322 = vsel %vm305, %v248, 0
    %v325 = vsel %vm305, %v249, 0
    %v328 = vsel %vm305, %v250, 0
    %v331 = vsel %vm305, %v251, 0
    %v334 = vsel %vm305, %v252, 0
    %v337 = vsel %vm305, %v253, 0
    %v340 = vsel %vm305, %v254, 0
    %v343 = vsel %vm305, %v255, 0
    %v346 = vsel %vm305, %v256, 0
    %v349 = vsel %vm305, %v257, 0
    %v352 = vsel %vm305, %v258, 0
    %v355 = vsel %vm305, %v259, 0
    %v358 = vsel %vm305, %v260, 0
    %v361 = vsel %vm305, %v261, 0
    %v364 = vsel %vm305, %v262, 0
    %v367 = vsel %vm305, %v263, 0
    %v370 = vsel %vm305, %v264, 0
    %v373 = vsel %vm305, %v265, 0
    %v376 = vsel %vm305, %v266, 0
    %v379 = vsel %vm305, %v267, 0
    %v382 = vsel %vm305, %v268, 0
    %v385 = vsel %vm305, %v269, 0
    %v388 = vsel %vm305, %v270, 0
    %v391 = vsel %vm305, %v271, 0
    %v394 = vsel %vm305, %v272, 0
    %v397 = vsel %vm305, %v273, 0
    %v400 = vsel %vm305, %v274, 0
    %402 = vmatprep.subr.bf16.mxu0 0
    %403 = vmatpush1.bf16.msra.mxu0 0
    %404 = vmatprep.subr.bf16.mxu0 0
    %405 = vmatpush1.bf16.msra.mxu0 0
    %406 = vmatprep.subr.bf16.mxu0 0
    %407 = vmatpush1.bf16.msra.mxu0 0
    %408 = vmatprep.subr.bf16.mxu0 0
    %409 = vmatpush1.bf16.msra.mxu0 %v299
    %410 = vmatprep.subr.bf16.mxu0 0
    %411 = vmatpush1.bf16.msra.mxu0 %v298
    %412 = vmatprep.subr.bf16.mxu0 0
    %413 = vmatpush1.bf16.msra.mxu0 %v297
    %414 = vmatprep.subr.bf16.mxu0 0
    %415 = vmatpush1.bf16.msra.mxu0 %v296
    %416 = vmatprep.subr.bf16.mxu0 0
    %417 = vmatpush1.bf16.msra.mxu0 %v295
    %418 = vmatprep.subr.bf16.mxu0 0
    %419 = vmatpush2.bf16.msra.mxu0 0
    %420 = vmatprep.subr.bf16.mxu0 0
    %421 = vmatpush2.bf16.msra.mxu0 0
    %422 = vmatprep.subr.bf16.mxu0 0
    %423 = vmatpush2.bf16.msra.mxu0 0
    %424 = vmatprep.subr.bf16.mxu0 0
    %425 = vmatpush2.bf16.msra.mxu0 0
    %426 = vmatprep.subr.bf16.mxu0 0
    %427 = vmatpush2.bf16.msra.mxu0 0
    %428 = vmatprep.subr.bf16.mxu0 0
    %429 = vmatpush2.bf16.msra.mxu0 0
    %430 = vmatprep.subr.bf16.mxu0 0
    %431 = vmatpush2.bf16.msra.mxu0 0
    %432 = vmatprep.subr.bf16.mxu0 0
    %433 = vmatpush2.bf16.msra.mxu0 0
    %434 = vmatprep.mubr.bf16.mxu0 0
    %435 = vmatmul.mubr.bf16.gmra.mxu0 %v307
    %v436 = vpop.f32.mrf.mxu0
    %v437 = vadd.f32 0.0, %v436
    %v438 = vpop.f32.mrf.mxu0
    %v439 = vpop.f32.mrf.mxu0
    %v440 = vadd.f32 0.0, %v439
    %v441 = vpop.f32.mrf.mxu0
    %442 = vmatprep.mubr.bf16.mxu0 0
    %443 = vmatmul.mubr.bf16.gmra.mxu0 %v310
    %v444 = vpop.f32.mrf.mxu0
    %v445 = vadd.f32 0.0, %v444
    %v446 = vpop.f32.mrf.mxu0
    %v447 = vpop.f32.mrf.mxu0
    %v448 = vadd.f32 0.0, %v447
    %v449 = vpop.f32.mrf.mxu0
    %450 = vmatprep.mubr.bf16.mxu0 0
    %451 = vmatmul.mubr.bf16.gmra.mxu0 %v313
    %v452 = vpop.f32.mrf.mxu0
    %v453 = vadd.f32 0.0, %v452
    %v454 = vpop.f32.mrf.mxu0
    %v455 = vpop.f32.mrf.mxu0
    %v456 = vadd.f32 0.0, %v455
    %v457 = vpop.f32.mrf.mxu0
    %458 = vmatprep.mubr.bf16.mxu0 0
    %459 = vmatmul.mubr.bf16.gmra.mxu0 %v316
    %v460 = vpop.f32.mrf.mxu0
    %v461 = vadd.f32 0.0, %v460
    %v462 = vpop.f32.mrf.mxu0
    %v463 = vpop.f32.mrf.mxu0
    %v464 = vadd.f32 0.0, %v463
    %v465 = vpop.f32.mrf.mxu0
    %466 = vmatprep.mubr.bf16.mxu0 0
    %467 = vmatmul.mubr.bf16.gmra.mxu0 %v319
    %v468 = vpop.f32.mrf.mxu0
    %v469 = vadd.f32 0.0, %v468
    %v470 = vpop.f32.mrf.mxu0
    %v471 = vpop.f32.mrf.mxu0
    %v472 = vadd.f32 0.0, %v471
    %v473 = vpop.f32.mrf.mxu0
    %474 = vmatprep.mubr.bf16.mxu0 0
    %475 = vmatmul.mubr.bf16.gmra.mxu0 %v322
    %v476 = vpop.f32.mrf.mxu0
    %v477 = vadd.f32 0.0, %v476
    %v478 = vpop.f32.mrf.mxu0
    %v479 = vpop.f32.mrf.mxu0
    %v480 = vadd.f32 0.0, %v479
    %v481 = vpop.f32.mrf.mxu0
    %482 = vmatprep.mubr.bf16.mxu0 0
    %483 = vmatmul.mubr.bf16.gmra.mxu0 %v325
    %v484 = vpop.f32.mrf.mxu0
    %v485 = vadd.f32 0.0, %v484
    %v486 = vpop.f32.mrf.mxu0
    %v487 = vpop.f32.mrf.mxu0
    %v488 = vadd.f32 0.0, %v487
    %v489 = vpop.f32.mrf.mxu0
    %490 = vmatprep.mubr.bf16.mxu0 0
    %491 = vmatmul.mubr.bf16.gmra.mxu0 %v328
    %v492 = vpop.f32.mrf.mxu0
    %v493 = vadd.f32 0.0, %v492
    %v494 = vpop.f32.mrf.mxu0
    %v495 = vpop.f32.mrf.mxu0
    %v496 = vadd.f32 0.0, %v495
    %v497 = vpop.f32.mrf.mxu0
    %498 = vmatprep.mubr.bf16.mxu0 0
    %499 = vmatmul.mubr.bf16.gmra.mxu0 %v331
    %v500 = vpop.f32.mrf.mxu0
    %v501 = vadd.f32 0.0, %v500
    %v502 = vpop.f32.mrf.mxu0
    %v503 = vpop.f32.mrf.mxu0
    %v504 = vadd.f32 0.0, %v503
    %v505 = vpop.f32.mrf.mxu0
    %506 = vmatprep.mubr.bf16.mxu0 0
    %507 = vmatmul.mubr.bf16.gmra.mxu0 %v334
    %v508 = vpop.f32.mrf.mxu0
    %v509 = vadd.f32 0.0, %v508
    %v510 = vpop.f32.mrf.mxu0
    %v511 = vpop.f32.mrf.mxu0
    %v512 = vadd.f32 0.0, %v511
    %v513 = vpop.f32.mrf.mxu0
    %514 = vmatprep.mubr.bf16.mxu0 0
    %515 = vmatmul.mubr.bf16.gmra.mxu0 %v337
    %v516 = vpop.f32.mrf.mxu0
    %v517 = vadd.f32 0.0, %v516
    %v518 = vpop.f32.mrf.mxu0
    %v519 = vpop.f32.mrf.mxu0
    %v520 = vadd.f32 0.0, %v519
    %v521 = vpop.f32.mrf.mxu0
    %522 = vmatprep.mubr.bf16.mxu0 0
    %523 = vmatmul.mubr.bf16.gmra.mxu0 %v340
    %v524 = vpop.f32.mrf.mxu0
    %v525 = vadd.f32 0.0, %v524
    %v526 = vpop.f32.mrf.mxu0
    %v527 = vpop.f32.mrf.mxu0
    %v528 = vadd.f32 0.0, %v527
    %v529 = vpop.f32.mrf.mxu0
    %530 = vmatprep.mubr.bf16.mxu0 0
    %531 = vmatmul.mubr.bf16.gmra.mxu0 %v343
    %v532 = vpop.f32.mrf.mxu0
    %v533 = vadd.f32 0.0, %v532
    %v534 = vpop.f32.mrf.mxu0
    %v535 = vpop.f32.mrf.mxu0
    %v536 = vadd.f32 0.0, %v535
    %v537 = vpop.f32.mrf.mxu0
    %538 = vmatprep.mubr.bf16.mxu0 0
    %539 = vmatmul.mubr.bf16.gmra.mxu0 %v346
    %v540 = vpop.f32.mrf.mxu0
    %v541 = vadd.f32 0.0, %v540
    %v542 = vpop.f32.mrf.mxu0
    %v543 = vpop.f32.mrf.mxu0
    %v544 = vadd.f32 0.0, %v543
    %v545 = vpop.f32.mrf.mxu0
    %546 = vmatprep.mubr.bf16.mxu0 0
    %547 = vmatmul.mubr.bf16.gmra.mxu0 %v349
    %v548 = vpop.f32.mrf.mxu0
    %v549 = vadd.f32 0.0, %v548
    %v550 = vpop.f32.mrf.mxu0
    %v551 = vpop.f32.mrf.mxu0
    %v552 = vadd.f32 0.0, %v551
    %v553 = vpop.f32.mrf.mxu0
    %554 = vmatprep.mubr.bf16.mxu0 0
    %555 = vmatmul.mubr.bf16.gmra.mxu0 %v352
    %v556 = vpop.f32.mrf.mxu0
    %v557 = vadd.f32 0.0, %v556
    %v558 = vpop.f32.mrf.mxu0
    %v559 = vpop.f32.mrf.mxu0
    %v560 = vadd.f32 0.0, %v559
    %v561 = vpop.f32.mrf.mxu0
    %562 = vmatprep.mubr.bf16.mxu0 0
    %563 = vmatmul.mubr.bf16.gmra.mxu0 %v355
    %v564 = vpop.f32.mrf.mxu0
    %v565 = vadd.f32 0.0, %v564
    %v566 = vpop.f32.mrf.mxu0
    %v567 = vpop.f32.mrf.mxu0
    %v568 = vadd.f32 0.0, %v567
    %v569 = vpop.f32.mrf.mxu0
    %570 = vmatprep.mubr.bf16.mxu0 0
    %571 = vmatmul.mubr.bf16.gmra.mxu0 %v358
    %v572 = vpop.f32.mrf.mxu0
    %v573 = vadd.f32 0.0, %v572
    %v574 = vpop.f32.mrf.mxu0
    %v575 = vpop.f32.mrf.mxu0
    %v576 = vadd.f32 0.0, %v575
    %v577 = vpop.f32.mrf.mxu0
    %578 = vmatprep.mubr.bf16.mxu0 0
    %579 = vmatmul.mubr.bf16.gmra.mxu0 %v361
    %v580 = vpop.f32.mrf.mxu0
    %v581 = vadd.f32 0.0, %v580
    %v582 = vpop.f32.mrf.mxu0
    %v583 = vpop.f32.mrf.mxu0
    %v584 = vadd.f32 0.0, %v583
    %v585 = vpop.f32.mrf.mxu0
    %586 = vmatprep.mubr.bf16.mxu0 0
    %587 = vmatmul.mubr.bf16.gmra.mxu0 %v364
    %v588 = vpop.f32.mrf.mxu0
    %v589 = vadd.f32 0.0, %v588
    %v590 = vpop.f32.mrf.mxu0
    %v591 = vpop.f32.mrf.mxu0
    %v592 = vadd.f32 0.0, %v591
    %v593 = vpop.f32.mrf.mxu0
    %594 = vmatprep.mubr.bf16.mxu0 0
    %595 = vmatmul.mubr.bf16.gmra.mxu0 %v367
    %v596 = vpop.f32.mrf.mxu0
    %v597 = vadd.f32 0.0, %v596
    %v598 = vpop.f32.mrf.mxu0
    %v599 = vpop.f32.mrf.mxu0
    %v600 = vadd.f32 0.0, %v599
    %v601 = vpop.f32.mrf.mxu0
    %602 = vmatprep.mubr.bf16.mxu0 0
    %603 = vmatmul.mubr.bf16.gmra.mxu0 %v370
    %v604 = vpop.f32.mrf.mxu0
    %v605 = vadd.f32 0.0, %v604
    %v606 = vpop.f32.mrf.mxu0
    %v607 = vpop.f32.mrf.mxu0
    %v608 = vadd.f32 0.0, %v607
    %v609 = vpop.f32.mrf.mxu0
    %610 = vmatprep.mubr.bf16.mxu0 0
    %611 = vmatmul.mubr.bf16.gmra.mxu0 %v373
    %v612 = vpop.f32.mrf.mxu0
    %v613 = vadd.f32 0.0, %v612
    %v614 = vpop.f32.mrf.mxu0
    %v615 = vpop.f32.mrf.mxu0
    %v616 = vadd.f32 0.0, %v615
    %v617 = vpop.f32.mrf.mxu0
    %618 = vmatprep.mubr.bf16.mxu0 0
    %619 = vmatmul.mubr.bf16.gmra.mxu0 %v376
    %v620 = vpop.f32.mrf.mxu0
    %v621 = vadd.f32 0.0, %v620
    %v622 = vpop.f32.mrf.mxu0
    %v623 = vpop.f32.mrf.mxu0
    %v624 = vadd.f32 0.0, %v623
    %v625 = vpop.f32.mrf.mxu0
    %626 = vmatprep.mubr.bf16.mxu0 0
    %627 = vmatmul.mubr.bf16.gmra.mxu0 %v379
    %v628 = vpop.f32.mrf.mxu0
    %v629 = vadd.f32 0.0, %v628
    %v630 = vpop.f32.mrf.mxu0
    %v631 = vpop.f32.mrf.mxu0
    %v632 = vadd.f32 0.0, %v631
    %v633 = vpop.f32.mrf.mxu0
    %634 = vmatprep.mubr.bf16.mxu0 0
    %635 = vmatmul.mubr.bf16.gmra.mxu0 %v382
    %v636 = vpop.f32.mrf.mxu0
    %v637 = vadd.f32 0.0, %v636
    %v638 = vpop.f32.mrf.mxu0
    %v639 = vpop.f32.mrf.mxu0
    %v640 = vadd.f32 0.0, %v639
    %v641 = vpop.f32.mrf.mxu0
    %642 = vmatprep.mubr.bf16.mxu0 0
    %643 = vmatmul.mubr.bf16.gmra.mxu0 %v385
    %v644 = vpop.f32.mrf.mxu0
    %v645 = vadd.f32 0.0, %v644
    %v646 = vpop.f32.mrf.mxu0
    %v647 = vpop.f32.mrf.mxu0
    %v648 = vadd.f32 0.0, %v647
    %v649 = vpop.f32.mrf.mxu0
    %650 = vmatprep.mubr.bf16.mxu0 0
    %651 = vmatmul.mubr.bf16.gmra.mxu0 %v388
    %v652 = vpop.f32.mrf.mxu0
    %v653 = vadd.f32 0.0, %v652
    %v654 = vpop.f32.mrf.mxu0
    %v655 = vpop.f32.mrf.mxu0
    %v656 = vadd.f32 0.0, %v655
    %v657 = vpop.f32.mrf.mxu0
    %658 = vmatprep.mubr.bf16.mxu0 0
    %659 = vmatmul.mubr.bf16.gmra.mxu0 %v391
    %v660 = vpop.f32.mrf.mxu0
    %v661 = vadd.f32 0.0, %v660
    %v662 = vpop.f32.mrf.mxu0
    %v663 = vpop.f32.mrf.mxu0
    %v664 = vadd.f32 0.0, %v663
    %v665 = vpop.f32.mrf.mxu0
    %666 = vmatprep.mubr.bf16.mxu0 0
    %667 = vmatmul.mubr.bf16.gmra.mxu0 %v394
    %v668 = vpop.f32.mrf.mxu0
    %v669 = vadd.f32 0.0, %v668
    %v670 = vpop.f32.mrf.mxu0
    %v671 = vpop.f32.mrf.mxu0
    %v672 = vadd.f32 0.0, %v671
    %v673 = vpop.f32.mrf.mxu0
    %674 = vmatprep.mubr.bf16.mxu0 0
    %675 = vmatmul.mubr.bf16.gmra.mxu0 %v397
    %v676 = vpop.f32.mrf.mxu0
    %v677 = vadd.f32 0.0, %v676
    %v678 = vpop.f32.mrf.mxu0
    %v679 = vpop.f32.mrf.mxu0
    %v680 = vadd.f32 0.0, %v679
    %v681 = vpop.f32.mrf.mxu0
    %682 = vmatprep.mubr.bf16.mxu0 0
    %683 = vmatmul.mubr.bf16.gmra.mxu0 %v400
    %v684 = vpop.f32.mrf.mxu0
    %v685 = vadd.f32 0.0, %v684
    %v686 = vpop.f32.mrf.mxu0
    %v687 = vpop.f32.mrf.mxu0
    %v688 = vadd.f32 0.0, %v687
    %v689 = vpop.f32.mrf.mxu0
    %690 = vdwg.mxu0
    %v691 = vmax.f32 %v437, 0.0
    %v692 = vmax.f32 %v440, 0.0
    %v693 = vmax.f32 %v445, 0.0
    %v694 = vmax.f32 %v448, 0.0
    %v695 = vmax.f32 %v453, 0.0
    %v696 = vmax.f32 %v456, 0.0
    %v697 = vmax.f32 %v461, 0.0
    %v698 = vmax.f32 %v464, 0.0
    %v699 = vmax.f32 %v469, 0.0
    %v700 = vmax.f32 %v472, 0.0
    %v701 = vmax.f32 %v477, 0.0
    %v702 = vmax.f32 %v480, 0.0
    %v703 = vmax.f32 %v485, 0.0
    %v704 = vmax.f32 %v488, 0.0
    %v705 = vmax.f32 %v493, 0.0
    %v706 = vmax.f32 %v496, 0.0
    %v707 = vmax.f32 %v501, 0.0
    %v708 = vmax.f32 %v504, 0.0
    %v709 = vmax.f32 %v509, 0.0
    %v710 = vmax.f32 %v512, 0.0
    %v711 = vmax.f32 %v517, 0.0
    %v712 = vmax.f32 %v520, 0.0
    %v713 = vmax.f32 %v525, 0.0
    %v714 = vmax.f32 %v528, 0.0
    %v715 = vmax.f32 %v533, 0.0
    %v716 = vmax.f32 %v536, 0.0
    %v717 = vmax.f32 %v541, 0.0
    %v718 = vmax.f32 %v544, 0.0
    %v719 = vmax.f32 %v549, 0.0
    %v720 = vmax.f32 %v552, 0.0
    %v721 = vmax.f32 %v557, 0.0
    %v722 = vmax.f32 %v560, 0.0
    %v723 = vmax.f32 %v565, 0.0
    %v724 = vmax.f32 %v568, 0.0
    %v725 = vmax.f32 %v573, 0.0
    %v726 = vmax.f32 %v576, 0.0
    %v727 = vmax.f32 %v581, 0.0
    %v728 = vmax.f32 %v584, 0.0
    %v729 = vmax.f32 %v589, 0.0
    %v730 = vmax.f32 %v592, 0.0
    %v731 = vmax.f32 %v597, 0.0
    %v732 = vmax.f32 %v600, 0.0
    %v733 = vmax.f32 %v605, 0.0
    %v734 = vmax.f32 %v608, 0.0
    %v735 = vmax.f32 %v613, 0.0
    %v736 = vmax.f32 %v616, 0.0
    %v737 = vmax.f32 %v621, 0.0
    %v738 = vmax.f32 %v624, 0.0
    %v739 = vmax.f32 %v629, 0.0
    %v740 = vmax.f32 %v632, 0.0
    %v741 = vmax.f32 %v637, 0.0
    %v742 = vmax.f32 %v640, 0.0
    %v743 = vmax.f32 %v645, 0.0
    %v744 = vmax.f32 %v648, 0.0
    %v745 = vmax.f32 %v653, 0.0
    %v746 = vmax.f32 %v656, 0.0
    %v747 = vmax.f32 %v661, 0.0
    %v748 = vmax.f32 %v664, 0.0
    %v749 = vmax.f32 %v669, 0.0
    %v750 = vmax.f32 %v672, 0.0
    %v751 = vmax.f32 %v677, 0.0
    %v752 = vmax.f32 %v680, 0.0
    %v753 = vmax.f32 %v685, 0.0
    %v754 = vmax.f32 %v688, 0.0
    %v755 = vpack.c.bf16 %v692, %v691
    %v756 = vpack.c.bf16 %v694, %v693
    %v757 = vpack.c.bf16 %v696, %v695
    %v758 = vpack.c.bf16 %v698, %v697
    %v759 = vpack.c.bf16 %v700, %v699
    %v760 = vpack.c.bf16 %v702, %v701
    %v761 = vpack.c.bf16 %v704, %v703
    %v762 = vpack.c.bf16 %v706, %v705
    %v763 = vpack.c.bf16 %v708, %v707
    %v764 = vpack.c.bf16 %v710, %v709
    %v765 = vpack.c.bf16 %v712, %v711
    %v766 = vpack.c.bf16 %v714, %v713
    %v767 = vpack.c.bf16 %v716, %v715
    %v768 = vpack.c.bf16 %v718, %v717
    %v769 = vpack.c.bf16 %v720, %v719
    %v770 = vpack.c.bf16 %v722, %v721
    %v771 = vpack.c.bf16 %v724, %v723
    %v772 = vpack.c.bf16 %v726, %v725
    %v773 = vpack.c.bf16 %v728, %v727
    %v774 = vpack.c.bf16 %v730, %v729
    %v775 = vpack.c.bf16 %v732, %v731
    %v776 = vpack.c.bf16 %v734, %v733
    %v777 = vpack.c.bf16 %v736, %v735
    %v778 = vpack.c.bf16 %v738, %v737
    %v779 = vpack.c.bf16 %v740, %v739
    %v780 = vpack.c.bf16 %v742, %v741
    %v781 = vpack.c.bf16 %v744, %v743
    %v782 = vpack.c.bf16 %v746, %v745
    %v783 = vpack.c.bf16 %v748, %v747
    %v784 = vpack.c.bf16 %v750, %v749
    %v785 = vpack.c.bf16 %v752, %v751
    %v786 = vpack.c.bf16 %v754, %v753
    %v819 = vunpack.c.l.b16 %v755
    %v820 = vunpack.c.h.b16 %v755
    %v821 = vunpack.c.l.b16 %v756
    %v822 = vunpack.c.h.b16 %v756
    %v823 = vunpack.c.l.b16 %v757
    %v824 = vunpack.c.h.b16 %v757
    %v825 = vunpack.c.l.b16 %v758
    %v826 = vunpack.c.h.b16 %v758
    %v827 = vunpack.c.l.b16 %v759
    %v828 = vunpack.c.h.b16 %v759
    %v829 = vunpack.c.l.b16 %v760
    %v830 = vunpack.c.h.b16 %v760
    %v831 = vunpack.c.l.b16 %v761
    %v832 = vunpack.c.h.b16 %v761
    %v833 = vunpack.c.l.b16 %v762
    %v834 = vunpack.c.h.b16 %v762
    %v835 = vunpack.c.l.b16 %v763
    %v836 = vunpack.c.h.b16 %v763
    %v837 = vunpack.c.l.b16 %v764
    %v838 = vunpack.c.h.b16 %v764
    %v839 = vunpack.c.l.b16 %v765
    %v840 = vunpack.c.h.b16 %v765
    %v841 = vunpack.c.l.b16 %v766
    %v842 = vunpack.c.h.b16 %v766
    %v843 = vunpack.c.l.b16 %v767
    %v844 = vunpack.c.h.b16 %v767
    %v845 = vunpack.c.l.b16 %v768
    %v846 = vunpack.c.h.b16 %v768
    %v847 = vunpack.c.l.b16 %v769
    %v848 = vunpack.c.h.b16 %v769
    %v849 = vunpack.c.l.b16 %v770
    %v850 = vunpack.c.h.b16 %v770
    %v851 = vunpack.c.l.b16 %v771
    %v852 = vunpack.c.h.b16 %v771
    %v853 = vunpack.c.l.b16 %v772
    %v854 = vunpack.c.h.b16 %v772
    %v855 = vunpack.c.l.b16 %v773
    %v856 = vunpack.c.h.b16 %v773
    %v857 = vunpack.c.l.b16 %v774
    %v858 = vunpack.c.h.b16 %v774
    %v859 = vunpack.c.l.b16 %v775
    %v860 = vunpack.c.h.b16 %v775
    %v861 = vunpack.c.l.b16 %v776
    %v862 = vunpack.c.h.b16 %v776
    %v863 = vunpack.c.l.b16 %v777
    %v864 = vunpack.c.h.b16 %v777
    %v865 = vunpack.c.l.b16 %v778
    %v866 = vunpack.c.h.b16 %v778
    %v867 = vunpack.c.l.b16 %v779
    %v868 = vunpack.c.h.b16 %v779
    %v869 = vunpack.c.l.b16 %v780
    %v870 = vunpack.c.h.b16 %v780
    %v871 = vunpack.c.l.b16 %v781
    %v872 = vunpack.c.h.b16 %v781
    %v873 = vunpack.c.l.b16 %v782
    %v874 = vunpack.c.h.b16 %v782
    %v875 = vunpack.c.l.b16 %v783
    %v876 = vunpack.c.h.b16 %v783
    %v877 = vunpack.c.l.b16 %v784
    %v878 = vunpack.c.h.b16 %v784
    %v879 = vunpack.c.l.b16 %v785
    %v880 = vunpack.c.h.b16 %v785
    %v881 = vunpack.c.l.b16 %v786
    %v882 = vunpack.c.h.b16 %v786
    %v883 = vpack.c.b16 %v819, %v819
    %v884 = vpack.c.b16 %v820, %v820
    %v885 = vpack.c.b16 %v821, %v821
    %v886 = vpack.c.b16 %v822, %v822
    %v887 = vpack.c.b16 %v823, %v823
    %v888 = vpack.c.b16 %v824, %v824
    %v889 = vpack.c.b16 %v825, %v825
    %v890 = vpack.c.b16 %v826, %v826
    %v891 = vpack.c.b16 %v827, %v827
    %v892 = vpack.c.b16 %v828, %v828
    %v893 = vpack.c.b16 %v829, %v829
    %v894 = vpack.c.b16 %v830, %v830
    %v895 = vpack.c.b16 %v831, %v831
    %v896 = vpack.c.b16 %v832, %v832
    %v897 = vpack.c.b16 %v833, %v833
    %v898 = vpack.c.b16 %v834, %v834
    %v899 = vpack.c.b16 %v835, %v835
    %v900 = vpack.c.b16 %v836, %v836
    %v901 = vpack.c.b16 %v837, %v837
    %v902 = vpack.c.b16 %v838, %v838
    %v903 = vpack.c.b16 %v839, %v839
    %v904 = vpack.c.b16 %v840, %v840
    %v905 = vpack.c.b16 %v841, %v841
    %v906 = vpack.c.b16 %v842, %v842
    %v907 = vpack.c.b16 %v843, %v843
    %v908 = vpack.c.b16 %v844, %v844
    %v909 = vpack.c.b16 %v845, %v845
    %v910 = vpack.c.b16 %v846, %v846
    %v911 = vpack.c.b16 %v847, %v847
    %v912 = vpack.c.b16 %v848, %v848
    %v913 = vpack.c.b16 %v849, %v849
    %v914 = vpack.c.b16 %v850, %v850
    %v915 = vpack.c.b16 %v851, %v851
    %v916 = vpack.c.b16 %v852, %v852
    %v917 = vpack.c.b16 %v853, %v853
    %v918 = vpack.c.b16 %v854, %v854
    %v919 = vpack.c.b16 %v855, %v855
    %v920 = vpack.c.b16 %v856, %v856
    %v921 = vpack.c.b16 %v857, %v857
    %v922 = vpack.c.b16 %v858, %v858
    %v923 = vpack.c.b16 %v859, %v859
    %v924 = vpack.c.b16 %v860, %v860
    %v925 = vpack.c.b16 %v861, %v861
    %v926 = vpack.c.b16 %v862, %v862
    %v927 = vpack.c.b16 %v863, %v863
    %v928 = vpack.c.b16 %v864, %v864
    %v929 = vpack.c.b16 %v865, %v865
    %v930 = vpack.c.b16 %v866, %v866
    %v931 = vpack.c.b16 %v867, %v867
    %v932 = vpack.c.b16 %v868, %v868
    %v933 = vpack.c.b16 %v869, %v869
    %v934 = vpack.c.b16 %v870, %v870
    %v935 = vpack.c.b16 %v871, %v871
    %v936 = vpack.c.b16 %v872, %v872
    %v937 = vpack.c.b16 %v873, %v873
    %v938 = vpack.c.b16 %v874, %v874
    %v939 = vpack.c.b16 %v875, %v875
    %v940 = vpack.c.b16 %v876, %v876
    %v941 = vpack.c.b16 %v877, %v877
    %v942 = vpack.c.b16 %v878, %v878
    %v943 = vpack.c.b16 %v879, %v879
    %v944 = vpack.c.b16 %v880, %v880
    %v945 = vpack.c.b16 %v881, %v881
    %v946 = vpack.c.b16 %v882, %v882
    %1011 = vst [vmem:[#allocation2 + $0x28] sm:$0xf] %v883
    %1012 = vst [vmem:[#allocation2 + $0x2c] sm:$0xf] %v884
    %1013 = vst [vmem:[#allocation2 + $0x30] sm:$0xf] %v885
    %1014 = vst [vmem:[#allocation2 + $0x34] sm:$0xf] %v886
    %1015 = vst [vmem:[#allocation2 + $0x38] sm:$0xf] %v887
    %1016 = vst [vmem:[#allocation2 + $0x3c] sm:$0xf] %v888
    %1017 = vst [vmem:[#allocation2 + $0x40] sm:$0xf] %v889
    %1018 = vst [vmem:[#allocation2 + $0x44] sm:$0xf] %v890
    %1019 = vst [vmem:[#allocation2 + $0x48] sm:$0xf] %v891
    %1020 = vst [vmem:[#allocation2 + $0x4c] sm:$0xf] %v892
    %1021 = vst [vmem:[#allocation2 + $0x50] sm:$0xf] %v893
    %1022 = vst [vmem:[#allocation2 + $0x54] sm:$0xf] %v894
    %1023 = vst [vmem:[#allocation2 + $0x58] sm:$0xf] %v895
    %1024 = vst [vmem:[#allocation2 + $0x5c] sm:$0xf] %v896
    %1025 = vst [vmem:[#allocation2 + $0x60] sm:$0xf] %v897
    %1026 = vst [vmem:[#allocation2 + $0x64] sm:$0xf] %v898
    %1027 = vst [vmem:[#allocation2 + $0x68] sm:$0xf] %v899
    %1028 = vst [vmem:[#allocation2 + $0x6c] sm:$0xf] %v900
    %1029 = vst [vmem:[#allocation2 + $0x70] sm:$0xf] %v901
    %1030 = vst [vmem:[#allocation2 + $0x74] sm:$0xf] %v902
    %1031 = vst [vmem:[#allocation2 + $0x78] sm:$0xf] %v903
    %1032 = vst [vmem:[#allocation2 + $0x7c] sm:$0xf] %v904
    %1033 = vst [vmem:[#allocation2 + $0x80] sm:$0xf] %v905
    %1034 = vst [vmem:[#allocation2 + $0x84] sm:$0xf] %v906
    %1035 = vst [vmem:[#allocation2 + $0x88] sm:$0xf] %v907
    %1036 = vst [vmem:[#allocation2 + $0x8c] sm:$0xf] %v908
    %1037 = vst [vmem:[#allocation2 + $0x90] sm:$0xf] %v909
    %1038 = vst [vmem:[#allocation2 + $0x94] sm:$0xf] %v910
    %1039 = vst [vmem:[#allocation2 + $0x98] sm:$0xf] %v911
    %1040 = vst [vmem:[#allocation2 + $0x9c] sm:$0xf] %v912
    %1041 = vst [vmem:[#allocation2 + $0xa0] sm:$0xf] %v913
    %1042 = vst [vmem:[#allocation2 + $0xa4] sm:$0xf] %v914
    %1043 = vst [vmem:[#allocation2 + $0xa8] sm:$0xf] %v915
    %1044 = vst [vmem:[#allocation2 + $0xac] sm:$0xf] %v916
    %1045 = vst [vmem:[#allocation2 + $0xb0] sm:$0xf] %v917
    %1046 = vst [vmem:[#allocation2 + $0xb4] sm:$0xf] %v918
    %1047 = vst [vmem:[#allocation2 + $0xb8] sm:$0xf] %v919
    %1048 = vst [vmem:[#allocation2 + $0xbc] sm:$0xf] %v920
    %1049 = vst [vmem:[#allocation2 + $0xc0] sm:$0xf] %v921
    %1050 = vst [vmem:[#allocation2 + $0xc4] sm:$0xf] %v922
    %1051 = vst [vmem:[#allocation2 + $0xc8] sm:$0xf] %v923
    %1052 = vst [vmem:[#allocation2 + $0xcc] sm:$0xf] %v924
    %1053 = vst [vmem:[#allocation2 + $0xd0] sm:$0xf] %v925
    %1054 = vst [vmem:[#allocation2 + $0xd4] sm:$0xf] %v926
    %1055 = vst [vmem:[#allocation2 + $0xd8] sm:$0xf] %v927
    %1056 = vst [vmem:[#allocation2 + $0xdc] sm:$0xf] %v928
    %1057 = vst [vmem:[#allocation2 + $0xe0] sm:$0xf] %v929
    %1058 = vst [vmem:[#allocation2 + $0xe4] sm:$0xf] %v930
    %1059 = vst [vmem:[#allocation2 + $0xe8] sm:$0xf] %v931
    %1060 = vst [vmem:[#allocation2 + $0xec] sm:$0xf] %v932
    %1061 = vst [vmem:[#allocation2 + $0xf0] sm:$0xf] %v933
    %1062 = vst [vmem:[#allocation2 + $0xf4] sm:$0xf] %v934
    %1063 = vst [vmem:[#allocation2 + $0xf8] sm:$0xf] %v935
    %1064 = vst [vmem:[#allocation2 + $0xfc] sm:$0xf] %v936
    %1065 = vst [vmem:[#allocation2 + $0x100] sm:$0xf] %v937
    %1066 = vst [vmem:[#allocation2 + $0x104] sm:$0xf] %v938
    %1067 = vst [vmem:[#allocation2 + $0x108] sm:$0xf] %v939
    %1068 = vst [vmem:[#allocation2 + $0x10c] sm:$0xf] %v940
    %1069 = vst [vmem:[#allocation2 + $0x110] sm:$0xf] %v941
    %1070 = vst [vmem:[#allocation2 + $0x114] sm:$0xf] %v942
    %1071 = vst [vmem:[#allocation2 + $0x118] sm:$0xf] %v943
    %1072 = vst [vmem:[#allocation2 + $0x11c] sm:$0xf] %v944
    %1073 = vst [vmem:[#allocation2 + $0x120] sm:$0xf] %v945
    %1074 = vst [vmem:[#allocation2 + $0x124] sm:$0xf] %v946
    %v1075 = vld [vmem:[#allocation2] sm:$0xf]
    %v1076 = vld [vmem:[#allocation2 + $0x4] sm:$0xf]
    %v1077 = vld [vmem:[#allocation2 + $0x8] sm:$0xf]
    %v1078 = vld [vmem:[#allocation2 + $0xc] sm:$0xf]
    %v1079 = vld [vmem:[#allocation2 + $0x10] sm:$0xf]
    %v1080 = vld [vmem:[#allocation2 + $0x14] sm:$0xf]
    %v1081 = vld [vmem:[#allocation2 + $0x18] sm:$0xf]
    %v1082 = vld [vmem:[#allocation2 + $0x1c] sm:$0xf]
    %v1083 = vld [vmem:[#allocation2 + $0x20] sm:$0xf]
    %v1084 = vld [vmem:[#allocation2 + $0x24] sm:$0xf]
    %v1085 = vld [vmem:[#allocation2 + $0x28] sm:$0xf]
    %v1086 = vld [vmem:[#allocation2 + $0x2c] sm:$0xf]
    %v1087 = vld [vmem:[#allocation2 + $0x30] sm:$0xf]
    %v1088 = vld [vmem:[#allocation2 + $0x34] sm:$0xf]
    %v1089 = vld [vmem:[#allocation2 + $0x38] sm:$0xf]
    %v1090 = vld [vmem:[#allocation2 + $0x3c] sm:$0xf]
    %v1091 = vld [vmem:[#allocation2 + $0x40] sm:$0xf]
    %v1092 = vld [vmem:[#allocation2 + $0x44] sm:$0xf]
    %v1093 = vld [vmem:[#allocation2 + $0x48] sm:$0xf]
    %v1094 = vld [vmem:[#allocation2 + $0x4c] sm:$0xf]
    %v1095 = vld [vmem:[#allocation2 + $0x50] sm:$0xf]
    %v1096 = vld [vmem:[#allocation2 + $0x54] sm:$0xf]
    %v1097 = vld [vmem:[#allocation2 + $0x58] sm:$0xf]
    %v1098 = vld [vmem:[#allocation2 + $0x5c] sm:$0xf]
    %v1099 = vld [vmem:[#allocation2 + $0x60] sm:$0xf]
    %v1100 = vld [vmem:[#allocation2 + $0x64] sm:$0xf]
    %v1101 = vld [vmem:[#allocation2 + $0x68] sm:$0xf]
    %v1102 = vld [vmem:[#allocation2 + $0x6c] sm:$0xf]
    %v1103 = vld [vmem:[#allocation2 + $0x70] sm:$0xf]
    %v1104 = vld [vmem:[#allocation2 + $0x74] sm:$0xf]
    %v1105 = vld [vmem:[#allocation2 + $0x78] sm:$0xf]
    %v1106 = vld [vmem:[#allocation2 + $0x7c] sm:$0xf]
    %v1107 = vld [vmem:[#allocation2 + $0x80] sm:$0xf]
    %v1108 = vld [vmem:[#allocation2 + $0x84] sm:$0xf]
    %v1109 = vld [vmem:[#allocation2 + $0x88] sm:$0xf]
    %v1110 = vld [vmem:[#allocation2 + $0x8c] sm:$0xf]
    %v1111 = vld [vmem:[#allocation2 + $0x90] sm:$0xf]
    %v1112 = vld [vmem:[#allocation2 + $0x94] sm:$0xf]
    %v1113 = vld [vmem:[#allocation2 + $0x98] sm:$0xf]
    %v1114 = vld [vmem:[#allocation2 + $0x9c] sm:$0xf]
    %v1115 = vld [vmem:[#allocation2 + $0xa0] sm:$0xf]
    %v1116 = vld [vmem:[#allocation2 + $0xa4] sm:$0xf]
    %v1117 = vld [vmem:[#allocation2 + $0xa8] sm:$0xf]
    %v1118 = vld [vmem:[#allocation2 + $0xac] sm:$0xf]
    %v1119 = vld [vmem:[#allocation2 + $0xb0] sm:$0xf]
    %v1120 = vld [vmem:[#allocation2 + $0xb4] sm:$0xf]
    %v1121 = vld [vmem:[#allocation2 + $0xb8] sm:$0xf]
    %v1122 = vld [vmem:[#allocation2 + $0xbc] sm:$0xf]
    %v1123 = vld [vmem:[#allocation2 + $0xc0] sm:$0xf]
    %v1124 = vld [vmem:[#allocation2 + $0xc4] sm:$0xf]
    %v1125 = vld [vmem:[#allocation2 + $0xc8] sm:$0xf]
    %v1126 = vld [vmem:[#allocation2 + $0xcc] sm:$0xf]
    %v1127 = vld [vmem:[#allocation2 + $0xd0] sm:$0xf]
    %v1128 = vld [vmem:[#allocation2 + $0xd4] sm:$0xf]
    %v1129 = vld [vmem:[#allocation2 + $0xd8] sm:$0xf]
    %v1130 = vld [vmem:[#allocation2 + $0xdc] sm:$0xf]
    %v1131 = vld [vmem:[#allocation2 + $0xe0] sm:$0xf]
    %v1132 = vld [vmem:[#allocation2 + $0xe4] sm:$0xf]
    %v1133 = vld [vmem:[#allocation2 + $0xe8] sm:$0xf]
    %v1134 = vld [vmem:[#allocation2 + $0xec] sm:$0xf]
    %v1135 = vld [vmem:[#allocation2 + $0xf0] sm:$0xf]
    %v1136 = vld [vmem:[#allocation2 + $0xf4] sm:$0xf]
    %v1137 = vld [vmem:[#allocation2 + $0xf8] sm:$0xf]
    %v1138 = vld [vmem:[#allocation2 + $0xfc] sm:$0xf]
    %v1139 = vld [vmem:[#allocation2 + $0x100] sm:$0xf]
    %v1140 = vld [vmem:[#allocation2 + $0x104] sm:$0xf]
    %v1141 = vld [vmem:[#allocation2 + $0x108] sm:$0xf]
    %v1142 = vld [vmem:[#allocation2 + $0x10c] sm:$0xf]
    %v1143 = vld [vmem:[#allocation2 + $0x110] sm:$0xf]
    %v1144 = vld [vmem:[#allocation2 + $0x114] sm:$0xf]
    %v1145 = vld [vmem:[#allocation2 + $0x118] sm:$0xf]
    %v1146 = vld [vmem:[#allocation2 + $0x11c] sm:$0xf]
    %v1147 = vld [vmem:[#allocation2 + $0x120] sm:$0xf]
    %v1148 = vld [vmem:[#allocation2 + $0x124] sm:$0xf]
    %v1149 = vld [vmem:[%s2] sm:$0xff]
    %v1150 = vld [vmem:[%s2 + $0x8] sm:$0xff]
    %v1151 = vld [vmem:[%s2 + $0x10] sm:$0xf]
    %v1152 = vld [vmem:[%s2 + $0x14] sm:$0xff]
    %v1153 = vld [vmem:[%s2 + $0x1c] sm:$0xff]
    %v1154 = vld [vmem:[%s2 + $0x24] sm:$0xf]
    %v1155 = vld [vmem:[%s2 + $0x28] sm:$0xff]
    %v1156 = vld [vmem:[%s2 + $0x30] sm:$0xff]
    %v1157 = vld [vmem:[%s2 + $0x38] sm:$0xf]
    %v1158 = vld [vmem:[%s2 + $0x3c] sm:$0xff]
    %v1159 = vld [vmem:[%s2 + $0x44] sm:$0xff]
    %v1160 = vld [vmem:[%s2 + $0x4c] sm:$0xf]
    %v1161 = vld [vmem:[%s2 + $0x50] sm:$0xff]
    %v1162 = vld [vmem:[%s2 + $0x58] sm:$0xff]
    %v1163 = vld [vmem:[%s2 + $0x60] sm:$0xf]
    %v1164 = vld [vmem:[%s2 + $0x64] sm:$0xff]
    %v1165 = vld [vmem:[%s2 + $0x6c] sm:$0xff]
    %v1166 = vld [vmem:[%s2 + $0x74] sm:$0xf]
    %v1167 = vld [vmem:[%s2 + $0x78] sm:$0xff]
    %v1168 = vld [vmem:[%s2 + $0x80] sm:$0xff]
    %v1169 = vld [vmem:[%s2 + $0x88] sm:$0xf]
    %v1170 = vld [vmem:[%s2 + $0x8c] sm:$0xff]
    %v1171 = vld [vmem:[%s2 + $0x94] sm:$0xff]
    %v1172 = vld [vmem:[%s2 + $0x9c] sm:$0xf]
    %v1173 = vld [vmem:[%s2 + $0xa0] sm:$0xff]
    %v1174 = vld [vmem:[%s2 + $0xa8] sm:$0xff]
    %v1175 = vld [vmem:[%s2 + $0xb0] sm:$0xf]
    %v1176 = vld [vmem:[%s2 + $0xb4] sm:$0xff]
    %v1177 = vld [vmem:[%s2 + $0xbc] sm:$0xff]
    %v1178 = vld [vmem:[%s2 + $0xc4] sm:$0xf]
    %v1179 = vld [vmem:[%s2 + $0xc8] sm:$0xff]
    %v1180 = vld [vmem:[%s2 + $0xd0] sm:$0xff]
    %v1181 = vld [vmem:[%s2 + $0xd8] sm:$0xf]
    %v1182 = vld [vmem:[%s2 + $0xdc] sm:$0xff]
    %v1183 = vld [vmem:[%s2 + $0xe4] sm:$0xff]
    %v1184 = vld [vmem:[%s2 + $0xec] sm:$0xf]
    %v1185 = vld [vmem:[%s2 + $0xf0] sm:$0xff]
    %v1186 = vld [vmem:[%s2 + $0xf8] sm:$0xff]
    %v1187 = vld [vmem:[%s2 + $0x100] sm:$0xf]
    %v1188 = vld [vmem:[%s2 + $0x104] sm:$0xff]
    %v1189 = vld [vmem:[%s2 + $0x10c] sm:$0xff]
    %v1190 = vld [vmem:[%s2 + $0x114] sm:$0xf]
    %v1191 = vld [vmem:[%s2 + $0x118] sm:$0xff]
    %v1192 = vld [vmem:[%s2 + $0x120] sm:$0xff]
    %v1193 = vld [vmem:[%s2 + $0x128] sm:$0xf]
    %v1194 = vld [vmem:[%s2 + $0x12c] sm:$0xff]
    %v1195 = vld [vmem:[%s2 + $0x134] sm:$0xff]
    %v1196 = vld [vmem:[%s2 + $0x13c] sm:$0xf]
    %v1197 = vld [vmem:[%s2 + $0x140] sm:$0xff]
    %v1198 = vld [vmem:[%s2 + $0x148] sm:$0xff]
    %v1199 = vld [vmem:[%s2 + $0x150] sm:$0xf]
    %v1200 = vld [vmem:[%s2 + $0x154] sm:$0xff]
    %v1201 = vld [vmem:[%s2 + $0x15c] sm:$0xff]
    %v1202 = vld [vmem:[%s2 + $0x164] sm:$0xf]
    %v1203 = vld [vmem:[%s2 + $0x168] sm:$0xff]
    %v1204 = vld [vmem:[%s2 + $0x170] sm:$0xff]
    %v1205 = vld [vmem:[%s2 + $0x178] sm:$0xf]
    %v1206 = vld [vmem:[%s2 + $0x17c] sm:$0xff]
    %v1207 = vld [vmem:[%s2 + $0x184] sm:$0xff]
    %v1208 = vld [vmem:[%s2 + $0x18c] sm:$0xf]
    %v1209 = vld [vmem:[%s2 + $0x190] sm:$0xff]
    %v1210 = vld [vmem:[%s2 + $0x198] sm:$0xff]
    %v1211 = vld [vmem:[%s2 + $0x1a0] sm:$0xf]
    %v1212 = vld [vmem:[%s2 + $0x1a4] sm:$0xff]
    %v1213 = vld [vmem:[%s2 + $0x1ac] sm:$0xff]
    %v1214 = vld [vmem:[%s2 + $0x1b4] sm:$0xf]
    %v1215 = vld [vmem:[%s2 + $0x1b8] sm:$0xff]
    %v1216 = vld [vmem:[%s2 + $0x1c0] sm:$0xff]
    %v1217 = vld [vmem:[%s2 + $0x1c8] sm:$0xf]
    %v1218 = vld [vmem:[%s2 + $0x1cc] sm:$0xff]
    %v1219 = vld [vmem:[%s2 + $0x1d4] sm:$0xff]
    %v1220 = vld [vmem:[%s2 + $0x1dc] sm:$0xf]
    %v1221 = vld [vmem:[%s2 + $0x1e0] sm:$0xff]
    %v1222 = vld [vmem:[%s2 + $0x1e8] sm:$0xff]
    %v1223 = vld [vmem:[%s2 + $0x1f0] sm:$0xf]
    %v1224 = vld [vmem:[%s2 + $0x1f4] sm:$0xff]
    %v1225 = vld [vmem:[%s2 + $0x1fc] sm:$0xff]
    %v1226 = vld [vmem:[%s2 + $0x204] sm:$0xf]
    %v1227 = vld [vmem:[%s2 + $0x208] sm:$0xff]
    %v1228 = vld [vmem:[%s2 + $0x210] sm:$0xff]
    %v1229 = vld [vmem:[%s2 + $0x218] sm:$0xf]
    %v1230 = vld [vmem:[%s2 + $0x21c] sm:$0xff]
    %v1231 = vld [vmem:[%s2 + $0x224] sm:$0xff]
    %v1232 = vld [vmem:[%s2 + $0x22c] sm:$0xf]
    %v1233 = vld [vmem:[%s2 + $0x230] sm:$0xff]
    %v1234 = vld [vmem:[%s2 + $0x238] sm:$0xff]
    %v1235 = vld [vmem:[%s2 + $0x240] sm:$0xf]
    %v1236 = vld [vmem:[%s2 + $0x244] sm:$0xff]
    %v1237 = vld [vmem:[%s2 + $0x24c] sm:$0xff]
    %v1238 = vld [vmem:[%s2 + $0x254] sm:$0xf]
    %v1239 = vld [vmem:[%s2 + $0x258] sm:$0xff]
    %v1240 = vld [vmem:[%s2 + $0x260] sm:$0xff]
    %v1241 = vld [vmem:[%s2 + $0x268] sm:$0xf]
    %v1242 = vld [vmem:[%s2 + $0x26c] sm:$0xff]
    %v1243 = vld [vmem:[%s2 + $0x274] sm:$0xff]
    %v1244 = vld [vmem:[%s2 + $0x27c] sm:$0xf]
    %v1245 = vld [vmem:[%s2 + $0x280] sm:$0xff]
    %v1246 = vld [vmem:[%s2 + $0x288] sm:$0xff]
    %v1247 = vld [vmem:[%s2 + $0x290] sm:$0xf]
    %v1248 = vld [vmem:[%s2 + $0x294] sm:$0xff]
    %v1249 = vld [vmem:[%s2 + $0x29c] sm:$0xff]
    %v1250 = vld [vmem:[%s2 + $0x2a4] sm:$0xf]
    %v1251 = vld [vmem:[%s2 + $0x2a8] sm:$0xff]
    %v1252 = vld [vmem:[%s2 + $0x2b0] sm:$0xff]
    %v1253 = vld [vmem:[%s2 + $0x2b8] sm:$0xf]
    %v1254 = vld [vmem:[%s2 + $0x2bc] sm:$0xff]
    %v1255 = vld [vmem:[%s2 + $0x2c4] sm:$0xff]
    %v1256 = vld [vmem:[%s2 + $0x2cc] sm:$0xf]
    %v1257 = vld [vmem:[%s2 + $0x2d0] sm:$0xff]
    %v1258 = vld [vmem:[%s2 + $0x2d8] sm:$0xff]
    %v1259 = vld [vmem:[%s2 + $0x2e0] sm:$0xf]
    %v1260 = vld [vmem:[%s2 + $0x2e4] sm:$0xff]
    %v1261 = vld [vmem:[%s2 + $0x2ec] sm:$0xff]
    %v1262 = vld [vmem:[%s2 + $0x2f4] sm:$0xf]
    %v1263 = vld [vmem:[%s2 + $0x2f8] sm:$0xff]
    %v1264 = vld [vmem:[%s2 + $0x300] sm:$0xff]
    %v1265 = vld [vmem:[%s2 + $0x308] sm:$0xf]
    %v1266 = vld [vmem:[%s2 + $0x30c] sm:$0xff]
    %v1267 = vld [vmem:[%s2 + $0x314] sm:$0xff]
    %v1268 = vld [vmem:[%s2 + $0x31c] sm:$0xf]
    %v1269 = vld [vmem:[%s2 + $0x320] sm:$0xff]
    %v1270 = vld [vmem:[%s2 + $0x328] sm:$0xff]
    %v1271 = vld [vmem:[%s2 + $0x330] sm:$0xf]
    %v1272 = vld [vmem:[%s2 + $0x334] sm:$0xff]
    %v1273 = vld [vmem:[%s2 + $0x33c] sm:$0xff]
    %v1274 = vld [vmem:[%s2 + $0x344] sm:$0xf]
    %v1275 = vld [vmem:[%s2 + $0x348] sm:$0xff]
    %v1276 = vld [vmem:[%s2 + $0x350] sm:$0xff]
    %v1277 = vld [vmem:[%s2 + $0x358] sm:$0xf]
    %v1278 = vld [vmem:[%s2 + $0x35c] sm:$0xff]
    %v1279 = vld [vmem:[%s2 + $0x364] sm:$0xff]
    %v1280 = vld [vmem:[%s2 + $0x36c] sm:$0xf]
    %v1281 = vld [vmem:[%s2 + $0x370] sm:$0xff]
    %v1282 = vld [vmem:[%s2 + $0x378] sm:$0xff]
    %v1283 = vld [vmem:[%s2 + $0x380] sm:$0xf]
    %v1284 = vld [vmem:[%s2 + $0x384] sm:$0xff]
    %v1285 = vld [vmem:[%s2 + $0x38c] sm:$0xff]
    %v1286 = vld [vmem:[%s2 + $0x394] sm:$0xf]
    %v1287 = vld [vmem:[%s2 + $0x398] sm:$0xff]
    %v1288 = vld [vmem:[%s2 + $0x3a0] sm:$0xff]
    %v1289 = vld [vmem:[%s2 + $0x3a8] sm:$0xf]
    %v1290 = vld [vmem:[%s2 + $0x3ac] sm:$0xff]
    %v1291 = vld [vmem:[%s2 + $0x3b4] sm:$0xff]
    %v1292 = vld [vmem:[%s2 + $0x3bc] sm:$0xf]
    %v1293 = vld [vmem:[%s2 + $0x3c0] sm:$0xff]
    %v1294 = vld [vmem:[%s2 + $0x3c8] sm:$0xff]
    %v1295 = vld [vmem:[%s2 + $0x3d0] sm:$0xf]
    %v1296 = vld [vmem:[%s2 + $0x3d4] sm:$0xff]
    %v1297 = vld [vmem:[%s2 + $0x3dc] sm:$0xff]
    %v1298 = vld [vmem:[%s2 + $0x3e4] sm:$0xf]
    %v1299 = vld [vmem:[%s2 + $0x3e8] sm:$0xff]
    %v1300 = vld [vmem:[%s2 + $0x3f0] sm:$0xff]
    %v1301 = vld [vmem:[%s2 + $0x3f8] sm:$0xf]
    %v1302 = vld [vmem:[%s2 + $0x3fc] sm:$0xff]
    %v1303 = vld [vmem:[%s2 + $0x404] sm:$0xff]
    %v1304 = vld [vmem:[%s2 + $0x40c] sm:$0xf]
    %v1305 = vld [vmem:[%s2 + $0x410] sm:$0xff]
    %v1306 = vld [vmem:[%s2 + $0x418] sm:$0xff]
    %v1307 = vld [vmem:[%s2 + $0x420] sm:$0xf]
    %v1308 = vld [vmem:[%s2 + $0x424] sm:$0xff]
    %v1309 = vld [vmem:[%s2 + $0x42c] sm:$0xff]
    %v1310 = vld [vmem:[%s2 + $0x434] sm:$0xf]
    %v1311 = vld [vmem:[%s2 + $0x438] sm:$0xff]
    %v1312 = vld [vmem:[%s2 + $0x440] sm:$0xff]
    %v1313 = vld [vmem:[%s2 + $0x448] sm:$0xf]
    %v1314 = vld [vmem:[%s2 + $0x44c] sm:$0xff]
    %v1315 = vld [vmem:[%s2 + $0x454] sm:$0xff]
    %v1316 = vld [vmem:[%s2 + $0x45c] sm:$0xf]
    %v1317 = vld [vmem:[%s2 + $0x460] sm:$0xff]
    %v1318 = vld [vmem:[%s2 + $0x468] sm:$0xff]
    %v1319 = vld [vmem:[%s2 + $0x470] sm:$0xf]
    %v1320 = vld [vmem:[%s2 + $0x474] sm:$0xff]
    %v1321 = vld [vmem:[%s2 + $0x47c] sm:$0xff]
    %v1322 = vld [vmem:[%s2 + $0x484] sm:$0xf]
    %v1323 = vld [vmem:[%s2 + $0x488] sm:$0xff]
    %v1324 = vld [vmem:[%s2 + $0x490] sm:$0xff]
    %v1325 = vld [vmem:[%s2 + $0x498] sm:$0xf]
    %v1326 = vld [vmem:[%s2 + $0x49c] sm:$0xff]
    %v1327 = vld [vmem:[%s2 + $0x4a4] sm:$0xff]
    %v1328 = vld [vmem:[%s2 + $0x4ac] sm:$0xf]
    %v1329 = vld [vmem:[%s2 + $0x4b0] sm:$0xff]
    %v1330 = vld [vmem:[%s2 + $0x4b8] sm:$0xff]
    %v1331 = vld [vmem:[%s2 + $0x4c0] sm:$0xf]
    %v1332 = vld [vmem:[%s2 + $0x4c4] sm:$0xff]
    %v1333 = vld [vmem:[%s2 + $0x4cc] sm:$0xff]
    %v1334 = vld [vmem:[%s2 + $0x4d4] sm:$0xf]
    %v1335 = vld [vmem:[%s2 + $0x4d8] sm:$0xff]
    %v1336 = vld [vmem:[%s2 + $0x4e0] sm:$0xff]
    %v1337 = vld [vmem:[%s2 + $0x4e8] sm:$0xf]
    %v1338 = vld [vmem:[%s2 + $0x4ec] sm:$0xff]
    %v1339 = vld [vmem:[%s2 + $0x4f4] sm:$0xff]
    %v1340 = vld [vmem:[%s2 + $0x4fc] sm:$0xf]
    %v1533 = vunpack.c.l.b16 %v1149
    %v1534 = vunpack.c.h.b16 %v1149
    %v1535 = vunpack.c.l.b16 %v1150
    %v1536 = vunpack.c.h.b16 %v1150
    %v1537 = vunpack.c.l.b16 %v1151
    %v1538 = vunpack.c.l.b16 %v1152
    %v1539 = vunpack.c.h.b16 %v1152
    %v1540 = vunpack.c.l.b16 %v1153
    %v1541 = vunpack.c.h.b16 %v1153
    %v1542 = vunpack.c.l.b16 %v1154
    %v1543 = vunpack.c.l.b16 %v1155
    %v1544 = vunpack.c.h.b16 %v1155
    %v1545 = vunpack.c.l.b16 %v1156
    %v1546 = vunpack.c.h.b16 %v1156
    %v1547 = vunpack.c.l.b16 %v1157
    %v1548 = vunpack.c.l.b16 %v1158
    %v1549 = vunpack.c.h.b16 %v1158
    %v1550 = vunpack.c.l.b16 %v1159
    %v1551 = vunpack.c.h.b16 %v1159
    %v1552 = vunpack.c.l.b16 %v1160
    %v1553 = vunpack.c.l.b16 %v1161
    %v1554 = vunpack.c.h.b16 %v1161
    %v1555 = vunpack.c.l.b16 %v1162
    %v1556 = vunpack.c.h.b16 %v1162
    %v1557 = vunpack.c.l.b16 %v1163
    %v1558 = vunpack.c.l.b16 %v1164
    %v1559 = vunpack.c.h.b16 %v1164
    %v1560 = vunpack.c.l.b16 %v1165
    %v1561 = vunpack.c.h.b16 %v1165
    %v1562 = vunpack.c.l.b16 %v1166
    %v1563 = vunpack.c.l.b16 %v1167
    %v1564 = vunpack.c.h.b16 %v1167
    %v1565 = vunpack.c.l.b16 %v1168
    %v1566 = vunpack.c.h.b16 %v1168
    %v1567 = vunpack.c.l.b16 %v1169
    %v1568 = vunpack.c.l.b16 %v1170
    %v1569 = vunpack.c.h.b16 %v1170
    %v1570 = vunpack.c.l.b16 %v1171
    %v1571 = vunpack.c.h.b16 %v1171
    %v1572 = vunpack.c.l.b16 %v1172
    %v1573 = vunpack.c.l.b16 %v1173
    %v1574 = vunpack.c.h.b16 %v1173
    %v1575 = vunpack.c.l.b16 %v1174
    %v1576 = vunpack.c.h.b16 %v1174
    %v1577 = vunpack.c.l.b16 %v1175
    %v1578 = vunpack.c.l.b16 %v1176
    %v1579 = vunpack.c.h.b16 %v1176
    %v1580 = vunpack.c.l.b16 %v1177
    %v1581 = vunpack.c.h.b16 %v1177
    %v1582 = vunpack.c.l.b16 %v1178
    %v1583 = vunpack.c.l.b16 %v1179
    %v1584 = vunpack.c.h.b16 %v1179
    %v1585 = vunpack.c.l.b16 %v1180
    %v1586 = vunpack.c.h.b16 %v1180
    %v1587 = vunpack.c.l.b16 %v1181
    %v1588 = vunpack.c.l.b16 %v1182
    %v1589 = vunpack.c.h.b16 %v1182
    %v1590 = vunpack.c.l.b16 %v1183
    %v1591 = vunpack.c.h.b16 %v1183
    %v1592 = vunpack.c.l.b16 %v1184
    %v1593 = vunpack.c.l.b16 %v1185
    %v1594 = vunpack.c.h.b16 %v1185
    %v1595 = vunpack.c.l.b16 %v1186
    %v1596 = vunpack.c.h.b16 %v1186
    %v1597 = vunpack.c.l.b16 %v1187
    %v1598 = vunpack.c.l.b16 %v1188
    %v1599 = vunpack.c.h.b16 %v1188
    %v1600 = vunpack.c.l.b16 %v1189
    %v1601 = vunpack.c.h.b16 %v1189
    %v1602 = vunpack.c.l.b16 %v1190
    %v1603 = vunpack.c.l.b16 %v1191
    %v1604 = vunpack.c.h.b16 %v1191
    %v1605 = vunpack.c.l.b16 %v1192
    %v1606 = vunpack.c.h.b16 %v1192
    %v1607 = vunpack.c.l.b16 %v1193
    %v1608 = vunpack.c.l.b16 %v1194
    %v1609 = vunpack.c.h.b16 %v1194
    %v1610 = vunpack.c.l.b16 %v1195
    %v1611 = vunpack.c.h.b16 %v1195
    %v1612 = vunpack.c.l.b16 %v1196
    %v1613 = vunpack.c.l.b16 %v1197
    %v1614 = vunpack.c.h.b16 %v1197
    %v1615 = vunpack.c.l.b16 %v1198
    %v1616 = vunpack.c.h.b16 %v1198
    %v1617 = vunpack.c.l.b16 %v1199
    %v1618 = vunpack.c.l.b16 %v1200
    %v1619 = vunpack.c.h.b16 %v1200
    %v1620 = vunpack.c.l.b16 %v1201
    %v1621 = vunpack.c.h.b16 %v1201
    %v1622 = vunpack.c.l.b16 %v1202
    %v1623 = vunpack.c.l.b16 %v1203
    %v1624 = vunpack.c.h.b16 %v1203
    %v1625 = vunpack.c.l.b16 %v1204
    %v1626 = vunpack.c.h.b16 %v1204
    %v1627 = vunpack.c.l.b16 %v1205
    %v1628 = vunpack.c.l.b16 %v1206
    %v1629 = vunpack.c.h.b16 %v1206
    %v1630 = vunpack.c.l.b16 %v1207
    %v1631 = vunpack.c.h.b16 %v1207
    %v1632 = vunpack.c.l.b16 %v1208
    %v1633 = vunpack.c.l.b16 %v1209
    %v1634 = vunpack.c.h.b16 %v1209
    %v1635 = vunpack.c.l.b16 %v1210
    %v1636 = vunpack.c.h.b16 %v1210
    %v1637 = vunpack.c.l.b16 %v1211
    %v1638 = vunpack.c.l.b16 %v1212
    %v1639 = vunpack.c.h.b16 %v1212
    %v1640 = vunpack.c.l.b16 %v1213
    %v1641 = vunpack.c.h.b16 %v1213
    %v1642 = vunpack.c.l.b16 %v1214
    %v1643 = vunpack.c.l.b16 %v1215
    %v1644 = vunpack.c.h.b16 %v1215
    %v1645 = vunpack.c.l.b16 %v1216
    %v1646 = vunpack.c.h.b16 %v1216
    %v1647 = vunpack.c.l.b16 %v1217
    %v1648 = vunpack.c.l.b16 %v1218
    %v1649 = vunpack.c.h.b16 %v1218
    %v1650 = vunpack.c.l.b16 %v1219
    %v1651 = vunpack.c.h.b16 %v1219
    %v1652 = vunpack.c.l.b16 %v1220
    %v1653 = vunpack.c.l.b16 %v1221
    %v1654 = vunpack.c.h.b16 %v1221
    %v1655 = vunpack.c.l.b16 %v1222
    %v1656 = vunpack.c.h.b16 %v1222
    %v1657 = vunpack.c.l.b16 %v1223
    %v1658 = vunpack.c.l.b16 %v1224
    %v1659 = vunpack.c.h.b16 %v1224
    %v1660 = vunpack.c.l.b16 %v1225
    %v1661 = vunpack.c.h.b16 %v1225
    %v1662 = vunpack.c.l.b16 %v1226
    %v1663 = vunpack.c.l.b16 %v1227
    %v1664 = vunpack.c.h.b16 %v1227
    %v1665 = vunpack.c.l.b16 %v1228
    %v1666 = vunpack.c.h.b16 %v1228
    %v1667 = vunpack.c.l.b16 %v1229
    %v1668 = vunpack.c.l.b16 %v1230
    %v1669 = vunpack.c.h.b16 %v1230
    %v1670 = vunpack.c.l.b16 %v1231
    %v1671 = vunpack.c.h.b16 %v1231
    %v1672 = vunpack.c.l.b16 %v1232
    %v1673 = vunpack.c.l.b16 %v1233
    %v1674 = vunpack.c.h.b16 %v1233
    %v1675 = vunpack.c.l.b16 %v1234
    %v1676 = vunpack.c.h.b16 %v1234
    %v1677 = vunpack.c.l.b16 %v1235
    %v1678 = vunpack.c.l.b16 %v1236
    %v1679 = vunpack.c.h.b16 %v1236
    %v1680 = vunpack.c.l.b16 %v1237
    %v1681 = vunpack.c.h.b16 %v1237
    %v1682 = vunpack.c.l.b16 %v1238
    %v1683 = vunpack.c.l.b16 %v1239
    %v1684 = vunpack.c.h.b16 %v1239
    %v1685 = vunpack.c.l.b16 %v1240
    %v1686 = vunpack.c.h.b16 %v1240
    %v1687 = vunpack.c.l.b16 %v1241
    %v1688 = vunpack.c.l.b16 %v1242
    %v1689 = vunpack.c.h.b16 %v1242
    %v1690 = vunpack.c.l.b16 %v1243
    %v1691 = vunpack.c.h.b16 %v1243
    %v1692 = vunpack.c.l.b16 %v1244
    %v1693 = vunpack.c.l.b16 %v1245
    %v1694 = vunpack.c.h.b16 %v1245
    %v1695 = vunpack.c.l.b16 %v1246
    %v1696 = vunpack.c.h.b16 %v1246
    %v1697 = vunpack.c.l.b16 %v1247
    %v1698 = vunpack.c.l.b16 %v1248
    %v1699 = vunpack.c.h.b16 %v1248
    %v1700 = vunpack.c.l.b16 %v1249
    %v1701 = vunpack.c.h.b16 %v1249
    %v1702 = vunpack.c.l.b16 %v1250
    %v1703 = vunpack.c.l.b16 %v1251
    %v1704 = vunpack.c.h.b16 %v1251
    %v1705 = vunpack.c.l.b16 %v1252
    %v1706 = vunpack.c.h.b16 %v1252
    %v1707 = vunpack.c.l.b16 %v1253
    %v1708 = vunpack.c.l.b16 %v1254
    %v1709 = vunpack.c.h.b16 %v1254
    %v1710 = vunpack.c.l.b16 %v1255
    %v1711 = vunpack.c.h.b16 %v1255
    %v1712 = vunpack.c.l.b16 %v1256
    %v1713 = vunpack.c.l.b16 %v1257
    %v1714 = vunpack.c.h.b16 %v1257
    %v1715 = vunpack.c.l.b16 %v1258
    %v1716 = vunpack.c.h.b16 %v1258
    %v1717 = vunpack.c.l.b16 %v1259
    %v1718 = vunpack.c.l.b16 %v1260
    %v1719 = vunpack.c.h.b16 %v1260
    %v1720 = vunpack.c.l.b16 %v1261
    %v1721 = vunpack.c.h.b16 %v1261
    %v1722 = vunpack.c.l.b16 %v1262
    %v1723 = vunpack.c.l.b16 %v1263
    %v1724 = vunpack.c.h.b16 %v1263
    %v1725 = vunpack.c.l.b16 %v1264
    %v1726 = vunpack.c.h.b16 %v1264
    %v1727 = vunpack.c.l.b16 %v1265
    %v1728 = vunpack.c.l.b16 %v1266
    %v1729 = vunpack.c.h.b16 %v1266
    %v1730 = vunpack.c.l.b16 %v1267
    %v1731 = vunpack.c.h.b16 %v1267
    %v1732 = vunpack.c.l.b16 %v1268
    %v1733 = vunpack.c.l.b16 %v1269
    %v1734 = vunpack.c.h.b16 %v1269
    %v1735 = vunpack.c.l.b16 %v1270
    %v1736 = vunpack.c.h.b16 %v1270
    %v1737 = vunpack.c.l.b16 %v1271
    %v1738 = vunpack.c.l.b16 %v1272
    %v1739 = vunpack.c.h.b16 %v1272
    %v1740 = vunpack.c.l.b16 %v1273
    %v1741 = vunpack.c.h.b16 %v1273
    %v1742 = vunpack.c.l.b16 %v1274
    %v1743 = vunpack.c.l.b16 %v1275
    %v1744 = vunpack.c.h.b16 %v1275
    %v1745 = vunpack.c.l.b16 %v1276
    %v1746 = vunpack.c.h.b16 %v1276
    %v1747 = vunpack.c.l.b16 %v1277
    %v1748 = vunpack.c.l.b16 %v1278
    %v1749 = vunpack.c.h.b16 %v1278
    %v1750 = vunpack.c.l.b16 %v1279
    %v1751 = vunpack.c.h.b16 %v1279
    %v1752 = vunpack.c.l.b16 %v1280
    %v1753 = vunpack.c.l.b16 %v1281
    %v1754 = vunpack.c.h.b16 %v1281
    %v1755 = vunpack.c.l.b16 %v1282
    %v1756 = vunpack.c.h.b16 %v1282
    %v1757 = vunpack.c.l.b16 %v1283
    %v1758 = vunpack.c.l.b16 %v1284
    %v1759 = vunpack.c.h.b16 %v1284
    %v1760 = vunpack.c.l.b16 %v1285
    %v1761 = vunpack.c.h.b16 %v1285
    %v1762 = vunpack.c.l.b16 %v1286
    %v1763 = vunpack.c.l.b16 %v1287
    %v1764 = vunpack.c.h.b16 %v1287
    %v1765 = vunpack.c.l.b16 %v1288
    %v1766 = vunpack.c.h.b16 %v1288
    %v1767 = vunpack.c.l.b16 %v1289
    %v1768 = vunpack.c.l.b16 %v1290
    %v1769 = vunpack.c.h.b16 %v1290
    %v1770 = vunpack.c.l.b16 %v1291
    %v1771 = vunpack.c.h.b16 %v1291
    %v1772 = vunpack.c.l.b16 %v1292
    %v1773 = vunpack.c.l.b16 %v1293
    %v1774 = vunpack.c.h.b16 %v1293
    %v1775 = vunpack.c.l.b16 %v1294
    %v1776 = vunpack.c.h.b16 %v1294
    %v1777 = vunpack.c.l.b16 %v1295
    %v1778 = vunpack.c.l.b16 %v1296
    %v1779 = vunpack.c.h.b16 %v1296
    %v1780 = vunpack.c.l.b16 %v1297
    %v1781 = vunpack.c.h.b16 %v1297
    %v1782 = vunpack.c.l.b16 %v1298
    %v1783 = vunpack.c.l.b16 %v1299
    %v1784 = vunpack.c.h.b16 %v1299
    %v1785 = vunpack.c.l.b16 %v1300
    %v1786 = vunpack.c.h.b16 %v1300
    %v1787 = vunpack.c.l.b16 %v1301
    %v1788 = vunpack.c.l.b16 %v1302
    %v1789 = vunpack.c.h.b16 %v1302
    %v1790 = vunpack.c.l.b16 %v1303
    %v1791 = vunpack.c.h.b16 %v1303
    %v1792 = vunpack.c.l.b16 %v1304
    %v1793 = vunpack.c.l.b16 %v1305
    %v1794 = vunpack.c.h.b16 %v1305
    %v1795 = vunpack.c.l.b16 %v1306
    %v1796 = vunpack.c.h.b16 %v1306
    %v1797 = vunpack.c.l.b16 %v1307
    %v1798 = vunpack.c.l.b16 %v1308
    %v1799 = vunpack.c.h.b16 %v1308
    %v1800 = vunpack.c.l.b16 %v1309
    %v1801 = vunpack.c.h.b16 %v1309
    %v1802 = vunpack.c.l.b16 %v1310
    %v1803 = vunpack.c.l.b16 %v1311
    %v1804 = vunpack.c.h.b16 %v1311
    %v1805 = vunpack.c.l.b16 %v1312
    %v1806 = vunpack.c.h.b16 %v1312
    %v1807 = vunpack.c.l.b16 %v1313
    %v1808 = vunpack.c.l.b16 %v1314
    %v1809 = vunpack.c.h.b16 %v1314
    %v1810 = vunpack.c.l.b16 %v1315
    %v1811 = vunpack.c.h.b16 %v1315
    %v1812 = vunpack.c.l.b16 %v1316
    %v1813 = vunpack.c.l.b16 %v1317
    %v1814 = vunpack.c.h.b16 %v1317
    %v1815 = vunpack.c.l.b16 %v1318
    %v1816 = vunpack.c.h.b16 %v1318
    %v1817 = vunpack.c.l.b16 %v1319
    %v1818 = vunpack.c.l.b16 %v1320
    %v1819 = vunpack.c.h.b16 %v1320
    %v1820 = vunpack.c.l.b16 %v1321
    %v1821 = vunpack.c.h.b16 %v1321
    %v1822 = vunpack.c.l.b16 %v1322
    %v1823 = vunpack.c.l.b16 %v1323
    %v1824 = vunpack.c.h.b16 %v1323
    %v1825 = vunpack.c.l.b16 %v1324
    %v1826 = vunpack.c.h.b16 %v1324
    %v1827 = vunpack.c.l.b16 %v1325
    %v1828 = vunpack.c.l.b16 %v1326
    %v1829 = vunpack.c.h.b16 %v1326
    %v1830 = vunpack.c.l.b16 %v1327
    %v1831 = vunpack.c.h.b16 %v1327
    %v1832 = vunpack.c.l.b16 %v1328
    %v1833 = vunpack.c.l.b16 %v1329
    %v1834 = vunpack.c.h.b16 %v1329
    %v1835 = vunpack.c.l.b16 %v1330
    %v1836 = vunpack.c.h.b16 %v1330
    %v1837 = vunpack.c.l.b16 %v1331
    %v1838 = vunpack.c.l.b16 %v1332
    %v1839 = vunpack.c.h.b16 %v1332
    %v1840 = vunpack.c.l.b16 %v1333
    %v1841 = vunpack.c.h.b16 %v1333
    %v1842 = vunpack.c.l.b16 %v1334
    %v1843 = vunpack.c.l.b16 %v1335
    %v1844 = vunpack.c.h.b16 %v1335
    %v1845 = vunpack.c.l.b16 %v1336
    %v1846 = vunpack.c.h.b16 %v1336
    %v1847 = vunpack.c.l.b16 %v1337
    %v1848 = vunpack.c.l.b16 %v1338
    %v1849 = vunpack.c.h.b16 %v1338
    %v1850 = vunpack.c.l.b16 %v1339
    %v1851 = vunpack.c.h.b16 %v1339
    %v1852 = vunpack.c.l.b16 %v1340
    %v1853 = vpack.c.b16 %v1538, %v1533
    %v1854 = vpack.c.b16 %v1539, %v1534
    %v1855 = vpack.c.b16 %v1540, %v1535
    %v1856 = vpack.c.b16 %v1541, %v1536
    %v1857 = vpack.c.b16 %v1542, %v1537
    %v1858 = vpack.c.b16 %v1548, %v1543
    %v1859 = vpack.c.b16 %v1549, %v1544
    %v1860 = vpack.c.b16 %v1550, %v1545
    %v1861 = vpack.c.b16 %v1551, %v1546
    %v1862 = vpack.c.b16 %v1552, %v1547
    %v1863 = vpack.c.b16 %v1558, %v1553
    %v1864 = vpack.c.b16 %v1559, %v1554
    %v1865 = vpack.c.b16 %v1560, %v1555
    %v1866 = vpack.c.b16 %v1561, %v1556
    %v1867 = vpack.c.b16 %v1562, %v1557
    %v1868 = vpack.c.b16 %v1568, %v1563
    %v1869 = vpack.c.b16 %v1569, %v1564
    %v1870 = vpack.c.b16 %v1570, %v1565
    %v1871 = vpack.c.b16 %v1571, %v1566
    %v1872 = vpack.c.b16 %v1572, %v1567
    %v1873 = vpack.c.b16 %v1578, %v1573
    %v1874 = vpack.c.b16 %v1579, %v1574
    %v1875 = vpack.c.b16 %v1580, %v1575
    %v1876 = vpack.c.b16 %v1581, %v1576
    %v1877 = vpack.c.b16 %v1582, %v1577
    %v1878 = vpack.c.b16 %v1588, %v1583
    %v1879 = vpack.c.b16 %v1589, %v1584
    %v1880 = vpack.c.b16 %v1590, %v1585
    %v1881 = vpack.c.b16 %v1591, %v1586
    %v1882 = vpack.c.b16 %v1592, %v1587
    %v1883 = vpack.c.b16 %v1598, %v1593
    %v1884 = vpack.c.b16 %v1599, %v1594
    %v1885 = vpack.c.b16 %v1600, %v1595
    %v1886 = vpack.c.b16 %v1601, %v1596
    %v1887 = vpack.c.b16 %v1602, %v1597
    %v1888 = vpack.c.b16 %v1608, %v1603
    %v1889 = vpack.c.b16 %v1609, %v1604
    %v1890 = vpack.c.b16 %v1610, %v1605
    %v1891 = vpack.c.b16 %v1611, %v1606
    %v1892 = vpack.c.b16 %v1612, %v1607
    %v1893 = vpack.c.b16 %v1618, %v1613
    %v1894 = vpack.c.b16 %v1619, %v1614
    %v1895 = vpack.c.b16 %v1620, %v1615
    %v1896 = vpack.c.b16 %v1621, %v1616
    %v1897 = vpack.c.b16 %v1622, %v1617
    %v1898 = vpack.c.b16 %v1628, %v1623
    %v1899 = vpack.c.b16 %v1629, %v1624
    %v1900 = vpack.c.b16 %v1630, %v1625
    %v1901 = vpack.c.b16 %v1631, %v1626
    %v1902 = vpack.c.b16 %v1632, %v1627
    %v1903 = vpack.c.b16 %v1638, %v1633
    %v1904 = vpack.c.b16 %v1639, %v1634
    %v1905 = vpack.c.b16 %v1640, %v1635
    %v1906 = vpack.c.b16 %v1641, %v1636
    %v1907 = vpack.c.b16 %v1642, %v1637
    %v1908 = vpack.c.b16 %v1648, %v1643
    %v1909 = vpack.c.b16 %v1649, %v1644
    %v1910 = vpack.c.b16 %v1650, %v1645
    %v1911 = vpack.c.b16 %v1651, %v1646
    %v1912 = vpack.c.b16 %v1652, %v1647
    %v1913 = vpack.c.b16 %v1658, %v1653
    %v1914 = vpack.c.b16 %v1659, %v1654
    %v1915 = vpack.c.b16 %v1660, %v1655
    %v1916 = vpack.c.b16 %v1661, %v1656
    %v1917 = vpack.c.b16 %v1662, %v1657
    %v1918 = vpack.c.b16 %v1668, %v1663
    %v1919 = vpack.c.b16 %v1669, %v1664
    %v1920 = vpack.c.b16 %v1670, %v1665
    %v1921 = vpack.c.b16 %v1671, %v1666
    %v1922 = vpack.c.b16 %v1672, %v1667
    %v1923 = vpack.c.b16 %v1678, %v1673
    %v1924 = vpack.c.b16 %v1679, %v1674
    %v1925 = vpack.c.b16 %v1680, %v1675
    %v1926 = vpack.c.b16 %v1681, %v1676
    %v1927 = vpack.c.b16 %v1682, %v1677
    %v1928 = vpack.c.b16 %v1688, %v1683
    %v1929 = vpack.c.b16 %v1689, %v1684
    %v1930 = vpack.c.b16 %v1690, %v1685
    %v1931 = vpack.c.b16 %v1691, %v1686
    %v1932 = vpack.c.b16 %v1692, %v1687
    %v1933 = vpack.c.b16 %v1698, %v1693
    %v1934 = vpack.c.b16 %v1699, %v1694
    %v1935 = vpack.c.b16 %v1700, %v1695
    %v1936 = vpack.c.b16 %v1701, %v1696
    %v1937 = vpack.c.b16 %v1702, %v1697
    %v1938 = vpack.c.b16 %v1708, %v1703
    %v1939 = vpack.c.b16 %v1709, %v1704
    %v1940 = vpack.c.b16 %v1710, %v1705
    %v1941 = vpack.c.b16 %v1711, %v1706
    %v1942 = vpack.c.b16 %v1712, %v1707
    %v1943 = vpack.c.b16 %v1718, %v1713
    %v1944 = vpack.c.b16 %v1719, %v1714
    %v1945 = vpack.c.b16 %v1720, %v1715
    %v1946 = vpack.c.b16 %v1721, %v1716
    %v1947 = vpack.c.b16 %v1722, %v1717
    %v1948 = vpack.c.b16 %v1728, %v1723
    %v1949 = vpack.c.b16 %v1729, %v1724
    %v1950 = vpack.c.b16 %v1730, %v1725
    %v1951 = vpack.c.b16 %v1731, %v1726
    %v1952 = vpack.c.b16 %v1732, %v1727
    %v1953 = vpack.c.b16 %v1738, %v1733
    %v1954 = vpack.c.b16 %v1739, %v1734
    %v1955 = vpack.c.b16 %v1740, %v1735
    %v1956 = vpack.c.b16 %v1741, %v1736
    %v1957 = vpack.c.b16 %v1742, %v1737
    %v1958 = vpack.c.b16 %v1748, %v1743
    %v1959 = vpack.c.b16 %v1749, %v1744
    %v1960 = vpack.c.b16 %v1750, %v1745
    %v1961 = vpack.c.b16 %v1751, %v1746
    %v1962 = vpack.c.b16 %v1752, %v1747
    %v1963 = vpack.c.b16 %v1758, %v1753
    %v1964 = vpack.c.b16 %v1759, %v1754
    %v1965 = vpack.c.b16 %v1760, %v1755
    %v1966 = vpack.c.b16 %v1761, %v1756
    %v1967 = vpack.c.b16 %v1762, %v1757
    %v1968 = vpack.c.b16 %v1768, %v1763
    %v1969 = vpack.c.b16 %v1769, %v1764
    %v1970 = vpack.c.b16 %v1770, %v1765
    %v1971 = vpack.c.b16 %v1771, %v1766
    %v1972 = vpack.c.b16 %v1772, %v1767
    %v1973 = vpack.c.b16 %v1778, %v1773
    %v1974 = vpack.c.b16 %v1779, %v1774
    %v1975 = vpack.c.b16 %v1780, %v1775
    %v1976 = vpack.c.b16 %v1781, %v1776
    %v1977 = vpack.c.b16 %v1782, %v1777
    %v1978 = vpack.c.b16 %v1788, %v1783
    %v1979 = vpack.c.b16 %v1789, %v1784
    %v1980 = vpack.c.b16 %v1790, %v1785
    %v1981 = vpack.c.b16 %v1791, %v1786
    %v1982 = vpack.c.b16 %v1792, %v1787
    %v1983 = vpack.c.b16 %v1798, %v1793
    %v1984 = vpack.c.b16 %v1799, %v1794
    %v1985 = vpack.c.b16 %v1800, %v1795
    %v1986 = vpack.c.b16 %v1801, %v1796
    %v1987 = vpack.c.b16 %v1802, %v1797
    %v1988 = vpack.c.b16 %v1808, %v1803
    %v1989 = vpack.c.b16 %v1809, %v1804
    %v1990 = vpack.c.b16 %v1810, %v1805
    %v1991 = vpack.c.b16 %v1811, %v1806
    %v1992 = vpack.c.b16 %v1812, %v1807
    %v1993 = vpack.c.b16 %v1818, %v1813
    %v1994 = vpack.c.b16 %v1819, %v1814
    %v1995 = vpack.c.b16 %v1820, %v1815
    %v1996 = vpack.c.b16 %v1821, %v1816
    %v1997 = vpack.c.b16 %v1822, %v1817
    %v1998 = vpack.c.b16 %v1828, %v1823
    %v1999 = vpack.c.b16 %v1829, %v1824
    %v2000 = vpack.c.b16 %v1830, %v1825
    %v2001 = vpack.c.b16 %v1831, %v1826
    %v2002 = vpack.c.b16 %v1832, %v1827
    %v2003 = vpack.c.b16 %v1838, %v1833
    %v2004 = vpack.c.b16 %v1839, %v1834
    %v2005 = vpack.c.b16 %v1840, %v1835
    %v2006 = vpack.c.b16 %v1841, %v1836
    %v2007 = vpack.c.b16 %v1842, %v1837
    %v2008 = vpack.c.b16 %v1848, %v1843
    %v2009 = vpack.c.b16 %v1849, %v1844
    %v2010 = vpack.c.b16 %v1850, %v1845
    %v2011 = vpack.c.b16 %v1851, %v1846
    %v2012 = vpack.c.b16 %v1852, %v1847
    %v2215 = vunpack.c.l.b16 %v1075
    %v2216 = vunpack.c.l.b16 %v1076
    %v2217 = vunpack.c.l.b16 %v1077
    %v2218 = vunpack.c.l.b16 %v1078
    %v2219 = vunpack.c.l.b16 %v1079
    %v2220 = vunpack.c.l.b16 %v1080
    %v2221 = vunpack.c.l.b16 %v1081
    %v2222 = vunpack.c.l.b16 %v1082
    %v2223 = vunpack.c.l.b16 %v1083
    %v2224 = vunpack.c.l.b16 %v1084
    %v2225 = vunpack.c.l.b16 %v1085
    %v2226 = vunpack.c.l.b16 %v1086
    %v2227 = vunpack.c.l.b16 %v1087
    %v2228 = vunpack.c.l.b16 %v1088
    %v2229 = vunpack.c.l.b16 %v1089
    %v2230 = vunpack.c.l.b16 %v1090
    %v2231 = vunpack.c.l.b16 %v1091
    %v2232 = vunpack.c.l.b16 %v1092
    %v2233 = vunpack.c.l.b16 %v1093
    %v2234 = vunpack.c.l.b16 %v1094
    %v2235 = vunpack.c.l.b16 %v1095
    %v2236 = vunpack.c.l.b16 %v1096
    %v2237 = vunpack.c.l.b16 %v1097
    %v2238 = vunpack.c.l.b16 %v1098
    %v2239 = vunpack.c.l.b16 %v1099
    %v2240 = vunpack.c.l.b16 %v1100
    %v2241 = vunpack.c.l.b16 %v1101
    %v2242 = vunpack.c.l.b16 %v1102
    %v2243 = vunpack.c.l.b16 %v1103
    %v2244 = vunpack.c.l.b16 %v1104
    %v2245 = vunpack.c.l.b16 %v1105
    %v2246 = vunpack.c.l.b16 %v1106
    %v2247 = vunpack.c.l.b16 %v1107
    %v2248 = vunpack.c.l.b16 %v1108
    %v2249 = vunpack.c.l.b16 %v1109
    %v2250 = vunpack.c.l.b16 %v1110
    %v2251 = vunpack.c.l.b16 %v1111
    %v2252 = vunpack.c.l.b16 %v1112
    %v2253 = vunpack.c.l.b16 %v1113
    %v2254 = vunpack.c.l.b16 %v1114
    %v2255 = vunpack.c.l.b16 %v1115
    %v2256 = vunpack.c.l.b16 %v1116
    %v2257 = vunpack.c.l.b16 %v1117
    %v2258 = vunpack.c.l.b16 %v1118
    %v2259 = vunpack.c.l.b16 %v1119
    %v2260 = vunpack.c.l.b16 %v1120
    %v2261 = vunpack.c.l.b16 %v1121
    %v2262 = vunpack.c.l.b16 %v1122
    %v2263 = vunpack.c.l.b16 %v1123
    %v2264 = vunpack.c.l.b16 %v1124
    %v2265 = vunpack.c.l.b16 %v1125
    %v2266 = vunpack.c.l.b16 %v1126
    %v2267 = vunpack.c.l.b16 %v1127
    %v2268 = vunpack.c.l.b16 %v1128
    %v2269 = vunpack.c.l.b16 %v1129
    %v2270 = vunpack.c.l.b16 %v1130
    %v2271 = vunpack.c.l.b16 %v1131
    %v2272 = vunpack.c.l.b16 %v1132
    %v2273 = vunpack.c.l.b16 %v1133
    %v2274 = vunpack.c.l.b16 %v1134
    %v2275 = vunpack.c.l.b16 %v1135
    %v2276 = vunpack.c.l.b16 %v1136
    %v2277 = vunpack.c.l.b16 %v1137
    %v2278 = vunpack.c.l.b16 %v1138
    %v2279 = vunpack.c.l.b16 %v1139
    %v2280 = vunpack.c.l.b16 %v1140
    %v2281 = vunpack.c.l.b16 %v1141
    %v2282 = vunpack.c.l.b16 %v1142
    %v2283 = vunpack.c.l.b16 %v1143
    %v2284 = vunpack.c.l.b16 %v1144
    %v2285 = vunpack.c.l.b16 %v1145
    %v2286 = vunpack.c.l.b16 %v1146
    %v2287 = vunpack.c.l.b16 %v1147
    %v2288 = vunpack.c.l.b16 %v1148
    %v2289 = vpack.c.b16 %v2216, %v2215
    %v2290 = vpack.c.b16 %v2218, %v2217
    %v2291 = vpack.c.b16 %v2220, %v2219
    %v2292 = vpack.c.b16 %v2222, %v2221
    %v2293 = vpack.c.b16 %v2224, %v2223
    %v2294 = vpack.c.b16 %v2226, %v2225
    %v2295 = vpack.c.b16 %v2228, %v2227
    %v2296 = vpack.c.b16 %v2230, %v2229
    %v2297 = vpack.c.b16 %v2232, %v2231
    %v2298 = vpack.c.b16 %v2234, %v2233
    %v2299 = vpack.c.b16 %v2236, %v2235
    %v2300 = vpack.c.b16 %v2238, %v2237
    %v2301 = vpack.c.b16 %v2240, %v2239
    %v2302 = vpack.c.b16 %v2242, %v2241
    %v2303 = vpack.c.b16 %v2244, %v2243
    %v2304 = vpack.c.b16 %v2246, %v2245
    %v2305 = vpack.c.b16 %v2248, %v2247
    %v2306 = vpack.c.b16 %v2250, %v2249
    %v2307 = vpack.c.b16 %v2252, %v2251
    %v2308 = vpack.c.b16 %v2254, %v2253
    %v2309 = vpack.c.b16 %v2256, %v2255
    %v2310 = vpack.c.b16 %v2258, %v2257
    %v2311 = vpack.c.b16 %v2260, %v2259
    %v2312 = vpack.c.b16 %v2262, %v2261
    %v2313 = vpack.c.b16 %v2264, %v2263
    %v2314 = vpack.c.b16 %v2266, %v2265
    %v2315 = vpack.c.b16 %v2268, %v2267
    %v2316 = vpack.c.b16 %v2270, %v2269
    %v2317 = vpack.c.b16 %v2272, %v2271
    %v2318 = vpack.c.b16 %v2274, %v2273
    %v2319 = vpack.c.b16 %v2276, %v2275
    %v2320 = vpack.c.b16 %v2278, %v2277
    %v2321 = vpack.c.b16 %v2280, %v2279
    %v2322 = vpack.c.b16 %v2282, %v2281
    %v2323 = vpack.c.b16 %v2284, %v2283
    %v2324 = vpack.c.b16 %v2286, %v2285
    %v2325 = vpack.c.b16 %v2288, %v2287
    %v2364 = vsel %vm305, %v1857, 0
    %v2367 = vsel %vm305, %v1862, 0
    %v2370 = vsel %vm305, %v1867, 0
    %v2373 = vsel %vm305, %v1872, 0
    %v2376 = vsel %vm305, %v1877, 0
    %v2379 = vsel %vm305, %v1882, 0
    %v2382 = vsel %vm305, %v1887, 0
    %v2385 = vsel %vm305, %v1892, 0
    %v2388 = vsel %vm305, %v1897, 0
    %v2391 = vsel %vm305, %v1902, 0
    %v2394 = vsel %vm305, %v1907, 0
    %v2397 = vsel %vm305, %v1912, 0
    %v2400 = vsel %vm305, %v1917, 0
    %v2403 = vsel %vm305, %v1922, 0
    %v2406 = vsel %vm305, %v1927, 0
    %v2409 = vsel %vm305, %v1932, 0
    %v2412 = vsel %vm305, %v1937, 0
    %v2415 = vsel %vm305, %v1942, 0
    %v2418 = vsel %vm305, %v1947, 0
    %v2421 = vsel %vm305, %v1952, 0
    %v2424 = vsel %vm305, %v1957, 0
    %v2427 = vsel %vm305, %v1962, 0
    %v2430 = vsel %vm305, %v1967, 0
    %v2433 = vsel %vm305, %v1972, 0
    %v2436 = vsel %vm305, %v1977, 0
    %v2439 = vsel %vm305, %v1982, 0
    %v2442 = vsel %vm305, %v1987, 0
    %v2445 = vsel %vm305, %v1992, 0
    %v2448 = vsel %vm305, %v1997, 0
    %v2451 = vsel %vm305, %v2002, 0
    %v2454 = vsel %vm305, %v2007, 0
    %v2457 = vsel %vm305, %v2012, 0
    %2459 = vmatprep.subr.bf16.mxu0 0
    %2460 = vmatpush1.bf16.msra.mxu0 %v2296
    %2461 = vmatprep.subr.bf16.mxu0 0
    %2462 = vmatpush1.bf16.msra.mxu0 %v2295
    %2463 = vmatprep.subr.bf16.mxu0 0
    %2464 = vmatpush1.bf16.msra.mxu0 %v2294
    %2465 = vmatprep.subr.bf16.mxu0 0
    %2466 = vmatpush1.bf16.msra.mxu0 %v2293
    %2467 = vmatprep.subr.bf16.mxu0 0
    %2468 = vmatpush1.bf16.msra.mxu0 %v2292
    %2469 = vmatprep.subr.bf16.mxu0 0
    %2470 = vmatpush1.bf16.msra.mxu0 %v2291
    %2471 = vmatprep.subr.bf16.mxu0 0
    %2472 = vmatpush1.bf16.msra.mxu0 %v2290
    %2473 = vmatprep.subr.bf16.mxu0 0
    %2474 = vmatpush1.bf16.msra.mxu0 %v2289
    %2475 = vmatprep.subr.bf16.mxu0 0
    %2476 = vmatpush2.bf16.msra.mxu0 %v2304
    %2477 = vmatprep.subr.bf16.mxu0 0
    %2478 = vmatpush2.bf16.msra.mxu0 %v2303
    %2479 = vmatprep.subr.bf16.mxu0 0
    %2480 = vmatpush2.bf16.msra.mxu0 %v2302
    %2481 = vmatprep.subr.bf16.mxu0 0
    %2482 = vmatpush2.bf16.msra.mxu0 %v2301
    %2483 = vmatprep.subr.bf16.mxu0 0
    %2484 = vmatpush2.bf16.msra.mxu0 %v2300
    %2485 = vmatprep.subr.bf16.mxu0 0
    %2486 = vmatpush2.bf16.msra.mxu0 %v2299
    %2487 = vmatprep.subr.bf16.mxu0 0
    %2488 = vmatpush2.bf16.msra.mxu0 %v2298
    %2489 = vmatprep.subr.bf16.mxu0 0
    %2490 = vmatpush2.bf16.msra.mxu0 %v2297
    %2491 = vmatprep.mubr.bf16.mxu0 %v1854
    %2492 = vmatmul.mubr.bf16.gmra.mxu0 %v1853
    %v2493 = vpop.f32.mrf.mxu0
    %v2494 = vadd.f32 0.0, %v2493
    %v2495 = vpop.f32.mrf.mxu0
    %v2496 = vpop.f32.mrf.mxu0
    %v2497 = vadd.f32 0.0, %v2496
    %v2498 = vpop.f32.mrf.mxu0
    %2499 = vmatprep.mubr.bf16.mxu0 %v1859
    %2500 = vmatmul.mubr.bf16.gmra.mxu0 %v1858
    %v2501 = vpop.f32.mrf.mxu0
    %v2502 = vadd.f32 0.0, %v2501
    %v2503 = vpop.f32.mrf.mxu0
    %v2504 = vpop.f32.mrf.mxu0
    %v2505 = vadd.f32 0.0, %v2504
    %v2506 = vpop.f32.mrf.mxu0
    %2507 = vmatprep.mubr.bf16.mxu0 %v1864
    %2508 = vmatmul.mubr.bf16.gmra.mxu0 %v1863
    %v2509 = vpop.f32.mrf.mxu0
    %v2510 = vadd.f32 0.0, %v2509
    %v2511 = vpop.f32.mrf.mxu0
    %v2512 = vpop.f32.mrf.mxu0
    %v2513 = vadd.f32 0.0, %v2512
    %v2514 = vpop.f32.mrf.mxu0
    %2515 = vmatprep.mubr.bf16.mxu0 %v1869
    %2516 = vmatmul.mubr.bf16.gmra.mxu0 %v1868
    %v2517 = vpop.f32.mrf.mxu0
    %v2518 = vadd.f32 0.0, %v2517
    %v2519 = vpop.f32.mrf.mxu0
    %v2520 = vpop.f32.mrf.mxu0
    %v2521 = vadd.f32 0.0, %v2520
    %v2522 = vpop.f32.mrf.mxu0
    %2523 = vmatprep.mubr.bf16.mxu0 %v1874
    %2524 = vmatmul.mubr.bf16.gmra.mxu0 %v1873
    %v2525 = vpop.f32.mrf.mxu0
    %v2526 = vadd.f32 0.0, %v2525
    %v2527 = vpop.f32.mrf.mxu0
    %v2528 = vpop.f32.mrf.mxu0
    %v2529 = vadd.f32 0.0, %v2528
    %v2530 = vpop.f32.mrf.mxu0
    %2531 = vmatprep.mubr.bf16.mxu0 %v1879
    %2532 = vmatmul.mubr.bf16.gmra.mxu0 %v1878
    %v2533 = vpop.f32.mrf.mxu0
    %v2534 = vadd.f32 0.0, %v2533
    %v2535 = vpop.f32.mrf.mxu0
    %v2536 = vpop.f32.mrf.mxu0
    %v2537 = vadd.f32 0.0, %v2536
    %v2538 = vpop.f32.mrf.mxu0
    %2539 = vmatprep.mubr.bf16.mxu0 %v1884
    %2540 = vmatmul.mubr.bf16.gmra.mxu0 %v1883
    %v2541 = vpop.f32.mrf.mxu0
    %v2542 = vadd.f32 0.0, %v2541
    %v2543 = vpop.f32.mrf.mxu0
    %v2544 = vpop.f32.mrf.mxu0
    %v2545 = vadd.f32 0.0, %v2544
    %v2546 = vpop.f32.mrf.mxu0
    %2547 = vmatprep.mubr.bf16.mxu0 %v1889
    %2548 = vmatmul.mubr.bf16.gmra.mxu0 %v1888
    %v2549 = vpop.f32.mrf.mxu0
    %v2550 = vadd.f32 0.0, %v2549
    %v2551 = vpop.f32.mrf.mxu0
    %v2552 = vpop.f32.mrf.mxu0
    %v2553 = vadd.f32 0.0, %v2552
    %v2554 = vpop.f32.mrf.mxu0
    %2555 = vmatprep.mubr.bf16.mxu0 %v1894
    %2556 = vmatmul.mubr.bf16.gmra.mxu0 %v1893
    %v2557 = vpop.f32.mrf.mxu0
    %v2558 = vadd.f32 0.0, %v2557
    %v2559 = vpop.f32.mrf.mxu0
    %v2560 = vpop.f32.mrf.mxu0
    %v2561 = vadd.f32 0.0, %v2560
    %v2562 = vpop.f32.mrf.mxu0
    %2563 = vmatprep.mubr.bf16.mxu0 %v1899
    %2564 = vmatmul.mubr.bf16.gmra.mxu0 %v1898
    %v2565 = vpop.f32.mrf.mxu0
    %v2566 = vadd.f32 0.0, %v2565
    %v2567 = vpop.f32.mrf.mxu0
    %v2568 = vpop.f32.mrf.mxu0
    %v2569 = vadd.f32 0.0, %v2568
    %v2570 = vpop.f32.mrf.mxu0
    %2571 = vmatprep.mubr.bf16.mxu0 %v1904
    %2572 = vmatmul.mubr.bf16.gmra.mxu0 %v1903
    %v2573 = vpop.f32.mrf.mxu0
    %v2574 = vadd.f32 0.0, %v2573
    %v2575 = vpop.f32.mrf.mxu0
    %v2576 = vpop.f32.mrf.mxu0
    %v2577 = vadd.f32 0.0, %v2576
    %v2578 = vpop.f32.mrf.mxu0
    %2579 = vmatprep.mubr.bf16.mxu0 %v1909
    %2580 = vmatmul.mubr.bf16.gmra.mxu0 %v1908
    %v2581 = vpop.f32.mrf.mxu0
    %v2582 = vadd.f32 0.0, %v2581
    %v2583 = vpop.f32.mrf.mxu0
    %v2584 = vpop.f32.mrf.mxu0
    %v2585 = vadd.f32 0.0, %v2584
    %v2586 = vpop.f32.mrf.mxu0
    %2587 = vmatprep.mubr.bf16.mxu0 %v1914
    %2588 = vmatmul.mubr.bf16.gmra.mxu0 %v1913
    %v2589 = vpop.f32.mrf.mxu0
    %v2590 = vadd.f32 0.0, %v2589
    %v2591 = vpop.f32.mrf.mxu0
    %v2592 = vpop.f32.mrf.mxu0
    %v2593 = vadd.f32 0.0, %v2592
    %v2594 = vpop.f32.mrf.mxu0
    %2595 = vmatprep.mubr.bf16.mxu0 %v1919
    %2596 = vmatmul.mubr.bf16.gmra.mxu0 %v1918
    %v2597 = vpop.f32.mrf.mxu0
    %v2598 = vadd.f32 0.0, %v2597
    %v2599 = vpop.f32.mrf.mxu0
    %v2600 = vpop.f32.mrf.mxu0
    %v2601 = vadd.f32 0.0, %v2600
    %v2602 = vpop.f32.mrf.mxu0
    %2603 = vmatprep.mubr.bf16.mxu0 %v1924
    %2604 = vmatmul.mubr.bf16.gmra.mxu0 %v1923
    %v2605 = vpop.f32.mrf.mxu0
    %v2606 = vadd.f32 0.0, %v2605
    %v2607 = vpop.f32.mrf.mxu0
    %v2608 = vpop.f32.mrf.mxu0
    %v2609 = vadd.f32 0.0, %v2608
    %v2610 = vpop.f32.mrf.mxu0
    %2611 = vmatprep.mubr.bf16.mxu0 %v1929
    %2612 = vmatmul.mubr.bf16.gmra.mxu0 %v1928
    %v2613 = vpop.f32.mrf.mxu0
    %v2614 = vadd.f32 0.0, %v2613
    %v2615 = vpop.f32.mrf.mxu0
    %v2616 = vpop.f32.mrf.mxu0
    %v2617 = vadd.f32 0.0, %v2616
    %v2618 = vpop.f32.mrf.mxu0
    %2619 = vmatprep.mubr.bf16.mxu0 %v1934
    %2620 = vmatmul.mubr.bf16.gmra.mxu0 %v1933
    %v2621 = vpop.f32.mrf.mxu0
    %v2622 = vadd.f32 0.0, %v2621
    %v2623 = vpop.f32.mrf.mxu0
    %v2624 = vpop.f32.mrf.mxu0
    %v2625 = vadd.f32 0.0, %v2624
    %v2626 = vpop.f32.mrf.mxu0
    %2627 = vmatprep.mubr.bf16.mxu0 %v1939
    %2628 = vmatmul.mubr.bf16.gmra.mxu0 %v1938
    %v2629 = vpop.f32.mrf.mxu0
    %v2630 = vadd.f32 0.0, %v2629
    %v2631 = vpop.f32.mrf.mxu0
    %v2632 = vpop.f32.mrf.mxu0
    %v2633 = vadd.f32 0.0, %v2632
    %v2634 = vpop.f32.mrf.mxu0
    %2635 = vmatprep.mubr.bf16.mxu0 %v1944
    %2636 = vmatmul.mubr.bf16.gmra.mxu0 %v1943
    %v2637 = vpop.f32.mrf.mxu0
    %v2638 = vadd.f32 0.0, %v2637
    %v2639 = vpop.f32.mrf.mxu0
    %v2640 = vpop.f32.mrf.mxu0
    %v2641 = vadd.f32 0.0, %v2640
    %v2642 = vpop.f32.mrf.mxu0
    %2643 = vmatprep.mubr.bf16.mxu0 %v1949
    %2644 = vmatmul.mubr.bf16.gmra.mxu0 %v1948
    %v2645 = vpop.f32.mrf.mxu0
    %v2646 = vadd.f32 0.0, %v2645
    %v2647 = vpop.f32.mrf.mxu0
    %v2648 = vpop.f32.mrf.mxu0
    %v2649 = vadd.f32 0.0, %v2648
    %v2650 = vpop.f32.mrf.mxu0
    %2651 = vmatprep.mubr.bf16.mxu0 %v1954
    %2652 = vmatmul.mubr.bf16.gmra.mxu0 %v1953
    %v2653 = vpop.f32.mrf.mxu0
    %v2654 = vadd.f32 0.0, %v2653
    %v2655 = vpop.f32.mrf.mxu0
    %v2656 = vpop.f32.mrf.mxu0
    %v2657 = vadd.f32 0.0, %v2656
    %v2658 = vpop.f32.mrf.mxu0
    %2659 = vmatprep.mubr.bf16.mxu0 %v1959
    %2660 = vmatmul.mubr.bf16.gmra.mxu0 %v1958
    %v2661 = vpop.f32.mrf.mxu0
    %v2662 = vadd.f32 0.0, %v2661
    %v2663 = vpop.f32.mrf.mxu0
    %v2664 = vpop.f32.mrf.mxu0
    %v2665 = vadd.f32 0.0, %v2664
    %v2666 = vpop.f32.mrf.mxu0
    %2667 = vmatprep.mubr.bf16.mxu0 %v1964
    %2668 = vmatmul.mubr.bf16.gmra.mxu0 %v1963
    %v2669 = vpop.f32.mrf.mxu0
    %v2670 = vadd.f32 0.0, %v2669
    %v2671 = vpop.f32.mrf.mxu0
    %v2672 = vpop.f32.mrf.mxu0
    %v2673 = vadd.f32 0.0, %v2672
    %v2674 = vpop.f32.mrf.mxu0
    %2675 = vmatprep.mubr.bf16.mxu0 %v1969
    %2676 = vmatmul.mubr.bf16.gmra.mxu0 %v1968
    %v2677 = vpop.f32.mrf.mxu0
    %v2678 = vadd.f32 0.0, %v2677
    %v2679 = vpop.f32.mrf.mxu0
    %v2680 = vpop.f32.mrf.mxu0
    %v2681 = vadd.f32 0.0, %v2680
    %v2682 = vpop.f32.mrf.mxu0
    %2683 = vmatprep.mubr.bf16.mxu0 %v1974
    %2684 = vmatmul.mubr.bf16.gmra.mxu0 %v1973
    %v2685 = vpop.f32.mrf.mxu0
    %v2686 = vadd.f32 0.0, %v2685
    %v2687 = vpop.f32.mrf.mxu0
    %v2688 = vpop.f32.mrf.mxu0
    %v2689 = vadd.f32 0.0, %v2688
    %v2690 = vpop.f32.mrf.mxu0
    %2691 = vmatprep.mubr.bf16.mxu0 %v1979
    %2692 = vmatmul.mubr.bf16.gmra.mxu0 %v1978
    %v2693 = vpop.f32.mrf.mxu0
    %v2694 = vadd.f32 0.0, %v2693
    %v2695 = vpop.f32.mrf.mxu0
    %v2696 = vpop.f32.mrf.mxu0
    %v2697 = vadd.f32 0.0, %v2696
    %v2698 = vpop.f32.mrf.mxu0
    %2699 = vmatprep.mubr.bf16.mxu0 %v1984
    %2700 = vmatmul.mubr.bf16.gmra.mxu0 %v1983
    %v2701 = vpop.f32.mrf.mxu0
    %v2702 = vadd.f32 0.0, %v2701
    %v2703 = vpop.f32.mrf.mxu0
    %v2704 = vpop.f32.mrf.mxu0
    %v2705 = vadd.f32 0.0, %v2704
    %v2706 = vpop.f32.mrf.mxu0
    %2707 = vmatprep.mubr.bf16.mxu0 %v1989
    %2708 = vmatmul.mubr.bf16.gmra.mxu0 %v1988
    %v2709 = vpop.f32.mrf.mxu0
    %v2710 = vadd.f32 0.0, %v2709
    %v2711 = vpop.f32.mrf.mxu0
    %v2712 = vpop.f32.mrf.mxu0
    %v2713 = vadd.f32 0.0, %v2712
    %v2714 = vpop.f32.mrf.mxu0
    %2715 = vmatprep.mubr.bf16.mxu0 %v1994
    %2716 = vmatmul.mubr.bf16.gmra.mxu0 %v1993
    %v2717 = vpop.f32.mrf.mxu0
    %v2718 = vadd.f32 0.0, %v2717
    %v2719 = vpop.f32.mrf.mxu0
    %v2720 = vpop.f32.mrf.mxu0
    %v2721 = vadd.f32 0.0, %v2720
    %v2722 = vpop.f32.mrf.mxu0
    %2723 = vmatprep.mubr.bf16.mxu0 %v1999
    %2724 = vmatmul.mubr.bf16.gmra.mxu0 %v1998
    %v2725 = vpop.f32.mrf.mxu0
    %v2726 = vadd.f32 0.0, %v2725
    %v2727 = vpop.f32.mrf.mxu0
    %v2728 = vpop.f32.mrf.mxu0
    %v2729 = vadd.f32 0.0, %v2728
    %v2730 = vpop.f32.mrf.mxu0
    %2731 = vmatprep.mubr.bf16.mxu0 %v2004
    %2732 = vmatmul.mubr.bf16.gmra.mxu0 %v2003
    %v2733 = vpop.f32.mrf.mxu0
    %v2734 = vadd.f32 0.0, %v2733
    %v2735 = vpop.f32.mrf.mxu0
    %v2736 = vpop.f32.mrf.mxu0
    %v2737 = vadd.f32 0.0, %v2736
    %v2738 = vpop.f32.mrf.mxu0
    %2739 = vmatprep.mubr.bf16.mxu0 %v2009
    %2740 = vmatmul.mubr.bf16.gmra.mxu0 %v2008
    %v2741 = vpop.f32.mrf.mxu0
    %v2742 = vadd.f32 0.0, %v2741
    %v2743 = vpop.f32.mrf.mxu0
    %v2744 = vpop.f32.mrf.mxu0
    %v2745 = vadd.f32 0.0, %v2744
    %v2746 = vpop.f32.mrf.mxu0
    %2747 = vdwg.mxu0
    %2748 = vmatprep.subr.bf16.mxu0 0
    %2749 = vmatpush1.bf16.msra.mxu0 %v2312
    %2750 = vmatprep.subr.bf16.mxu0 0
    %2751 = vmatpush1.bf16.msra.mxu0 %v2311
    %2752 = vmatprep.subr.bf16.mxu0 0
    %2753 = vmatpush1.bf16.msra.mxu0 %v2310
    %2754 = vmatprep.subr.bf16.mxu0 0
    %2755 = vmatpush1.bf16.msra.mxu0 %v2309
    %2756 = vmatprep.subr.bf16.mxu0 0
    %2757 = vmatpush1.bf16.msra.mxu0 %v2308
    %2758 = vmatprep.subr.bf16.mxu0 0
    %2759 = vmatpush1.bf16.msra.mxu0 %v2307
    %2760 = vmatprep.subr.bf16.mxu0 0
    %2761 = vmatpush1.bf16.msra.mxu0 %v2306
    %2762 = vmatprep.subr.bf16.mxu0 0
    %2763 = vmatpush1.bf16.msra.mxu0 %v2305
    %2764 = vmatprep.subr.bf16.mxu0 0
    %2765 = vmatpush2.bf16.msra.mxu0 %v2320
    %2766 = vmatprep.subr.bf16.mxu0 0
    %2767 = vmatpush2.bf16.msra.mxu0 %v2319
    %2768 = vmatprep.subr.bf16.mxu0 0
    %2769 = vmatpush2.bf16.msra.mxu0 %v2318
    %2770 = vmatprep.subr.bf16.mxu0 0
    %2771 = vmatpush2.bf16.msra.mxu0 %v2317
    %2772 = vmatprep.subr.bf16.mxu0 0
    %2773 = vmatpush2.bf16.msra.mxu0 %v2316
    %2774 = vmatprep.subr.bf16.mxu0 0
    %2775 = vmatpush2.bf16.msra.mxu0 %v2315
    %2776 = vmatprep.subr.bf16.mxu0 0
    %2777 = vmatpush2.bf16.msra.mxu0 %v2314
    %2778 = vmatprep.subr.bf16.mxu0 0
    %2779 = vmatpush2.bf16.msra.mxu0 %v2313
    %2780 = vmatprep.mubr.bf16.mxu0 %v1856
    %2781 = vmatmul.mubr.bf16.gmra.mxu0 %v1855
    %v2782 = vpop.f32.mrf.mxu0
    %v2783 = vadd.f32 %v2494, %v2782
    %v2784 = vpop.f32.mrf.mxu0
    %v2785 = vpop.f32.mrf.mxu0
    %v2786 = vadd.f32 %v2497, %v2785
    %v2787 = vpop.f32.mrf.mxu0
    %2788 = vmatprep.mubr.bf16.mxu0 %v1861
    %2789 = vmatmul.mubr.bf16.gmra.mxu0 %v1860
    %v2790 = vpop.f32.mrf.mxu0
    %v2791 = vadd.f32 %v2502, %v2790
    %v2792 = vpop.f32.mrf.mxu0
    %v2793 = vpop.f32.mrf.mxu0
    %v2794 = vadd.f32 %v2505, %v2793
    %v2795 = vpop.f32.mrf.mxu0
    %2796 = vmatprep.mubr.bf16.mxu0 %v1866
    %2797 = vmatmul.mubr.bf16.gmra.mxu0 %v1865
    %v2798 = vpop.f32.mrf.mxu0
    %v2799 = vadd.f32 %v2510, %v2798
    %v2800 = vpop.f32.mrf.mxu0
    %v2801 = vpop.f32.mrf.mxu0
    %v2802 = vadd.f32 %v2513, %v2801
    %v2803 = vpop.f32.mrf.mxu0
    %2804 = vmatprep.mubr.bf16.mxu0 %v1871
    %2805 = vmatmul.mubr.bf16.gmra.mxu0 %v1870
    %v2806 = vpop.f32.mrf.mxu0
    %v2807 = vadd.f32 %v2518, %v2806
    %v2808 = vpop.f32.mrf.mxu0
    %v2809 = vpop.f32.mrf.mxu0
    %v2810 = vadd.f32 %v2521, %v2809
    %v2811 = vpop.f32.mrf.mxu0
    %2812 = vmatprep.mubr.bf16.mxu0 %v1876
    %2813 = vmatmul.mubr.bf16.gmra.mxu0 %v1875
    %v2814 = vpop.f32.mrf.mxu0
    %v2815 = vadd.f32 %v2526, %v2814
    %v2816 = vpop.f32.mrf.mxu0
    %v2817 = vpop.f32.mrf.mxu0
    %v2818 = vadd.f32 %v2529, %v2817
    %v2819 = vpop.f32.mrf.mxu0
    %2820 = vmatprep.mubr.bf16.mxu0 %v1881
    %2821 = vmatmul.mubr.bf16.gmra.mxu0 %v1880
    %v2822 = vpop.f32.mrf.mxu0
    %v2823 = vadd.f32 %v2534, %v2822
    %v2824 = vpop.f32.mrf.mxu0
    %v2825 = vpop.f32.mrf.mxu0
    %v2826 = vadd.f32 %v2537, %v2825
    %v2827 = vpop.f32.mrf.mxu0
    %2828 = vmatprep.mubr.bf16.mxu0 %v1886
    %2829 = vmatmul.mubr.bf16.gmra.mxu0 %v1885
    %v2830 = vpop.f32.mrf.mxu0
    %v2831 = vadd.f32 %v2542, %v2830
    %v2832 = vpop.f32.mrf.mxu0
    %v2833 = vpop.f32.mrf.mxu0
    %v2834 = vadd.f32 %v2545, %v2833
    %v2835 = vpop.f32.mrf.mxu0
    %2836 = vmatprep.mubr.bf16.mxu0 %v1891
    %2837 = vmatmul.mubr.bf16.gmra.mxu0 %v1890
    %v2838 = vpop.f32.mrf.mxu0
    %v2839 = vadd.f32 %v2550, %v2838
    %v2840 = vpop.f32.mrf.mxu0
    %v2841 = vpop.f32.mrf.mxu0
    %v2842 = vadd.f32 %v2553, %v2841
    %v2843 = vpop.f32.mrf.mxu0
    %2844 = vmatprep.mubr.bf16.mxu0 %v1896
    %2845 = vmatmul.mubr.bf16.gmra.mxu0 %v1895
    %v2846 = vpop.f32.mrf.mxu0
    %v2847 = vadd.f32 %v2558, %v2846
    %v2848 = vpop.f32.mrf.mxu0
    %v2849 = vpop.f32.mrf.mxu0
    %v2850 = vadd.f32 %v2561, %v2849
    %v2851 = vpop.f32.mrf.mxu0
    %2852 = vmatprep.mubr.bf16.mxu0 %v1901
    %2853 = vmatmul.mubr.bf16.gmra.mxu0 %v1900
    %v2854 = vpop.f32.mrf.mxu0
    %v2855 = vadd.f32 %v2566, %v2854
    %v2856 = vpop.f32.mrf.mxu0
    %v2857 = vpop.f32.mrf.mxu0
    %v2858 = vadd.f32 %v2569, %v2857
    %v2859 = vpop.f32.mrf.mxu0
    %2860 = vmatprep.mubr.bf16.mxu0 %v1906
    %2861 = vmatmul.mubr.bf16.gmra.mxu0 %v1905
    %v2862 = vpop.f32.mrf.mxu0
    %v2863 = vadd.f32 %v2574, %v2862
    %v2864 = vpop.f32.mrf.mxu0
    %v2865 = vpop.f32.mrf.mxu0
    %v2866 = vadd.f32 %v2577, %v2865
    %v2867 = vpop.f32.mrf.mxu0
    %2868 = vmatprep.mubr.bf16.mxu0 %v1911
    %2869 = vmatmul.mubr.bf16.gmra.mxu0 %v1910
    %v2870 = vpop.f32.mrf.mxu0
    %v2871 = vadd.f32 %v2582, %v2870
    %v2872 = vpop.f32.mrf.mxu0
    %v2873 = vpop.f32.mrf.mxu0
    %v2874 = vadd.f32 %v2585, %v2873
    %v2875 = vpop.f32.mrf.mxu0
    %2876 = vmatprep.mubr.bf16.mxu0 %v1916
    %2877 = vmatmul.mubr.bf16.gmra.mxu0 %v1915
    %v2878 = vpop.f32.mrf.mxu0
    %v2879 = vadd.f32 %v2590, %v2878
    %v2880 = vpop.f32.mrf.mxu0
    %v2881 = vpop.f32.mrf.mxu0
    %v2882 = vadd.f32 %v2593, %v2881
    %v2883 = vpop.f32.mrf.mxu0
    %2884 = vmatprep.mubr.bf16.mxu0 %v1921
    %2885 = vmatmul.mubr.bf16.gmra.mxu0 %v1920
    %v2886 = vpop.f32.mrf.mxu0
    %v2887 = vadd.f32 %v2598, %v2886
    %v2888 = vpop.f32.mrf.mxu0
    %v2889 = vpop.f32.mrf.mxu0
    %v2890 = vadd.f32 %v2601, %v2889
    %v2891 = vpop.f32.mrf.mxu0
    %2892 = vmatprep.mubr.bf16.mxu0 %v1926
    %2893 = vmatmul.mubr.bf16.gmra.mxu0 %v1925
    %v2894 = vpop.f32.mrf.mxu0
    %v2895 = vadd.f32 %v2606, %v2894
    %v2896 = vpop.f32.mrf.mxu0
    %v2897 = vpop.f32.mrf.mxu0
    %v2898 = vadd.f32 %v2609, %v2897
    %v2899 = vpop.f32.mrf.mxu0
    %2900 = vmatprep.mubr.bf16.mxu0 %v1931
    %2901 = vmatmul.mubr.bf16.gmra.mxu0 %v1930
    %v2902 = vpop.f32.mrf.mxu0
    %v2903 = vadd.f32 %v2614, %v2902
    %v2904 = vpop.f32.mrf.mxu0
    %v2905 = vpop.f32.mrf.mxu0
    %v2906 = vadd.f32 %v2617, %v2905
    %v2907 = vpop.f32.mrf.mxu0
    %2908 = vmatprep.mubr.bf16.mxu0 %v1936
    %2909 = vmatmul.mubr.bf16.gmra.mxu0 %v1935
    %v2910 = vpop.f32.mrf.mxu0
    %v2911 = vadd.f32 %v2622, %v2910
    %v2912 = vpop.f32.mrf.mxu0
    %v2913 = vpop.f32.mrf.mxu0
    %v2914 = vadd.f32 %v2625, %v2913
    %v2915 = vpop.f32.mrf.mxu0
    %2916 = vmatprep.mubr.bf16.mxu0 %v1941
    %2917 = vmatmul.mubr.bf16.gmra.mxu0 %v1940
    %v2918 = vpop.f32.mrf.mxu0
    %v2919 = vadd.f32 %v2630, %v2918
    %v2920 = vpop.f32.mrf.mxu0
    %v2921 = vpop.f32.mrf.mxu0
    %v2922 = vadd.f32 %v2633, %v2921
    %v2923 = vpop.f32.mrf.mxu0
    %2924 = vmatprep.mubr.bf16.mxu0 %v1946
    %2925 = vmatmul.mubr.bf16.gmra.mxu0 %v1945
    %v2926 = vpop.f32.mrf.mxu0
    %v2927 = vadd.f32 %v2638, %v2926
    %v2928 = vpop.f32.mrf.mxu0
    %v2929 = vpop.f32.mrf.mxu0
    %v2930 = vadd.f32 %v2641, %v2929
    %v2931 = vpop.f32.mrf.mxu0
    %2932 = vmatprep.mubr.bf16.mxu0 %v1951
    %2933 = vmatmul.mubr.bf16.gmra.mxu0 %v1950
    %v2934 = vpop.f32.mrf.mxu0
    %v2935 = vadd.f32 %v2646, %v2934
    %v2936 = vpop.f32.mrf.mxu0
    %v2937 = vpop.f32.mrf.mxu0
    %v2938 = vadd.f32 %v2649, %v2937
    %v2939 = vpop.f32.mrf.mxu0
    %2940 = vmatprep.mubr.bf16.mxu0 %v1956
    %2941 = vmatmul.mubr.bf16.gmra.mxu0 %v1955
    %v2942 = vpop.f32.mrf.mxu0
    %v2943 = vadd.f32 %v2654, %v2942
    %v2944 = vpop.f32.mrf.mxu0
    %v2945 = vpop.f32.mrf.mxu0
    %v2946 = vadd.f32 %v2657, %v2945
    %v2947 = vpop.f32.mrf.mxu0
    %2948 = vmatprep.mubr.bf16.mxu0 %v1961
    %2949 = vmatmul.mubr.bf16.gmra.mxu0 %v1960
    %v2950 = vpop.f32.mrf.mxu0
    %v2951 = vadd.f32 %v2662, %v2950
    %v2952 = vpop.f32.mrf.mxu0
    %v2953 = vpop.f32.mrf.mxu0
    %v2954 = vadd.f32 %v2665, %v2953
    %v2955 = vpop.f32.mrf.mxu0
    %2956 = vmatprep.mubr.bf16.mxu0 %v1966
    %2957 = vmatmul.mubr.bf16.gmra.mxu0 %v1965
    %v2958 = vpop.f32.mrf.mxu0
    %v2959 = vadd.f32 %v2670, %v2958
    %v2960 = vpop.f32.mrf.mxu0
    %v2961 = vpop.f32.mrf.mxu0
    %v2962 = vadd.f32 %v2673, %v2961
    %v2963 = vpop.f32.mrf.mxu0
    %2964 = vmatprep.mubr.bf16.mxu0 %v1971
    %2965 = vmatmul.mubr.bf16.gmra.mxu0 %v1970
    %v2966 = vpop.f32.mrf.mxu0
    %v2967 = vadd.f32 %v2678, %v2966
    %v2968 = vpop.f32.mrf.mxu0
    %v2969 = vpop.f32.mrf.mxu0
    %v2970 = vadd.f32 %v2681, %v2969
    %v2971 = vpop.f32.mrf.mxu0
    %2972 = vmatprep.mubr.bf16.mxu0 %v1976
    %2973 = vmatmul.mubr.bf16.gmra.mxu0 %v1975
    %v2974 = vpop.f32.mrf.mxu0
    %v2975 = vadd.f32 %v2686, %v2974
    %v2976 = vpop.f32.mrf.mxu0
    %v2977 = vpop.f32.mrf.mxu0
    %v2978 = vadd.f32 %v2689, %v2977
    %v2979 = vpop.f32.mrf.mxu0
    %2980 = vmatprep.mubr.bf16.mxu0 %v1981
    %2981 = vmatmul.mubr.bf16.gmra.mxu0 %v1980
    %v2982 = vpop.f32.mrf.mxu0
    %v2983 = vadd.f32 %v2694, %v2982
    %v2984 = vpop.f32.mrf.mxu0
    %v2985 = vpop.f32.mrf.mxu0
    %v2986 = vadd.f32 %v2697, %v2985
    %v2987 = vpop.f32.mrf.mxu0
    %2988 = vmatprep.mubr.bf16.mxu0 %v1986
    %2989 = vmatmul.mubr.bf16.gmra.mxu0 %v1985
    %v2990 = vpop.f32.mrf.mxu0
    %v2991 = vadd.f32 %v2702, %v2990
    %v2992 = vpop.f32.mrf.mxu0
    %v2993 = vpop.f32.mrf.mxu0
    %v2994 = vadd.f32 %v2705, %v2993
    %v2995 = vpop.f32.mrf.mxu0
    %2996 = vmatprep.mubr.bf16.mxu0 %v1991
    %2997 = vmatmul.mubr.bf16.gmra.mxu0 %v1990
    %v2998 = vpop.f32.mrf.mxu0
    %v2999 = vadd.f32 %v2710, %v2998
    %v3000 = vpop.f32.mrf.mxu0
    %v3001 = vpop.f32.mrf.mxu0
    %v3002 = vadd.f32 %v2713, %v3001
    %v3003 = vpop.f32.mrf.mxu0
    %3004 = vmatprep.mubr.bf16.mxu0 %v1996
    %3005 = vmatmul.mubr.bf16.gmra.mxu0 %v1995
    %v3006 = vpop.f32.mrf.mxu0
    %v3007 = vadd.f32 %v2718, %v3006
    %v3008 = vpop.f32.mrf.mxu0
    %v3009 = vpop.f32.mrf.mxu0
    %v3010 = vadd.f32 %v2721, %v3009
    %v3011 = vpop.f32.mrf.mxu0
    %3012 = vmatprep.mubr.bf16.mxu0 %v2001
    %3013 = vmatmul.mubr.bf16.gmra.mxu0 %v2000
    %v3014 = vpop.f32.mrf.mxu0
    %v3015 = vadd.f32 %v2726, %v3014
    %v3016 = vpop.f32.mrf.mxu0
    %v3017 = vpop.f32.mrf.mxu0
    %v3018 = vadd.f32 %v2729, %v3017
    %v3019 = vpop.f32.mrf.mxu0
    %3020 = vmatprep.mubr.bf16.mxu0 %v2006
    %3021 = vmatmul.mubr.bf16.gmra.mxu0 %v2005
    %v3022 = vpop.f32.mrf.mxu0
    %v3023 = vadd.f32 %v2734, %v3022
    %v3024 = vpop.f32.mrf.mxu0
    %v3025 = vpop.f32.mrf.mxu0
    %v3026 = vadd.f32 %v2737, %v3025
    %v3027 = vpop.f32.mrf.mxu0
    %3028 = vmatprep.mubr.bf16.mxu0 %v2011
    %3029 = vmatmul.mubr.bf16.gmra.mxu0 %v2010
    %v3030 = vpop.f32.mrf.mxu0
    %v3031 = vadd.f32 %v2742, %v3030
    %v3032 = vpop.f32.mrf.mxu0
    %v3033 = vpop.f32.mrf.mxu0
    %v3034 = vadd.f32 %v2745, %v3033
    %v3035 = vpop.f32.mrf.mxu0
    %3036 = vdwg.mxu0
    %3037 = vmatprep.subr.bf16.mxu0 0
    %3038 = vmatpush1.bf16.msra.mxu0 0
    %3039 = vmatprep.subr.bf16.mxu0 0
    %3040 = vmatpush1.bf16.msra.mxu0 0
    %3041 = vmatprep.subr.bf16.mxu0 0
    %3042 = vmatpush1.bf16.msra.mxu0 0
    %3043 = vmatprep.subr.bf16.mxu0 0
    %3044 = vmatpush1.bf16.msra.mxu0 %v2325
    %3045 = vmatprep.subr.bf16.mxu0 0
    %3046 = vmatpush1.bf16.msra.mxu0 %v2324
    %3047 = vmatprep.subr.bf16.mxu0 0
    %3048 = vmatpush1.bf16.msra.mxu0 %v2323
    %3049 = vmatprep.subr.bf16.mxu0 0
    %3050 = vmatpush1.bf16.msra.mxu0 %v2322
    %3051 = vmatprep.subr.bf16.mxu0 0
    %3052 = vmatpush1.bf16.msra.mxu0 %v2321
    %3053 = vmatprep.subr.bf16.mxu0 0
    %3054 = vmatpush2.bf16.msra.mxu0 0
    %3055 = vmatprep.subr.bf16.mxu0 0
    %3056 = vmatpush2.bf16.msra.mxu0 0
    %3057 = vmatprep.subr.bf16.mxu0 0
    %3058 = vmatpush2.bf16.msra.mxu0 0
    %3059 = vmatprep.subr.bf16.mxu0 0
    %3060 = vmatpush2.bf16.msra.mxu0 0
    %3061 = vmatprep.subr.bf16.mxu0 0
    %3062 = vmatpush2.bf16.msra.mxu0 0
    %3063 = vmatprep.subr.bf16.mxu0 0
    %3064 = vmatpush2.bf16.msra.mxu0 0
    %3065 = vmatprep.subr.bf16.mxu0 0
    %3066 = vmatpush2.bf16.msra.mxu0 0
    %3067 = vmatprep.subr.bf16.mxu0 0
    %3068 = vmatpush2.bf16.msra.mxu0 0
    %3069 = vmatprep.mubr.bf16.mxu0 0
    %3070 = vmatmul.mubr.bf16.gmra.mxu0 %v2364
    %v3071 = vpop.f32.mrf.mxu0
    %v3072 = vadd.f32 %v2783, %v3071
    %v3073 = vpop.f32.mrf.mxu0
    %v3074 = vpop.f32.mrf.mxu0
    %v3075 = vadd.f32 %v2786, %v3074
    %v3076 = vpop.f32.mrf.mxu0
    %3077 = vmatprep.mubr.bf16.mxu0 0
    %3078 = vmatmul.mubr.bf16.gmra.mxu0 %v2367
    %v3079 = vpop.f32.mrf.mxu0
    %v3080 = vadd.f32 %v2791, %v3079
    %v3081 = vpop.f32.mrf.mxu0
    %v3082 = vpop.f32.mrf.mxu0
    %v3083 = vadd.f32 %v2794, %v3082
    %v3084 = vpop.f32.mrf.mxu0
    %3085 = vmatprep.mubr.bf16.mxu0 0
    %3086 = vmatmul.mubr.bf16.gmra.mxu0 %v2370
    %v3087 = vpop.f32.mrf.mxu0
    %v3088 = vadd.f32 %v2799, %v3087
    %v3089 = vpop.f32.mrf.mxu0
    %v3090 = vpop.f32.mrf.mxu0
    %v3091 = vadd.f32 %v2802, %v3090
    %v3092 = vpop.f32.mrf.mxu0
    %3093 = vmatprep.mubr.bf16.mxu0 0
    %3094 = vmatmul.mubr.bf16.gmra.mxu0 %v2373
    %v3095 = vpop.f32.mrf.mxu0
    %v3096 = vadd.f32 %v2807, %v3095
    %v3097 = vpop.f32.mrf.mxu0
    %v3098 = vpop.f32.mrf.mxu0
    %v3099 = vadd.f32 %v2810, %v3098
    %v3100 = vpop.f32.mrf.mxu0
    %3101 = vmatprep.mubr.bf16.mxu0 0
    %3102 = vmatmul.mubr.bf16.gmra.mxu0 %v2376
    %v3103 = vpop.f32.mrf.mxu0
    %v3104 = vadd.f32 %v2815, %v3103
    %v3105 = vpop.f32.mrf.mxu0
    %v3106 = vpop.f32.mrf.mxu0
    %v3107 = vadd.f32 %v2818, %v3106
    %v3108 = vpop.f32.mrf.mxu0
    %3109 = vmatprep.mubr.bf16.mxu0 0
    %3110 = vmatmul.mubr.bf16.gmra.mxu0 %v2379
    %v3111 = vpop.f32.mrf.mxu0
    %v3112 = vadd.f32 %v2823, %v3111
    %v3113 = vpop.f32.mrf.mxu0
    %v3114 = vpop.f32.mrf.mxu0
    %v3115 = vadd.f32 %v2826, %v3114
    %v3116 = vpop.f32.mrf.mxu0
    %3117 = vmatprep.mubr.bf16.mxu0 0
    %3118 = vmatmul.mubr.bf16.gmra.mxu0 %v2382
    %v3119 = vpop.f32.mrf.mxu0
    %v3120 = vadd.f32 %v2831, %v3119
    %v3121 = vpop.f32.mrf.mxu0
    %v3122 = vpop.f32.mrf.mxu0
    %v3123 = vadd.f32 %v2834, %v3122
    %v3124 = vpop.f32.mrf.mxu0
    %3125 = vmatprep.mubr.bf16.mxu0 0
    %3126 = vmatmul.mubr.bf16.gmra.mxu0 %v2385
    %v3127 = vpop.f32.mrf.mxu0
    %v3128 = vadd.f32 %v2839, %v3127
    %v3129 = vpop.f32.mrf.mxu0
    %v3130 = vpop.f32.mrf.mxu0
    %v3131 = vadd.f32 %v2842, %v3130
    %v3132 = vpop.f32.mrf.mxu0
    %3133 = vmatprep.mubr.bf16.mxu0 0
    %3134 = vmatmul.mubr.bf16.gmra.mxu0 %v2388
    %v3135 = vpop.f32.mrf.mxu0
    %v3136 = vadd.f32 %v2847, %v3135
    %v3137 = vpop.f32.mrf.mxu0
    %v3138 = vpop.f32.mrf.mxu0
    %v3139 = vadd.f32 %v2850, %v3138
    %v3140 = vpop.f32.mrf.mxu0
    %3141 = vmatprep.mubr.bf16.mxu0 0
    %3142 = vmatmul.mubr.bf16.gmra.mxu0 %v2391
    %v3143 = vpop.f32.mrf.mxu0
    %v3144 = vadd.f32 %v2855, %v3143
    %v3145 = vpop.f32.mrf.mxu0
    %v3146 = vpop.f32.mrf.mxu0
    %v3147 = vadd.f32 %v2858, %v3146
    %v3148 = vpop.f32.mrf.mxu0
    %3149 = vmatprep.mubr.bf16.mxu0 0
    %3150 = vmatmul.mubr.bf16.gmra.mxu0 %v2394
    %v3151 = vpop.f32.mrf.mxu0
    %v3152 = vadd.f32 %v2863, %v3151
    %v3153 = vpop.f32.mrf.mxu0
    %v3154 = vpop.f32.mrf.mxu0
    %v3155 = vadd.f32 %v2866, %v3154
    %v3156 = vpop.f32.mrf.mxu0
    %3157 = vmatprep.mubr.bf16.mxu0 0
    %3158 = vmatmul.mubr.bf16.gmra.mxu0 %v2397
    %v3159 = vpop.f32.mrf.mxu0
    %v3160 = vadd.f32 %v2871, %v3159
    %v3161 = vpop.f32.mrf.mxu0
    %v3162 = vpop.f32.mrf.mxu0
    %v3163 = vadd.f32 %v2874, %v3162
    %v3164 = vpop.f32.mrf.mxu0
    %3165 = vmatprep.mubr.bf16.mxu0 0
    %3166 = vmatmul.mubr.bf16.gmra.mxu0 %v2400
    %v3167 = vpop.f32.mrf.mxu0
    %v3168 = vadd.f32 %v2879, %v3167
    %v3169 = vpop.f32.mrf.mxu0
    %v3170 = vpop.f32.mrf.mxu0
    %v3171 = vadd.f32 %v2882, %v3170
    %v3172 = vpop.f32.mrf.mxu0
    %3173 = vmatprep.mubr.bf16.mxu0 0
    %3174 = vmatmul.mubr.bf16.gmra.mxu0 %v2403
    %v3175 = vpop.f32.mrf.mxu0
    %v3176 = vadd.f32 %v2887, %v3175
    %v3177 = vpop.f32.mrf.mxu0
    %v3178 = vpop.f32.mrf.mxu0
    %v3179 = vadd.f32 %v2890, %v3178
    %v3180 = vpop.f32.mrf.mxu0
    %3181 = vmatprep.mubr.bf16.mxu0 0
    %3182 = vmatmul.mubr.bf16.gmra.mxu0 %v2406
    %v3183 = vpop.f32.mrf.mxu0
    %v3184 = vadd.f32 %v2895, %v3183
    %v3185 = vpop.f32.mrf.mxu0
    %v3186 = vpop.f32.mrf.mxu0
    %v3187 = vadd.f32 %v2898, %v3186
    %v3188 = vpop.f32.mrf.mxu0
    %3189 = vmatprep.mubr.bf16.mxu0 0
    %3190 = vmatmul.mubr.bf16.gmra.mxu0 %v2409
    %v3191 = vpop.f32.mrf.mxu0
    %v3192 = vadd.f32 %v2903, %v3191
    %v3193 = vpop.f32.mrf.mxu0
    %v3194 = vpop.f32.mrf.mxu0
    %v3195 = vadd.f32 %v2906, %v3194
    %v3196 = vpop.f32.mrf.mxu0
    %3197 = vmatprep.mubr.bf16.mxu0 0
    %3198 = vmatmul.mubr.bf16.gmra.mxu0 %v2412
    %v3199 = vpop.f32.mrf.mxu0
    %v3200 = vadd.f32 %v2911, %v3199
    %v3201 = vpop.f32.mrf.mxu0
    %v3202 = vpop.f32.mrf.mxu0
    %v3203 = vadd.f32 %v2914, %v3202
    %v3204 = vpop.f32.mrf.mxu0
    %3205 = vmatprep.mubr.bf16.mxu0 0
    %3206 = vmatmul.mubr.bf16.gmra.mxu0 %v2415
    %v3207 = vpop.f32.mrf.mxu0
    %v3208 = vadd.f32 %v2919, %v3207
    %v3209 = vpop.f32.mrf.mxu0
    %v3210 = vpop.f32.mrf.mxu0
    %v3211 = vadd.f32 %v2922, %v3210
    %v3212 = vpop.f32.mrf.mxu0
    %3213 = vmatprep.mubr.bf16.mxu0 0
    %3214 = vmatmul.mubr.bf16.gmra.mxu0 %v2418
    %v3215 = vpop.f32.mrf.mxu0
    %v3216 = vadd.f32 %v2927, %v3215
    %v3217 = vpop.f32.mrf.mxu0
    %v3218 = vpop.f32.mrf.mxu0
    %v3219 = vadd.f32 %v2930, %v3218
    %v3220 = vpop.f32.mrf.mxu0
    %3221 = vmatprep.mubr.bf16.mxu0 0
    %3222 = vmatmul.mubr.bf16.gmra.mxu0 %v2421
    %v3223 = vpop.f32.mrf.mxu0
    %v3224 = vadd.f32 %v2935, %v3223
    %v3225 = vpop.f32.mrf.mxu0
    %v3226 = vpop.f32.mrf.mxu0
    %v3227 = vadd.f32 %v2938, %v3226
    %v3228 = vpop.f32.mrf.mxu0
    %3229 = vmatprep.mubr.bf16.mxu0 0
    %3230 = vmatmul.mubr.bf16.gmra.mxu0 %v2424
    %v3231 = vpop.f32.mrf.mxu0
    %v3232 = vadd.f32 %v2943, %v3231
    %v3233 = vpop.f32.mrf.mxu0
    %v3234 = vpop.f32.mrf.mxu0
    %v3235 = vadd.f32 %v2946, %v3234
    %v3236 = vpop.f32.mrf.mxu0
    %3237 = vmatprep.mubr.bf16.mxu0 0
    %3238 = vmatmul.mubr.bf16.gmra.mxu0 %v2427
    %v3239 = vpop.f32.mrf.mxu0
    %v3240 = vadd.f32 %v2951, %v3239
    %v3241 = vpop.f32.mrf.mxu0
    %v3242 = vpop.f32.mrf.mxu0
    %v3243 = vadd.f32 %v2954, %v3242
    %v3244 = vpop.f32.mrf.mxu0
    %3245 = vmatprep.mubr.bf16.mxu0 0
    %3246 = vmatmul.mubr.bf16.gmra.mxu0 %v2430
    %v3247 = vpop.f32.mrf.mxu0
    %v3248 = vadd.f32 %v2959, %v3247
    %v3249 = vpop.f32.mrf.mxu0
    %v3250 = vpop.f32.mrf.mxu0
    %v3251 = vadd.f32 %v2962, %v3250
    %v3252 = vpop.f32.mrf.mxu0
    %3253 = vmatprep.mubr.bf16.mxu0 0
    %3254 = vmatmul.mubr.bf16.gmra.mxu0 %v2433
    %v3255 = vpop.f32.mrf.mxu0
    %v3256 = vadd.f32 %v2967, %v3255
    %v3257 = vpop.f32.mrf.mxu0
    %v3258 = vpop.f32.mrf.mxu0
    %v3259 = vadd.f32 %v2970, %v3258
    %v3260 = vpop.f32.mrf.mxu0
    %3261 = vmatprep.mubr.bf16.mxu0 0
    %3262 = vmatmul.mubr.bf16.gmra.mxu0 %v2436
    %v3263 = vpop.f32.mrf.mxu0
    %v3264 = vadd.f32 %v2975, %v3263
    %v3265 = vpop.f32.mrf.mxu0
    %v3266 = vpop.f32.mrf.mxu0
    %v3267 = vadd.f32 %v2978, %v3266
    %v3268 = vpop.f32.mrf.mxu0
    %3269 = vmatprep.mubr.bf16.mxu0 0
    %3270 = vmatmul.mubr.bf16.gmra.mxu0 %v2439
    %v3271 = vpop.f32.mrf.mxu0
    %v3272 = vadd.f32 %v2983, %v3271
    %v3273 = vpop.f32.mrf.mxu0
    %v3274 = vpop.f32.mrf.mxu0
    %v3275 = vadd.f32 %v2986, %v3274
    %v3276 = vpop.f32.mrf.mxu0
    %3277 = vmatprep.mubr.bf16.mxu0 0
    %3278 = vmatmul.mubr.bf16.gmra.mxu0 %v2442
    %v3279 = vpop.f32.mrf.mxu0
    %v3280 = vadd.f32 %v2991, %v3279
    %v3281 = vpop.f32.mrf.mxu0
    %v3282 = vpop.f32.mrf.mxu0
    %v3283 = vadd.f32 %v2994, %v3282
    %v3284 = vpop.f32.mrf.mxu0
    %3285 = vmatprep.mubr.bf16.mxu0 0
    %3286 = vmatmul.mubr.bf16.gmra.mxu0 %v2445
    %v3287 = vpop.f32.mrf.mxu0
    %v3288 = vadd.f32 %v2999, %v3287
    %v3289 = vpop.f32.mrf.mxu0
    %v3290 = vpop.f32.mrf.mxu0
    %v3291 = vadd.f32 %v3002, %v3290
    %v3292 = vpop.f32.mrf.mxu0
    %3293 = vmatprep.mubr.bf16.mxu0 0
    %3294 = vmatmul.mubr.bf16.gmra.mxu0 %v2448
    %v3295 = vpop.f32.mrf.mxu0
    %v3296 = vadd.f32 %v3007, %v3295
    %v3297 = vpop.f32.mrf.mxu0
    %v3298 = vpop.f32.mrf.mxu0
    %v3299 = vadd.f32 %v3010, %v3298
    %v3300 = vpop.f32.mrf.mxu0
    %3301 = vmatprep.mubr.bf16.mxu0 0
    %3302 = vmatmul.mubr.bf16.gmra.mxu0 %v2451
    %v3303 = vpop.f32.mrf.mxu0
    %v3304 = vadd.f32 %v3015, %v3303
    %v3305 = vpop.f32.mrf.mxu0
    %v3306 = vpop.f32.mrf.mxu0
    %v3307 = vadd.f32 %v3018, %v3306
    %v3308 = vpop.f32.mrf.mxu0
    %3309 = vmatprep.mubr.bf16.mxu0 0
    %3310 = vmatmul.mubr.bf16.gmra.mxu0 %v2454
    %v3311 = vpop.f32.mrf.mxu0
    %v3312 = vadd.f32 %v3023, %v3311
    %v3313 = vpop.f32.mrf.mxu0
    %v3314 = vpop.f32.mrf.mxu0
    %v3315 = vadd.f32 %v3026, %v3314
    %v3316 = vpop.f32.mrf.mxu0
    %3317 = vmatprep.mubr.bf16.mxu0 0
    %3318 = vmatmul.mubr.bf16.gmra.mxu0 %v2457
    %v3319 = vpop.f32.mrf.mxu0
    %v3320 = vadd.f32 %v3031, %v3319
    %v3321 = vpop.f32.mrf.mxu0
    %v3322 = vpop.f32.mrf.mxu0
    %v3323 = vadd.f32 %v3034, %v3322
    %v3324 = vpop.f32.mrf.mxu0
    %3325 = vdwg.mxu0
    %v3326 = vmax.f32 %v3072, 0.0
    %v3327 = vmax.f32 %v3075, 0.0
    %v3328 = vmax.f32 %v3080, 0.0
    %v3329 = vmax.f32 %v3083, 0.0
    %v3330 = vmax.f32 %v3088, 0.0
    %v3331 = vmax.f32 %v3091, 0.0
    %v3332 = vmax.f32 %v3096, 0.0
    %v3333 = vmax.f32 %v3099, 0.0
    %v3334 = vmax.f32 %v3104, 0.0
    %v3335 = vmax.f32 %v3107, 0.0
    %v3336 = vmax.f32 %v3112, 0.0
    %v3337 = vmax.f32 %v3115, 0.0
    %v3338 = vmax.f32 %v3120, 0.0
    %v3339 = vmax.f32 %v3123, 0.0
    %v3340 = vmax.f32 %v3128, 0.0
    %v3341 = vmax.f32 %v3131, 0.0
    %v3342 = vmax.f32 %v3136, 0.0
    %v3343 = vmax.f32 %v3139, 0.0
    %v3344 = vmax.f32 %v3144, 0.0
    %v3345 = vmax.f32 %v3147, 0.0
    %v3346 = vmax.f32 %v3152, 0.0
    %v3347 = vmax.f32 %v3155, 0.0
    %v3348 = vmax.f32 %v3160, 0.0
    %v3349 = vmax.f32 %v3163, 0.0
    %v3350 = vmax.f32 %v3168, 0.0
    %v3351 = vmax.f32 %v3171, 0.0
    %v3352 = vmax.f32 %v3176, 0.0
    %v3353 = vmax.f32 %v3179, 0.0
    %v3354 = vmax.f32 %v3184, 0.0
    %v3355 = vmax.f32 %v3187, 0.0
    %v3356 = vmax.f32 %v3192, 0.0
    %v3357 = vmax.f32 %v3195, 0.0
    %v3358 = vmax.f32 %v3200, 0.0
    %v3359 = vmax.f32 %v3203, 0.0
    %v3360 = vmax.f32 %v3208, 0.0
    %v3361 = vmax.f32 %v3211, 0.0
    %v3362 = vmax.f32 %v3216, 0.0
    %v3363 = vmax.f32 %v3219, 0.0
    %v3364 = vmax.f32 %v3224, 0.0
    %v3365 = vmax.f32 %v3227, 0.0
    %v3366 = vmax.f32 %v3232, 0.0
    %v3367 = vmax.f32 %v3235, 0.0
    %v3368 = vmax.f32 %v3240, 0.0
    %v3369 = vmax.f32 %v3243, 0.0
    %v3370 = vmax.f32 %v3248, 0.0
    %v3371 = vmax.f32 %v3251, 0.0
    %v3372 = vmax.f32 %v3256, 0.0
    %v3373 = vmax.f32 %v3259, 0.0
    %v3374 = vmax.f32 %v3264, 0.0
    %v3375 = vmax.f32 %v3267, 0.0
    %v3376 = vmax.f32 %v3272, 0.0
    %v3377 = vmax.f32 %v3275, 0.0
    %v3378 = vmax.f32 %v3280, 0.0
    %v3379 = vmax.f32 %v3283, 0.0
    %v3380 = vmax.f32 %v3288, 0.0
    %v3381 = vmax.f32 %v3291, 0.0
    %v3382 = vmax.f32 %v3296, 0.0
    %v3383 = vmax.f32 %v3299, 0.0
    %v3384 = vmax.f32 %v3304, 0.0
    %v3385 = vmax.f32 %v3307, 0.0
    %v3386 = vmax.f32 %v3312, 0.0
    %v3387 = vmax.f32 %v3315, 0.0
    %v3388 = vmax.f32 %v3320, 0.0
    %v3389 = vmax.f32 %v3323, 0.0
    %v3390 = vpack.c.bf16 %v3327, %v3326
    %v3391 = vpack.c.bf16 %v3329, %v3328
    %v3392 = vpack.c.bf16 %v3331, %v3330
    %v3393 = vpack.c.bf16 %v3333, %v3332
    %v3394 = vpack.c.bf16 %v3335, %v3334
    %v3395 = vpack.c.bf16 %v3337, %v3336
    %v3396 = vpack.c.bf16 %v3339, %v3338
    %v3397 = vpack.c.bf16 %v3341, %v3340
    %v3398 = vpack.c.bf16 %v3343, %v3342
    %v3399 = vpack.c.bf16 %v3345, %v3344
    %v3400 = vpack.c.bf16 %v3347, %v3346
    %v3401 = vpack.c.bf16 %v3349, %v3348
    %v3402 = vpack.c.bf16 %v3351, %v3350
    %v3403 = vpack.c.bf16 %v3353, %v3352
    %v3404 = vpack.c.bf16 %v3355, %v3354
    %v3405 = vpack.c.bf16 %v3357, %v3356
    %v3406 = vpack.c.bf16 %v3359, %v3358
    %v3407 = vpack.c.bf16 %v3361, %v3360
    %v3408 = vpack.c.bf16 %v3363, %v3362
    %v3409 = vpack.c.bf16 %v3365, %v3364
    %v3410 = vpack.c.bf16 %v3367, %v3366
    %v3411 = vpack.c.bf16 %v3369, %v3368
    %v3412 = vpack.c.bf16 %v3371, %v3370
    %v3413 = vpack.c.bf16 %v3373, %v3372
    %v3414 = vpack.c.bf16 %v3375, %v3374
    %v3415 = vpack.c.bf16 %v3377, %v3376
    %v3416 = vpack.c.bf16 %v3379, %v3378
    %v3417 = vpack.c.bf16 %v3381, %v3380
    %v3418 = vpack.c.bf16 %v3383, %v3382
    %v3419 = vpack.c.bf16 %v3385, %v3384
    %v3420 = vpack.c.bf16 %v3387, %v3386
    %v3421 = vpack.c.bf16 %v3389, %v3388
    %v3454 = vunpack.c.l.b16 %v3390
    %v3455 = vunpack.c.h.b16 %v3390
    %v3456 = vunpack.c.l.b16 %v3391
    %v3457 = vunpack.c.h.b16 %v3391
    %v3458 = vunpack.c.l.b16 %v3392
    %v3459 = vunpack.c.h.b16 %v3392
    %v3460 = vunpack.c.l.b16 %v3393
    %v3461 = vunpack.c.h.b16 %v3393
    %v3462 = vunpack.c.l.b16 %v3394
    %v3463 = vunpack.c.h.b16 %v3394
    %v3464 = vunpack.c.l.b16 %v3395
    %v3465 = vunpack.c.h.b16 %v3395
    %v3466 = vunpack.c.l.b16 %v3396
    %v3467 = vunpack.c.h.b16 %v3396
    %v3468 = vunpack.c.l.b16 %v3397
    %v3469 = vunpack.c.h.b16 %v3397
    %v3470 = vunpack.c.l.b16 %v3398
    %v3471 = vunpack.c.h.b16 %v3398
    %v3472 = vunpack.c.l.b16 %v3399
    %v3473 = vunpack.c.h.b16 %v3399
    %v3474 = vunpack.c.l.b16 %v3400
    %v3475 = vunpack.c.h.b16 %v3400
    %v3476 = vunpack.c.l.b16 %v3401
    %v3477 = vunpack.c.h.b16 %v3401
    %v3478 = vunpack.c.l.b16 %v3402
    %v3479 = vunpack.c.h.b16 %v3402
    %v3480 = vunpack.c.l.b16 %v3403
    %v3481 = vunpack.c.h.b16 %v3403
    %v3482 = vunpack.c.l.b16 %v3404
    %v3483 = vunpack.c.h.b16 %v3404
    %v3484 = vunpack.c.l.b16 %v3405
    %v3485 = vunpack.c.h.b16 %v3405
    %v3486 = vunpack.c.l.b16 %v3406
    %v3487 = vunpack.c.h.b16 %v3406
    %v3488 = vunpack.c.l.b16 %v3407
    %v3489 = vunpack.c.h.b16 %v3407
    %v3490 = vunpack.c.l.b16 %v3408
    %v3491 = vunpack.c.h.b16 %v3408
    %v3492 = vunpack.c.l.b16 %v3409
    %v3493 = vunpack.c.h.b16 %v3409
    %v3494 = vunpack.c.l.b16 %v3410
    %v3495 = vunpack.c.h.b16 %v3410
    %v3496 = vunpack.c.l.b16 %v3411
    %v3497 = vunpack.c.h.b16 %v3411
    %v3498 = vunpack.c.l.b16 %v3412
    %v3499 = vunpack.c.h.b16 %v3412
    %v3500 = vunpack.c.l.b16 %v3413
    %v3501 = vunpack.c.h.b16 %v3413
    %v3502 = vunpack.c.l.b16 %v3414
    %v3503 = vunpack.c.h.b16 %v3414
    %v3504 = vunpack.c.l.b16 %v3415
    %v3505 = vunpack.c.h.b16 %v3415
    %v3506 = vunpack.c.l.b16 %v3416
    %v3507 = vunpack.c.h.b16 %v3416
    %v3508 = vunpack.c.l.b16 %v3417
    %v3509 = vunpack.c.h.b16 %v3417
    %v3510 = vunpack.c.l.b16 %v3418
    %v3511 = vunpack.c.h.b16 %v3418
    %v3512 = vunpack.c.l.b16 %v3419
    %v3513 = vunpack.c.h.b16 %v3419
    %v3514 = vunpack.c.l.b16 %v3420
    %v3515 = vunpack.c.h.b16 %v3420
    %v3516 = vunpack.c.l.b16 %v3421
    %v3517 = vunpack.c.h.b16 %v3421
    %v3518 = vpack.c.b16 %v3454, %v3454
    %v3519 = vpack.c.b16 %v3455, %v3455
    %v3520 = vpack.c.b16 %v3456, %v3456
    %v3521 = vpack.c.b16 %v3457, %v3457
    %v3522 = vpack.c.b16 %v3458, %v3458
    %v3523 = vpack.c.b16 %v3459, %v3459
    %v3524 = vpack.c.b16 %v3460, %v3460
    %v3525 = vpack.c.b16 %v3461, %v3461
    %v3526 = vpack.c.b16 %v3462, %v3462
    %v3527 = vpack.c.b16 %v3463, %v3463
    %v3528 = vpack.c.b16 %v3464, %v3464
    %v3529 = vpack.c.b16 %v3465, %v3465
    %v3530 = vpack.c.b16 %v3466, %v3466
    %v3531 = vpack.c.b16 %v3467, %v3467
    %v3532 = vpack.c.b16 %v3468, %v3468
    %v3533 = vpack.c.b16 %v3469, %v3469
    %v3534 = vpack.c.b16 %v3470, %v3470
    %v3535 = vpack.c.b16 %v3471, %v3471
    %v3536 = vpack.c.b16 %v3472, %v3472
    %v3537 = vpack.c.b16 %v3473, %v3473
    %v3538 = vpack.c.b16 %v3474, %v3474
    %v3539 = vpack.c.b16 %v3475, %v3475
    %v3540 = vpack.c.b16 %v3476, %v3476
    %v3541 = vpack.c.b16 %v3477, %v3477
    %v3542 = vpack.c.b16 %v3478, %v3478
    %v3543 = vpack.c.b16 %v3479, %v3479
    %v3544 = vpack.c.b16 %v3480, %v3480
    %v3545 = vpack.c.b16 %v3481, %v3481
    %v3546 = vpack.c.b16 %v3482, %v3482
    %v3547 = vpack.c.b16 %v3483, %v3483
    %v3548 = vpack.c.b16 %v3484, %v3484
    %v3549 = vpack.c.b16 %v3485, %v3485
    %v3550 = vpack.c.b16 %v3486, %v3486
    %v3551 = vpack.c.b16 %v3487, %v3487
    %v3552 = vpack.c.b16 %v3488, %v3488
    %v3553 = vpack.c.b16 %v3489, %v3489
    %v3554 = vpack.c.b16 %v3490, %v3490
    %v3555 = vpack.c.b16 %v3491, %v3491
    %v3556 = vpack.c.b16 %v3492, %v3492
    %v3557 = vpack.c.b16 %v3493, %v3493
    %v3558 = vpack.c.b16 %v3494, %v3494
    %v3559 = vpack.c.b16 %v3495, %v3495
    %v3560 = vpack.c.b16 %v3496, %v3496
    %v3561 = vpack.c.b16 %v3497, %v3497
    %v3562 = vpack.c.b16 %v3498, %v3498
    %v3563 = vpack.c.b16 %v3499, %v3499
    %v3564 = vpack.c.b16 %v3500, %v3500
    %v3565 = vpack.c.b16 %v3501, %v3501
    %v3566 = vpack.c.b16 %v3502, %v3502
    %v3567 = vpack.c.b16 %v3503, %v3503
    %v3568 = vpack.c.b16 %v3504, %v3504
    %v3569 = vpack.c.b16 %v3505, %v3505
    %v3570 = vpack.c.b16 %v3506, %v3506
    %v3571 = vpack.c.b16 %v3507, %v3507
    %v3572 = vpack.c.b16 %v3508, %v3508
    %v3573 = vpack.c.b16 %v3509, %v3509
    %v3574 = vpack.c.b16 %v3510, %v3510
    %v3575 = vpack.c.b16 %v3511, %v3511
    %v3576 = vpack.c.b16 %v3512, %v3512
    %v3577 = vpack.c.b16 %v3513, %v3513
    %v3578 = vpack.c.b16 %v3514, %v3514
    %v3579 = vpack.c.b16 %v3515, %v3515
    %v3580 = vpack.c.b16 %v3516, %v3516
    %v3581 = vpack.c.b16 %v3517, %v3517
    %3646 = vst [vmem:[#allocation2 + $0x28] sm:$0xf] %v3518
    %3647 = vst [vmem:[#allocation2 + $0x2c] sm:$0xf] %v3519
    %3648 = vst [vmem:[#allocation2 + $0x30] sm:$0xf] %v3520
    %3649 = vst [vmem:[#allocation2 + $0x34] sm:$0xf] %v3521
    %3650 = vst [vmem:[#allocation2 + $0x38] sm:$0xf] %v3522
    %3651 = vst [vmem:[#allocation2 + $0x3c] sm:$0xf] %v3523
    %3652 = vst [vmem:[#allocation2 + $0x40] sm:$0xf] %v3524
    %3653 = vst [vmem:[#allocation2 + $0x44] sm:$0xf] %v3525
    %3654 = vst [vmem:[#allocation2 + $0x48] sm:$0xf] %v3526
    %3655 = vst [vmem:[#allocation2 + $0x4c] sm:$0xf] %v3527
    %3656 = vst [vmem:[#allocation2 + $0x50] sm:$0xf] %v3528
    %3657 = vst [vmem:[#allocation2 + $0x54] sm:$0xf] %v3529
    %3658 = vst [vmem:[#allocation2 + $0x58] sm:$0xf] %v3530
    %3659 = vst [vmem:[#allocation2 + $0x5c] sm:$0xf] %v3531
    %3660 = vst [vmem:[#allocation2 + $0x60] sm:$0xf] %v3532
    %3661 = vst [vmem:[#allocation2 + $0x64] sm:$0xf] %v3533
    %3662 = vst [vmem:[#allocation2 + $0x68] sm:$0xf] %v3534
    %3663 = vst [vmem:[#allocation2 + $0x6c] sm:$0xf] %v3535
    %3664 = vst [vmem:[#allocation2 + $0x70] sm:$0xf] %v3536
    %3665 = vst [vmem:[#allocation2 + $0x74] sm:$0xf] %v3537
    %3666 = vst [vmem:[#allocation2 + $0x78] sm:$0xf] %v3538
    %3667 = vst [vmem:[#allocation2 + $0x7c] sm:$0xf] %v3539
    %3668 = vst [vmem:[#allocation2 + $0x80] sm:$0xf] %v3540
    %3669 = vst [vmem:[#allocation2 + $0x84] sm:$0xf] %v3541
    %3670 = vst [vmem:[#allocation2 + $0x88] sm:$0xf] %v3542
    %3671 = vst [vmem:[#allocation2 + $0x8c] sm:$0xf] %v3543
    %3672 = vst [vmem:[#allocation2 + $0x90] sm:$0xf] %v3544
    %3673 = vst [vmem:[#allocation2 + $0x94] sm:$0xf] %v3545
    %3674 = vst [vmem:[#allocation2 + $0x98] sm:$0xf] %v3546
    %3675 = vst [vmem:[#allocation2 + $0x9c] sm:$0xf] %v3547
    %3676 = vst [vmem:[#allocation2 + $0xa0] sm:$0xf] %v3548
    %3677 = vst [vmem:[#allocation2 + $0xa4] sm:$0xf] %v3549
    %3678 = vst [vmem:[#allocation2 + $0xa8] sm:$0xf] %v3550
    %3679 = vst [vmem:[#allocation2 + $0xac] sm:$0xf] %v3551
    %3680 = vst [vmem:[#allocation2 + $0xb0] sm:$0xf] %v3552
    %3681 = vst [vmem:[#allocation2 + $0xb4] sm:$0xf] %v3553
    %3682 = vst [vmem:[#allocation2 + $0xb8] sm:$0xf] %v3554
    %3683 = vst [vmem:[#allocation2 + $0xbc] sm:$0xf] %v3555
    %3684 = vst [vmem:[#allocation2 + $0xc0] sm:$0xf] %v3556
    %3685 = vst [vmem:[#allocation2 + $0xc4] sm:$0xf] %v3557
    %3686 = vst [vmem:[#allocation2 + $0xc8] sm:$0xf] %v3558
    %3687 = vst [vmem:[#allocation2 + $0xcc] sm:$0xf] %v3559
    %3688 = vst [vmem:[#allocation2 + $0xd0] sm:$0xf] %v3560
    %3689 = vst [vmem:[#allocation2 + $0xd4] sm:$0xf] %v3561
    %3690 = vst [vmem:[#allocation2 + $0xd8] sm:$0xf] %v3562
    %3691 = vst [vmem:[#allocation2 + $0xdc] sm:$0xf] %v3563
    %3692 = vst [vmem:[#allocation2 + $0xe0] sm:$0xf] %v3564
    %3693 = vst [vmem:[#allocation2 + $0xe4] sm:$0xf] %v3565
    %3694 = vst [vmem:[#allocation2 + $0xe8] sm:$0xf] %v3566
    %3695 = vst [vmem:[#allocation2 + $0xec] sm:$0xf] %v3567
    %3696 = vst [vmem:[#allocation2 + $0xf0] sm:$0xf] %v3568
    %3697 = vst [vmem:[#allocation2 + $0xf4] sm:$0xf] %v3569
    %3698 = vst [vmem:[#allocation2 + $0xf8] sm:$0xf] %v3570
    %3699 = vst [vmem:[#allocation2 + $0xfc] sm:$0xf] %v3571
    %3700 = vst [vmem:[#allocation2 + $0x100] sm:$0xf] %v3572
    %3701 = vst [vmem:[#allocation2 + $0x104] sm:$0xf] %v3573
    %3702 = vst [vmem:[#allocation2 + $0x108] sm:$0xf] %v3574
    %3703 = vst [vmem:[#allocation2 + $0x10c] sm:$0xf] %v3575
    %3704 = vst [vmem:[#allocation2 + $0x110] sm:$0xf] %v3576
    %3705 = vst [vmem:[#allocation2 + $0x114] sm:$0xf] %v3577
    %3706 = vst [vmem:[#allocation2 + $0x118] sm:$0xf] %v3578
    %3707 = vst [vmem:[#allocation2 + $0x11c] sm:$0xf] %v3579
    %3708 = vst [vmem:[#allocation2 + $0x120] sm:$0xf] %v3580
    %3709 = vst [vmem:[#allocation2 + $0x124] sm:$0xf] %v3581
    %v3710 = vld [vmem:[#allocation2] sm:$0xf]
    %v3711 = vld [vmem:[#allocation2 + $0x4] sm:$0xf]
    %v3712 = vld [vmem:[#allocation2 + $0x8] sm:$0xf]
    %v3713 = vld [vmem:[#allocation2 + $0xc] sm:$0xf]
    %v3714 = vld [vmem:[#allocation2 + $0x10] sm:$0xf]
    %v3715 = vld [vmem:[#allocation2 + $0x14] sm:$0xf]
    %v3716 = vld [vmem:[#allocation2 + $0x18] sm:$0xf]
    %v3717 = vld [vmem:[#allocation2 + $0x1c] sm:$0xf]
    %v3718 = vld [vmem:[#allocation2 + $0x20] sm:$0xf]
    %v3719 = vld [vmem:[#allocation2 + $0x24] sm:$0xf]
    %v3720 = vld [vmem:[#allocation2 + $0x28] sm:$0xf]
    %v3721 = vld [vmem:[#allocation2 + $0x2c] sm:$0xf]
    %v3722 = vld [vmem:[#allocation2 + $0x30] sm:$0xf]
    %v3723 = vld [vmem:[#allocation2 + $0x34] sm:$0xf]
    %v3724 = vld [vmem:[#allocation2 + $0x38] sm:$0xf]
    %v3725 = vld [vmem:[#allocation2 + $0x3c] sm:$0xf]
    %v3726 = vld [vmem:[#allocation2 + $0x40] sm:$0xf]
    %v3727 = vld [vmem:[#allocation2 + $0x44] sm:$0xf]
    %v3728 = vld [vmem:[#allocation2 + $0x48] sm:$0xf]
    %v3729 = vld [vmem:[#allocation2 + $0x4c] sm:$0xf]
    %v3730 = vld [vmem:[#allocation2 + $0x50] sm:$0xf]
    %v3731 = vld [vmem:[#allocation2 + $0x54] sm:$0xf]
    %v3732 = vld [vmem:[#allocation2 + $0x58] sm:$0xf]
    %v3733 = vld [vmem:[#allocation2 + $0x5c] sm:$0xf]
    %v3734 = vld [vmem:[#allocation2 + $0x60] sm:$0xf]
    %v3735 = vld [vmem:[#allocation2 + $0x64] sm:$0xf]
    %v3736 = vld [vmem:[#allocation2 + $0x68] sm:$0xf]
    %v3737 = vld [vmem:[#allocation2 + $0x6c] sm:$0xf]
    %v3738 = vld [vmem:[#allocation2 + $0x70] sm:$0xf]
    %v3739 = vld [vmem:[#allocation2 + $0x74] sm:$0xf]
    %v3740 = vld [vmem:[#allocation2 + $0x78] sm:$0xf]
    %v3741 = vld [vmem:[#allocation2 + $0x7c] sm:$0xf]
    %v3742 = vld [vmem:[#allocation2 + $0x80] sm:$0xf]
    %v3743 = vld [vmem:[#allocation2 + $0x84] sm:$0xf]
    %v3744 = vld [vmem:[#allocation2 + $0x88] sm:$0xf]
    %v3745 = vld [vmem:[#allocation2 + $0x8c] sm:$0xf]
    %v3746 = vld [vmem:[#allocation2 + $0x90] sm:$0xf]
    %v3747 = vld [vmem:[#allocation2 + $0x94] sm:$0xf]
    %v3748 = vld [vmem:[#allocation2 + $0x98] sm:$0xf]
    %v3749 = vld [vmem:[#allocation2 + $0x9c] sm:$0xf]
    %v3750 = vld [vmem:[#allocation2 + $0xa0] sm:$0xf]
    %v3751 = vld [vmem:[#allocation2 + $0xa4] sm:$0xf]
    %v3752 = vld [vmem:[#allocation2 + $0xa8] sm:$0xf]
    %v3753 = vld [vmem:[#allocation2 + $0xac] sm:$0xf]
    %v3754 = vld [vmem:[#allocation2 + $0xb0] sm:$0xf]
    %v3755 = vld [vmem:[#allocation2 + $0xb4] sm:$0xf]
    %v3756 = vld [vmem:[#allocation2 + $0xb8] sm:$0xf]
    %v3757 = vld [vmem:[#allocation2 + $0xbc] sm:$0xf]
    %v3758 = vld [vmem:[#allocation2 + $0xc0] sm:$0xf]
    %v3759 = vld [vmem:[#allocation2 + $0xc4] sm:$0xf]
    %v3760 = vld [vmem:[#allocation2 + $0xc8] sm:$0xf]
    %v3761 = vld [vmem:[#allocation2 + $0xcc] sm:$0xf]
    %v3762 = vld [vmem:[#allocation2 + $0xd0] sm:$0xf]
    %v3763 = vld [vmem:[#allocation2 + $0xd4] sm:$0xf]
    %v3764 = vld [vmem:[#allocation2 + $0xd8] sm:$0xf]
    %v3765 = vld [vmem:[#allocation2 + $0xdc] sm:$0xf]
    %v3766 = vld [vmem:[#allocation2 + $0xe0] sm:$0xf]
    %v3767 = vld [vmem:[#allocation2 + $0xe4] sm:$0xf]
    %v3768 = vld [vmem:[#allocation2 + $0xe8] sm:$0xf]
    %v3769 = vld [vmem:[#allocation2 + $0xec] sm:$0xf]
    %v3770 = vld [vmem:[#allocation2 + $0xf0] sm:$0xf]
    %v3771 = vld [vmem:[#allocation2 + $0xf4] sm:$0xf]
    %v3772 = vld [vmem:[#allocation2 + $0xf8] sm:$0xf]
    %v3773 = vld [vmem:[#allocation2 + $0xfc] sm:$0xf]
    %v3774 = vld [vmem:[#allocation2 + $0x100] sm:$0xf]
    %v3775 = vld [vmem:[#allocation2 + $0x104] sm:$0xf]
    %v3776 = vld [vmem:[#allocation2 + $0x108] sm:$0xf]
    %v3777 = vld [vmem:[#allocation2 + $0x10c] sm:$0xf]
    %v3778 = vld [vmem:[#allocation2 + $0x110] sm:$0xf]
    %v3779 = vld [vmem:[#allocation2 + $0x114] sm:$0xf]
    %v3780 = vld [vmem:[#allocation2 + $0x118] sm:$0xf]
    %v3781 = vld [vmem:[#allocation2 + $0x11c] sm:$0xf]
    %v3782 = vld [vmem:[#allocation2 + $0x120] sm:$0xf]
    %v3783 = vld [vmem:[#allocation2 + $0x124] sm:$0xf]
    %v3784 = vld [vmem:[%s3] sm:$0xff]
    %v3785 = vld [vmem:[%s3 + $0x8] sm:$0xff]
    %v3786 = vld [vmem:[%s3 + $0x10] sm:$0xf]
    %v3787 = vld [vmem:[%s3 + $0x14] sm:$0xff]
    %v3788 = vld [vmem:[%s3 + $0x1c] sm:$0xff]
    %v3789 = vld [vmem:[%s3 + $0x24] sm:$0xf]
    %v3790 = vld [vmem:[%s3 + $0x28] sm:$0xff]
    %v3791 = vld [vmem:[%s3 + $0x30] sm:$0xff]
    %v3792 = vld [vmem:[%s3 + $0x38] sm:$0xf]
    %v3793 = vld [vmem:[%s3 + $0x3c] sm:$0xff]
    %v3794 = vld [vmem:[%s3 + $0x44] sm:$0xff]
    %v3795 = vld [vmem:[%s3 + $0x4c] sm:$0xf]
    %v3796 = vld [vmem:[%s3 + $0x50] sm:$0xff]
    %v3797 = vld [vmem:[%s3 + $0x58] sm:$0xff]
    %v3798 = vld [vmem:[%s3 + $0x60] sm:$0xf]
    %v3799 = vld [vmem:[%s3 + $0x64] sm:$0xff]
    %v3800 = vld [vmem:[%s3 + $0x6c] sm:$0xff]
    %v3801 = vld [vmem:[%s3 + $0x74] sm:$0xf]
    %v3802 = vld [vmem:[%s3 + $0x78] sm:$0xff]
    %v3803 = vld [vmem:[%s3 + $0x80] sm:$0xff]
    %v3804 = vld [vmem:[%s3 + $0x88] sm:$0xf]
    %v3805 = vld [vmem:[%s3 + $0x8c] sm:$0xff]
    %v3806 = vld [vmem:[%s3 + $0x94] sm:$0xff]
    %v3807 = vld [vmem:[%s3 + $0x9c] sm:$0xf]
    %v3808 = vld [vmem:[%s3 + $0xa0] sm:$0xff]
    %v3809 = vld [vmem:[%s3 + $0xa8] sm:$0xff]
    %v3810 = vld [vmem:[%s3 + $0xb0] sm:$0xf]
    %v3811 = vld [vmem:[%s3 + $0xb4] sm:$0xff]
    %v3812 = vld [vmem:[%s3 + $0xbc] sm:$0xff]
    %v3813 = vld [vmem:[%s3 + $0xc4] sm:$0xf]
    %v3814 = vld [vmem:[%s3 + $0xc8] sm:$0xff]
    %v3815 = vld [vmem:[%s3 + $0xd0] sm:$0xff]
    %v3816 = vld [vmem:[%s3 + $0xd8] sm:$0xf]
    %v3817 = vld [vmem:[%s3 + $0xdc] sm:$0xff]
    %v3818 = vld [vmem:[%s3 + $0xe4] sm:$0xff]
    %v3819 = vld [vmem:[%s3 + $0xec] sm:$0xf]
    %v3820 = vld [vmem:[%s3 + $0xf0] sm:$0xff]
    %v3821 = vld [vmem:[%s3 + $0xf8] sm:$0xff]
    %v3822 = vld [vmem:[%s3 + $0x100] sm:$0xf]
    %v3823 = vld [vmem:[%s3 + $0x104] sm:$0xff]
    %v3824 = vld [vmem:[%s3 + $0x10c] sm:$0xff]
    %v3825 = vld [vmem:[%s3 + $0x114] sm:$0xf]
    %v3826 = vld [vmem:[%s3 + $0x118] sm:$0xff]
    %v3827 = vld [vmem:[%s3 + $0x120] sm:$0xff]
    %v3828 = vld [vmem:[%s3 + $0x128] sm:$0xf]
    %v3829 = vld [vmem:[%s3 + $0x12c] sm:$0xff]
    %v3830 = vld [vmem:[%s3 + $0x134] sm:$0xff]
    %v3831 = vld [vmem:[%s3 + $0x13c] sm:$0xf]
    %v3832 = vld [vmem:[%s3 + $0x140] sm:$0xff]
    %v3833 = vld [vmem:[%s3 + $0x148] sm:$0xff]
    %v3834 = vld [vmem:[%s3 + $0x150] sm:$0xf]
    %v3835 = vld [vmem:[%s3 + $0x154] sm:$0xff]
    %v3836 = vld [vmem:[%s3 + $0x15c] sm:$0xff]
    %v3837 = vld [vmem:[%s3 + $0x164] sm:$0xf]
    %v3838 = vld [vmem:[%s3 + $0x168] sm:$0xff]
    %v3839 = vld [vmem:[%s3 + $0x170] sm:$0xff]
    %v3840 = vld [vmem:[%s3 + $0x178] sm:$0xf]
    %v3841 = vld [vmem:[%s3 + $0x17c] sm:$0xff]
    %v3842 = vld [vmem:[%s3 + $0x184] sm:$0xff]
    %v3843 = vld [vmem:[%s3 + $0x18c] sm:$0xf]
    %v3844 = vld [vmem:[%s3 + $0x190] sm:$0xff]
    %v3845 = vld [vmem:[%s3 + $0x198] sm:$0xff]
    %v3846 = vld [vmem:[%s3 + $0x1a0] sm:$0xf]
    %v3847 = vld [vmem:[%s3 + $0x1a4] sm:$0xff]
    %v3848 = vld [vmem:[%s3 + $0x1ac] sm:$0xff]
    %v3849 = vld [vmem:[%s3 + $0x1b4] sm:$0xf]
    %v3850 = vld [vmem:[%s3 + $0x1b8] sm:$0xff]
    %v3851 = vld [vmem:[%s3 + $0x1c0] sm:$0xff]
    %v3852 = vld [vmem:[%s3 + $0x1c8] sm:$0xf]
    %v3853 = vld [vmem:[%s3 + $0x1cc] sm:$0xff]
    %v3854 = vld [vmem:[%s3 + $0x1d4] sm:$0xff]
    %v3855 = vld [vmem:[%s3 + $0x1dc] sm:$0xf]
    %v3856 = vld [vmem:[%s3 + $0x1e0] sm:$0xff]
    %v3857 = vld [vmem:[%s3 + $0x1e8] sm:$0xff]
    %v3858 = vld [vmem:[%s3 + $0x1f0] sm:$0xf]
    %v3859 = vld [vmem:[%s3 + $0x1f4] sm:$0xff]
    %v3860 = vld [vmem:[%s3 + $0x1fc] sm:$0xff]
    %v3861 = vld [vmem:[%s3 + $0x204] sm:$0xf]
    %v3862 = vld [vmem:[%s3 + $0x208] sm:$0xff]
    %v3863 = vld [vmem:[%s3 + $0x210] sm:$0xff]
    %v3864 = vld [vmem:[%s3 + $0x218] sm:$0xf]
    %v3865 = vld [vmem:[%s3 + $0x21c] sm:$0xff]
    %v3866 = vld [vmem:[%s3 + $0x224] sm:$0xff]
    %v3867 = vld [vmem:[%s3 + $0x22c] sm:$0xf]
    %v3868 = vld [vmem:[%s3 + $0x230] sm:$0xff]
    %v3869 = vld [vmem:[%s3 + $0x238] sm:$0xff]
    %v3870 = vld [vmem:[%s3 + $0x240] sm:$0xf]
    %v3871 = vld [vmem:[%s3 + $0x244] sm:$0xff]
    %v3872 = vld [vmem:[%s3 + $0x24c] sm:$0xff]
    %v3873 = vld [vmem:[%s3 + $0x254] sm:$0xf]
    %v3874 = vld [vmem:[%s3 + $0x258] sm:$0xff]
    %v3875 = vld [vmem:[%s3 + $0x260] sm:$0xff]
    %v3876 = vld [vmem:[%s3 + $0x268] sm:$0xf]
    %v3877 = vld [vmem:[%s3 + $0x26c] sm:$0xff]
    %v3878 = vld [vmem:[%s3 + $0x274] sm:$0xff]
    %v3879 = vld [vmem:[%s3 + $0x27c] sm:$0xf]
    %v3976 = vunpack.c.l.b16 %v3784
    %v3977 = vunpack.c.h.b16 %v3784
    %v3978 = vunpack.c.l.b16 %v3785
    %v3979 = vunpack.c.h.b16 %v3785
    %v3980 = vunpack.c.l.b16 %v3786
    %v3981 = vunpack.c.l.b16 %v3787
    %v3982 = vunpack.c.h.b16 %v3787
    %v3983 = vunpack.c.l.b16 %v3788
    %v3984 = vunpack.c.h.b16 %v3788
    %v3985 = vunpack.c.l.b16 %v3789
    %v3986 = vunpack.c.l.b16 %v3790
    %v3987 = vunpack.c.h.b16 %v3790
    %v3988 = vunpack.c.l.b16 %v3791
    %v3989 = vunpack.c.h.b16 %v3791
    %v3990 = vunpack.c.l.b16 %v3792
    %v3991 = vunpack.c.l.b16 %v3793
    %v3992 = vunpack.c.h.b16 %v3793
    %v3993 = vunpack.c.l.b16 %v3794
    %v3994 = vunpack.c.h.b16 %v3794
    %v3995 = vunpack.c.l.b16 %v3795
    %v3996 = vunpack.c.l.b16 %v3796
    %v3997 = vunpack.c.h.b16 %v3796
    %v3998 = vunpack.c.l.b16 %v3797
    %v3999 = vunpack.c.h.b16 %v3797
    %v4000 = vunpack.c.l.b16 %v3798
    %v4001 = vunpack.c.l.b16 %v3799
    %v4002 = vunpack.c.h.b16 %v3799
    %v4003 = vunpack.c.l.b16 %v3800
    %v4004 = vunpack.c.h.b16 %v3800
    %v4005 = vunpack.c.l.b16 %v3801
    %v4006 = vunpack.c.l.b16 %v3802
    %v4007 = vunpack.c.h.b16 %v3802
    %v4008 = vunpack.c.l.b16 %v3803
    %v4009 = vunpack.c.h.b16 %v3803
    %v4010 = vunpack.c.l.b16 %v3804
    %v4011 = vunpack.c.l.b16 %v3805
    %v4012 = vunpack.c.h.b16 %v3805
    %v4013 = vunpack.c.l.b16 %v3806
    %v4014 = vunpack.c.h.b16 %v3806
    %v4015 = vunpack.c.l.b16 %v3807
    %v4016 = vunpack.c.l.b16 %v3808
    %v4017 = vunpack.c.h.b16 %v3808
    %v4018 = vunpack.c.l.b16 %v3809
    %v4019 = vunpack.c.h.b16 %v3809
    %v4020 = vunpack.c.l.b16 %v3810
    %v4021 = vunpack.c.l.b16 %v3811
    %v4022 = vunpack.c.h.b16 %v3811
    %v4023 = vunpack.c.l.b16 %v3812
    %v4024 = vunpack.c.h.b16 %v3812
    %v4025 = vunpack.c.l.b16 %v3813
    %v4026 = vunpack.c.l.b16 %v3814
    %v4027 = vunpack.c.h.b16 %v3814
    %v4028 = vunpack.c.l.b16 %v3815
    %v4029 = vunpack.c.h.b16 %v3815
    %v4030 = vunpack.c.l.b16 %v3816
    %v4031 = vunpack.c.l.b16 %v3817
    %v4032 = vunpack.c.h.b16 %v3817
    %v4033 = vunpack.c.l.b16 %v3818
    %v4034 = vunpack.c.h.b16 %v3818
    %v4035 = vunpack.c.l.b16 %v3819
    %v4036 = vunpack.c.l.b16 %v3820
    %v4037 = vunpack.c.h.b16 %v3820
    %v4038 = vunpack.c.l.b16 %v3821
    %v4039 = vunpack.c.h.b16 %v3821
    %v4040 = vunpack.c.l.b16 %v3822
    %v4041 = vunpack.c.l.b16 %v3823
    %v4042 = vunpack.c.h.b16 %v3823
    %v4043 = vunpack.c.l.b16 %v3824
    %v4044 = vunpack.c.h.b16 %v3824
    %v4045 = vunpack.c.l.b16 %v3825
    %v4046 = vunpack.c.l.b16 %v3826
    %v4047 = vunpack.c.h.b16 %v3826
    %v4048 = vunpack.c.l.b16 %v3827
    %v4049 = vunpack.c.h.b16 %v3827
    %v4050 = vunpack.c.l.b16 %v3828
    %v4051 = vunpack.c.l.b16 %v3829
    %v4052 = vunpack.c.h.b16 %v3829
    %v4053 = vunpack.c.l.b16 %v3830
    %v4054 = vunpack.c.h.b16 %v3830
    %v4055 = vunpack.c.l.b16 %v3831
    %v4056 = vunpack.c.l.b16 %v3832
    %v4057 = vunpack.c.h.b16 %v3832
    %v4058 = vunpack.c.l.b16 %v3833
    %v4059 = vunpack.c.h.b16 %v3833
    %v4060 = vunpack.c.l.b16 %v3834
    %v4061 = vunpack.c.l.b16 %v3835
    %v4062 = vunpack.c.h.b16 %v3835
    %v4063 = vunpack.c.l.b16 %v3836
    %v4064 = vunpack.c.h.b16 %v3836
    %v4065 = vunpack.c.l.b16 %v3837
    %v4066 = vunpack.c.l.b16 %v3838
    %v4067 = vunpack.c.h.b16 %v3838
    %v4068 = vunpack.c.l.b16 %v3839
    %v4069 = vunpack.c.h.b16 %v3839
    %v4070 = vunpack.c.l.b16 %v3840
    %v4071 = vunpack.c.l.b16 %v3841
    %v4072 = vunpack.c.h.b16 %v3841
    %v4073 = vunpack.c.l.b16 %v3842
    %v4074 = vunpack.c.h.b16 %v3842
    %v4075 = vunpack.c.l.b16 %v3843
    %v4076 = vunpack.c.l.b16 %v3844
    %v4077 = vunpack.c.h.b16 %v3844
    %v4078 = vunpack.c.l.b16 %v3845
    %v4079 = vunpack.c.h.b16 %v3845
    %v4080 = vunpack.c.l.b16 %v3846
    %v4081 = vunpack.c.l.b16 %v3847
    %v4082 = vunpack.c.h.b16 %v3847
    %v4083 = vunpack.c.l.b16 %v3848
    %v4084 = vunpack.c.h.b16 %v3848
    %v4085 = vunpack.c.l.b16 %v3849
    %v4086 = vunpack.c.l.b16 %v3850
    %v4087 = vunpack.c.h.b16 %v3850
    %v4088 = vunpack.c.l.b16 %v3851
    %v4089 = vunpack.c.h.b16 %v3851
    %v4090 = vunpack.c.l.b16 %v3852
    %v4091 = vunpack.c.l.b16 %v3853
    %v4092 = vunpack.c.h.b16 %v3853
    %v4093 = vunpack.c.l.b16 %v3854
    %v4094 = vunpack.c.h.b16 %v3854
    %v4095 = vunpack.c.l.b16 %v3855
    %v4096 = vunpack.c.l.b16 %v3856
    %v4097 = vunpack.c.h.b16 %v3856
    %v4098 = vunpack.c.l.b16 %v3857
    %v4099 = vunpack.c.h.b16 %v3857
    %v4100 = vunpack.c.l.b16 %v3858
    %v4101 = vunpack.c.l.b16 %v3859
    %v4102 = vunpack.c.h.b16 %v3859
    %v4103 = vunpack.c.l.b16 %v3860
    %v4104 = vunpack.c.h.b16 %v3860
    %v4105 = vunpack.c.l.b16 %v3861
    %v4106 = vunpack.c.l.b16 %v3862
    %v4107 = vunpack.c.h.b16 %v3862
    %v4108 = vunpack.c.l.b16 %v3863
    %v4109 = vunpack.c.h.b16 %v3863
    %v4110 = vunpack.c.l.b16 %v3864
    %v4111 = vunpack.c.l.b16 %v3865
    %v4112 = vunpack.c.h.b16 %v3865
    %v4113 = vunpack.c.l.b16 %v3866
    %v4114 = vunpack.c.h.b16 %v3866
    %v4115 = vunpack.c.l.b16 %v3867
    %v4116 = vunpack.c.l.b16 %v3868
    %v4117 = vunpack.c.h.b16 %v3868
    %v4118 = vunpack.c.l.b16 %v3869
    %v4119 = vunpack.c.h.b16 %v3869
    %v4120 = vunpack.c.l.b16 %v3870
    %v4121 = vunpack.c.l.b16 %v3871
    %v4122 = vunpack.c.h.b16 %v3871
    %v4123 = vunpack.c.l.b16 %v3872
    %v4124 = vunpack.c.h.b16 %v3872
    %v4125 = vunpack.c.l.b16 %v3873
    %v4126 = vunpack.c.l.b16 %v3874
    %v4127 = vunpack.c.h.b16 %v3874
    %v4128 = vunpack.c.l.b16 %v3875
    %v4129 = vunpack.c.h.b16 %v3875
    %v4130 = vunpack.c.l.b16 %v3876
    %v4131 = vunpack.c.l.b16 %v3877
    %v4132 = vunpack.c.h.b16 %v3877
    %v4133 = vunpack.c.l.b16 %v3878
    %v4134 = vunpack.c.h.b16 %v3878
    %v4135 = vunpack.c.l.b16 %v3879
    %v4136 = vpack.c.b16 %v3981, %v3976
    %v4137 = vpack.c.b16 %v3982, %v3977
    %v4138 = vpack.c.b16 %v3983, %v3978
    %v4139 = vpack.c.b16 %v3984, %v3979
    %v4140 = vpack.c.b16 %v3985, %v3980
    %v4141 = vpack.c.b16 %v3991, %v3986
    %v4142 = vpack.c.b16 %v3992, %v3987
    %v4143 = vpack.c.b16 %v3993, %v3988
    %v4144 = vpack.c.b16 %v3994, %v3989
    %v4145 = vpack.c.b16 %v3995, %v3990
    %v4146 = vpack.c.b16 %v4001, %v3996
    %v4147 = vpack.c.b16 %v4002, %v3997
    %v4148 = vpack.c.b16 %v4003, %v3998
    %v4149 = vpack.c.b16 %v4004, %v3999
    %v4150 = vpack.c.b16 %v4005, %v4000
    %v4151 = vpack.c.b16 %v4011, %v4006
    %v4152 = vpack.c.b16 %v4012, %v4007
    %v4153 = vpack.c.b16 %v4013, %v4008
    %v4154 = vpack.c.b16 %v4014, %v4009
    %v4155 = vpack.c.b16 %v4015, %v4010
    %v4156 = vpack.c.b16 %v4021, %v4016
    %v4157 = vpack.c.b16 %v4022, %v4017
    %v4158 = vpack.c.b16 %v4023, %v4018
    %v4159 = vpack.c.b16 %v4024, %v4019
    %v4160 = vpack.c.b16 %v4025, %v4020
    %v4161 = vpack.c.b16 %v4031, %v4026
    %v4162 = vpack.c.b16 %v4032, %v4027
    %v4163 = vpack.c.b16 %v4033, %v4028
    %v4164 = vpack.c.b16 %v4034, %v4029
    %v4165 = vpack.c.b16 %v4035, %v4030
    %v4166 = vpack.c.b16 %v4041, %v4036
    %v4167 = vpack.c.b16 %v4042, %v4037
    %v4168 = vpack.c.b16 %v4043, %v4038
    %v4169 = vpack.c.b16 %v4044, %v4039
    %v4170 = vpack.c.b16 %v4045, %v4040
    %v4171 = vpack.c.b16 %v4051, %v4046
    %v4172 = vpack.c.b16 %v4052, %v4047
    %v4173 = vpack.c.b16 %v4053, %v4048
    %v4174 = vpack.c.b16 %v4054, %v4049
    %v4175 = vpack.c.b16 %v4055, %v4050
    %v4176 = vpack.c.b16 %v4061, %v4056
    %v4177 = vpack.c.b16 %v4062, %v4057
    %v4178 = vpack.c.b16 %v4063, %v4058
    %v4179 = vpack.c.b16 %v4064, %v4059
    %v4180 = vpack.c.b16 %v4065, %v4060
    %v4181 = vpack.c.b16 %v4071, %v4066
    %v4182 = vpack.c.b16 %v4072, %v4067
    %v4183 = vpack.c.b16 %v4073, %v4068
    %v4184 = vpack.c.b16 %v4074, %v4069
    %v4185 = vpack.c.b16 %v4075, %v4070
    %v4186 = vpack.c.b16 %v4081, %v4076
    %v4187 = vpack.c.b16 %v4082, %v4077
    %v4188 = vpack.c.b16 %v4083, %v4078
    %v4189 = vpack.c.b16 %v4084, %v4079
    %v4190 = vpack.c.b16 %v4085, %v4080
    %v4191 = vpack.c.b16 %v4091, %v4086
    %v4192 = vpack.c.b16 %v4092, %v4087
    %v4193 = vpack.c.b16 %v4093, %v4088
    %v4194 = vpack.c.b16 %v4094, %v4089
    %v4195 = vpack.c.b16 %v4095, %v4090
    %v4196 = vpack.c.b16 %v4101, %v4096
    %v4197 = vpack.c.b16 %v4102, %v4097
    %v4198 = vpack.c.b16 %v4103, %v4098
    %v4199 = vpack.c.b16 %v4104, %v4099
    %v4200 = vpack.c.b16 %v4105, %v4100
    %v4201 = vpack.c.b16 %v4111, %v4106
    %v4202 = vpack.c.b16 %v4112, %v4107
    %v4203 = vpack.c.b16 %v4113, %v4108
    %v4204 = vpack.c.b16 %v4114, %v4109
    %v4205 = vpack.c.b16 %v4115, %v4110
    %v4206 = vpack.c.b16 %v4121, %v4116
    %v4207 = vpack.c.b16 %v4122, %v4117
    %v4208 = vpack.c.b16 %v4123, %v4118
    %v4209 = vpack.c.b16 %v4124, %v4119
    %v4210 = vpack.c.b16 %v4125, %v4120
    %v4211 = vpack.c.b16 %v4131, %v4126
    %v4212 = vpack.c.b16 %v4132, %v4127
    %v4213 = vpack.c.b16 %v4133, %v4128
    %v4214 = vpack.c.b16 %v4134, %v4129
    %v4215 = vpack.c.b16 %v4135, %v4130
    %v4354 = vunpack.c.l.b16 %v3710
    %v4355 = vunpack.c.l.b16 %v3711
    %v4356 = vunpack.c.l.b16 %v3712
    %v4357 = vunpack.c.l.b16 %v3713
    %v4358 = vunpack.c.l.b16 %v3714
    %v4359 = vunpack.c.l.b16 %v3715
    %v4360 = vunpack.c.l.b16 %v3716
    %v4361 = vunpack.c.l.b16 %v3717
    %v4362 = vunpack.c.l.b16 %v3718
    %v4363 = vunpack.c.l.b16 %v3719
    %v4364 = vunpack.c.l.b16 %v3720
    %v4365 = vunpack.c.l.b16 %v3721
    %v4366 = vunpack.c.l.b16 %v3722
    %v4367 = vunpack.c.l.b16 %v3723
    %v4368 = vunpack.c.l.b16 %v3724
    %v4369 = vunpack.c.l.b16 %v3725
    %v4370 = vunpack.c.l.b16 %v3726
    %v4371 = vunpack.c.l.b16 %v3727
    %v4372 = vunpack.c.l.b16 %v3728
    %v4373 = vunpack.c.l.b16 %v3729
    %v4374 = vunpack.c.l.b16 %v3730
    %v4375 = vunpack.c.l.b16 %v3731
    %v4376 = vunpack.c.l.b16 %v3732
    %v4377 = vunpack.c.l.b16 %v3733
    %v4378 = vunpack.c.l.b16 %v3734
    %v4379 = vunpack.c.l.b16 %v3735
    %v4380 = vunpack.c.l.b16 %v3736
    %v4381 = vunpack.c.l.b16 %v3737
    %v4382 = vunpack.c.l.b16 %v3738
    %v4383 = vunpack.c.l.b16 %v3739
    %v4384 = vunpack.c.l.b16 %v3740
    %v4385 = vunpack.c.l.b16 %v3741
    %v4386 = vunpack.c.l.b16 %v3742
    %v4387 = vunpack.c.l.b16 %v3743
    %v4388 = vunpack.c.l.b16 %v3744
    %v4389 = vunpack.c.l.b16 %v3745
    %v4390 = vunpack.c.l.b16 %v3746
    %v4391 = vunpack.c.l.b16 %v3747
    %v4392 = vunpack.c.l.b16 %v3748
    %v4393 = vunpack.c.l.b16 %v3749
    %v4394 = vunpack.c.l.b16 %v3750
    %v4395 = vunpack.c.l.b16 %v3751
    %v4396 = vunpack.c.l.b16 %v3752
    %v4397 = vunpack.c.l.b16 %v3753
    %v4398 = vunpack.c.l.b16 %v3754
    %v4399 = vunpack.c.l.b16 %v3755
    %v4400 = vunpack.c.l.b16 %v3756
    %v4401 = vunpack.c.l.b16 %v3757
    %v4402 = vunpack.c.l.b16 %v3758
    %v4403 = vunpack.c.l.b16 %v3759
    %v4404 = vunpack.c.l.b16 %v3760
    %v4405 = vunpack.c.l.b16 %v3761
    %v4406 = vunpack.c.l.b16 %v3762
    %v4407 = vunpack.c.l.b16 %v3763
    %v4408 = vunpack.c.l.b16 %v3764
    %v4409 = vunpack.c.l.b16 %v3765
    %v4410 = vunpack.c.l.b16 %v3766
    %v4411 = vunpack.c.l.b16 %v3767
    %v4412 = vunpack.c.l.b16 %v3768
    %v4413 = vunpack.c.l.b16 %v3769
    %v4414 = vunpack.c.l.b16 %v3770
    %v4415 = vunpack.c.l.b16 %v3771
    %v4416 = vunpack.c.l.b16 %v3772
    %v4417 = vunpack.c.l.b16 %v3773
    %v4418 = vunpack.c.l.b16 %v3774
    %v4419 = vunpack.c.l.b16 %v3775
    %v4420 = vunpack.c.l.b16 %v3776
    %v4421 = vunpack.c.l.b16 %v3777
    %v4422 = vunpack.c.l.b16 %v3778
    %v4423 = vunpack.c.l.b16 %v3779
    %v4424 = vunpack.c.l.b16 %v3780
    %v4425 = vunpack.c.l.b16 %v3781
    %v4426 = vunpack.c.l.b16 %v3782
    %v4427 = vunpack.c.l.b16 %v3783
    %v4428 = vpack.c.b16 %v4355, %v4354
    %v4429 = vpack.c.b16 %v4357, %v4356
    %v4430 = vpack.c.b16 %v4359, %v4358
    %v4431 = vpack.c.b16 %v4361, %v4360
    %v4432 = vpack.c.b16 %v4363, %v4362
    %v4433 = vpack.c.b16 %v4365, %v4364
    %v4434 = vpack.c.b16 %v4367, %v4366
    %v4435 = vpack.c.b16 %v4369, %v4368
    %v4436 = vpack.c.b16 %v4371, %v4370
    %v4437 = vpack.c.b16 %v4373, %v4372
    %v4438 = vpack.c.b16 %v4375, %v4374
    %v4439 = vpack.c.b16 %v4377, %v4376
    %v4440 = vpack.c.b16 %v4379, %v4378
    %v4441 = vpack.c.b16 %v4381, %v4380
    %v4442 = vpack.c.b16 %v4383, %v4382
    %v4443 = vpack.c.b16 %v4385, %v4384
    %v4444 = vpack.c.b16 %v4387, %v4386
    %v4445 = vpack.c.b16 %v4389, %v4388
    %v4446 = vpack.c.b16 %v4391, %v4390
    %v4447 = vpack.c.b16 %v4393, %v4392
    %v4448 = vpack.c.b16 %v4395, %v4394
    %v4449 = vpack.c.b16 %v4397, %v4396
    %v4450 = vpack.c.b16 %v4399, %v4398
    %v4451 = vpack.c.b16 %v4401, %v4400
    %v4452 = vpack.c.b16 %v4403, %v4402
    %v4453 = vpack.c.b16 %v4405, %v4404
    %v4454 = vpack.c.b16 %v4407, %v4406
    %v4455 = vpack.c.b16 %v4409, %v4408
    %v4456 = vpack.c.b16 %v4411, %v4410
    %v4457 = vpack.c.b16 %v4413, %v4412
    %v4458 = vpack.c.b16 %v4415, %v4414
    %v4459 = vpack.c.b16 %v4417, %v4416
    %v4460 = vpack.c.b16 %v4419, %v4418
    %v4461 = vpack.c.b16 %v4421, %v4420
    %v4462 = vpack.c.b16 %v4423, %v4422
    %v4463 = vpack.c.b16 %v4425, %v4424
    %v4464 = vpack.c.b16 %v4427, %v4426
    %v4503 = vsel %vm305, %v4140, 0
    %v4506 = vsel %vm305, %v4145, 0
    %v4509 = vsel %vm305, %v4150, 0
    %v4512 = vsel %vm305, %v4155, 0
    %v4515 = vsel %vm305, %v4160, 0
    %v4518 = vsel %vm305, %v4165, 0
    %v4521 = vsel %vm305, %v4170, 0
    %v4524 = vsel %vm305, %v4175, 0
    %v4527 = vsel %vm305, %v4180, 0
    %v4530 = vsel %vm305, %v4185, 0
    %v4533 = vsel %vm305, %v4190, 0
    %v4536 = vsel %vm305, %v4195, 0
    %v4539 = vsel %vm305, %v4200, 0
    %v4542 = vsel %vm305, %v4205, 0
    %v4545 = vsel %vm305, %v4210, 0
    %v4548 = vsel %vm305, %v4215, 0
    %4550 = vmatprep.subr.bf16.mxu0 0
    %4551 = vmatpush1.bf16.msra.mxu0 %v4435
    %4552 = vmatprep.subr.bf16.mxu0 0
    %4553 = vmatpush1.bf16.msra.mxu0 %v4434
    %4554 = vmatprep.subr.bf16.mxu0 0
    %4555 = vmatpush1.bf16.msra.mxu0 %v4433
    %4556 = vmatprep.subr.bf16.mxu0 0
    %4557 = vmatpush1.bf16.msra.mxu0 %v4432
    %4558 = vmatprep.subr.bf16.mxu0 0
    %4559 = vmatpush1.bf16.msra.mxu0 %v4431
    %4560 = vmatprep.subr.bf16.mxu0 0
    %4561 = vmatpush1.bf16.msra.mxu0 %v4430
    %4562 = vmatprep.subr.bf16.mxu0 0
    %4563 = vmatpush1.bf16.msra.mxu0 %v4429
    %4564 = vmatprep.subr.bf16.mxu0 0
    %4565 = vmatpush1.bf16.msra.mxu0 %v4428
    %4566 = vmatprep.subr.bf16.mxu0 0
    %4567 = vmatpush2.bf16.msra.mxu0 %v4443
    %4568 = vmatprep.subr.bf16.mxu0 0
    %4569 = vmatpush2.bf16.msra.mxu0 %v4442
    %4570 = vmatprep.subr.bf16.mxu0 0
    %4571 = vmatpush2.bf16.msra.mxu0 %v4441
    %4572 = vmatprep.subr.bf16.mxu0 0
    %4573 = vmatpush2.bf16.msra.mxu0 %v4440
    %4574 = vmatprep.subr.bf16.mxu0 0
    %4575 = vmatpush2.bf16.msra.mxu0 %v4439
    %4576 = vmatprep.subr.bf16.mxu0 0
    %4577 = vmatpush2.bf16.msra.mxu0 %v4438
    %4578 = vmatprep.subr.bf16.mxu0 0
    %4579 = vmatpush2.bf16.msra.mxu0 %v4437
    %4580 = vmatprep.subr.bf16.mxu0 0
    %4581 = vmatpush2.bf16.msra.mxu0 %v4436
    %4582 = vmatprep.mubr.bf16.mxu0 %v4137
    %4583 = vmatmul.mubr.bf16.gmra.mxu0 %v4136
    %v4584 = vpop.f32.mrf.mxu0
    %v4585 = vadd.f32 0.0, %v4584
    %v4586 = vpop.f32.mrf.mxu0
    %v4587 = vpop.f32.mrf.mxu0
    %v4588 = vadd.f32 0.0, %v4587
    %v4589 = vpop.f32.mrf.mxu0
    %4590 = vmatprep.mubr.bf16.mxu0 %v4142
    %4591 = vmatmul.mubr.bf16.gmra.mxu0 %v4141
    %v4592 = vpop.f32.mrf.mxu0
    %v4593 = vadd.f32 0.0, %v4592
    %v4594 = vpop.f32.mrf.mxu0
    %v4595 = vpop.f32.mrf.mxu0
    %v4596 = vadd.f32 0.0, %v4595
    %v4597 = vpop.f32.mrf.mxu0
    %4598 = vmatprep.mubr.bf16.mxu0 %v4147
    %4599 = vmatmul.mubr.bf16.gmra.mxu0 %v4146
    %v4600 = vpop.f32.mrf.mxu0
    %v4601 = vadd.f32 0.0, %v4600
    %v4602 = vpop.f32.mrf.mxu0
    %v4603 = vpop.f32.mrf.mxu0
    %v4604 = vadd.f32 0.0, %v4603
    %v4605 = vpop.f32.mrf.mxu0
    %4606 = vmatprep.mubr.bf16.mxu0 %v4152
    %4607 = vmatmul.mubr.bf16.gmra.mxu0 %v4151
    %v4608 = vpop.f32.mrf.mxu0
    %v4609 = vadd.f32 0.0, %v4608
    %v4610 = vpop.f32.mrf.mxu0
    %v4611 = vpop.f32.mrf.mxu0
    %v4612 = vadd.f32 0.0, %v4611
    %v4613 = vpop.f32.mrf.mxu0
    %4614 = vmatprep.mubr.bf16.mxu0 %v4157
    %4615 = vmatmul.mubr.bf16.gmra.mxu0 %v4156
    %v4616 = vpop.f32.mrf.mxu0
    %v4617 = vadd.f32 0.0, %v4616
    %v4618 = vpop.f32.mrf.mxu0
    %v4619 = vpop.f32.mrf.mxu0
    %v4620 = vadd.f32 0.0, %v4619
    %v4621 = vpop.f32.mrf.mxu0
    %4622 = vmatprep.mubr.bf16.mxu0 %v4162
    %4623 = vmatmul.mubr.bf16.gmra.mxu0 %v4161
    %v4624 = vpop.f32.mrf.mxu0
    %v4625 = vadd.f32 0.0, %v4624
    %v4626 = vpop.f32.mrf.mxu0
    %v4627 = vpop.f32.mrf.mxu0
    %v4628 = vadd.f32 0.0, %v4627
    %v4629 = vpop.f32.mrf.mxu0
    %4630 = vmatprep.mubr.bf16.mxu0 %v4167
    %4631 = vmatmul.mubr.bf16.gmra.mxu0 %v4166
    %v4632 = vpop.f32.mrf.mxu0
    %v4633 = vadd.f32 0.0, %v4632
    %v4634 = vpop.f32.mrf.mxu0
    %v4635 = vpop.f32.mrf.mxu0
    %v4636 = vadd.f32 0.0, %v4635
    %v4637 = vpop.f32.mrf.mxu0
    %4638 = vmatprep.mubr.bf16.mxu0 %v4172
    %4639 = vmatmul.mubr.bf16.gmra.mxu0 %v4171
    %v4640 = vpop.f32.mrf.mxu0
    %v4641 = vadd.f32 0.0, %v4640
    %v4642 = vpop.f32.mrf.mxu0
    %v4643 = vpop.f32.mrf.mxu0
    %v4644 = vadd.f32 0.0, %v4643
    %v4645 = vpop.f32.mrf.mxu0
    %4646 = vmatprep.mubr.bf16.mxu0 %v4177
    %4647 = vmatmul.mubr.bf16.gmra.mxu0 %v4176
    %v4648 = vpop.f32.mrf.mxu0
    %v4649 = vadd.f32 0.0, %v4648
    %v4650 = vpop.f32.mrf.mxu0
    %v4651 = vpop.f32.mrf.mxu0
    %v4652 = vadd.f32 0.0, %v4651
    %v4653 = vpop.f32.mrf.mxu0
    %4654 = vmatprep.mubr.bf16.mxu0 %v4182
    %4655 = vmatmul.mubr.bf16.gmra.mxu0 %v4181
    %v4656 = vpop.f32.mrf.mxu0
    %v4657 = vadd.f32 0.0, %v4656
    %v4658 = vpop.f32.mrf.mxu0
    %v4659 = vpop.f32.mrf.mxu0
    %v4660 = vadd.f32 0.0, %v4659
    %v4661 = vpop.f32.mrf.mxu0
    %4662 = vmatprep.mubr.bf16.mxu0 %v4187
    %4663 = vmatmul.mubr.bf16.gmra.mxu0 %v4186
    %v4664 = vpop.f32.mrf.mxu0
    %v4665 = vadd.f32 0.0, %v4664
    %v4666 = vpop.f32.mrf.mxu0
    %v4667 = vpop.f32.mrf.mxu0
    %v4668 = vadd.f32 0.0, %v4667
    %v4669 = vpop.f32.mrf.mxu0
    %4670 = vmatprep.mubr.bf16.mxu0 %v4192
    %4671 = vmatmul.mubr.bf16.gmra.mxu0 %v4191
    %v4672 = vpop.f32.mrf.mxu0
    %v4673 = vadd.f32 0.0, %v4672
    %v4674 = vpop.f32.mrf.mxu0
    %v4675 = vpop.f32.mrf.mxu0
    %v4676 = vadd.f32 0.0, %v4675
    %v4677 = vpop.f32.mrf.mxu0
    %4678 = vmatprep.mubr.bf16.mxu0 %v4197
    %4679 = vmatmul.mubr.bf16.gmra.mxu0 %v4196
    %v4680 = vpop.f32.mrf.mxu0
    %v4681 = vadd.f32 0.0, %v4680
    %v4682 = vpop.f32.mrf.mxu0
    %v4683 = vpop.f32.mrf.mxu0
    %v4684 = vadd.f32 0.0, %v4683
    %v4685 = vpop.f32.mrf.mxu0
    %4686 = vmatprep.mubr.bf16.mxu0 %v4202
    %4687 = vmatmul.mubr.bf16.gmra.mxu0 %v4201
    %v4688 = vpop.f32.mrf.mxu0
    %v4689 = vadd.f32 0.0, %v4688
    %v4690 = vpop.f32.mrf.mxu0
    %v4691 = vpop.f32.mrf.mxu0
    %v4692 = vadd.f32 0.0, %v4691
    %v4693 = vpop.f32.mrf.mxu0
    %4694 = vmatprep.mubr.bf16.mxu0 %v4207
    %4695 = vmatmul.mubr.bf16.gmra.mxu0 %v4206
    %v4696 = vpop.f32.mrf.mxu0
    %v4697 = vadd.f32 0.0, %v4696
    %v4698 = vpop.f32.mrf.mxu0
    %v4699 = vpop.f32.mrf.mxu0
    %v4700 = vadd.f32 0.0, %v4699
    %v4701 = vpop.f32.mrf.mxu0
    %4702 = vmatprep.mubr.bf16.mxu0 %v4212
    %4703 = vmatmul.mubr.bf16.gmra.mxu0 %v4211
    %v4704 = vpop.f32.mrf.mxu0
    %v4705 = vadd.f32 0.0, %v4704
    %v4706 = vpop.f32.mrf.mxu0
    %v4707 = vpop.f32.mrf.mxu0
    %v4708 = vadd.f32 0.0, %v4707
    %v4709 = vpop.f32.mrf.mxu0
    %4710 = vdwg.mxu0
    %4711 = vmatprep.subr.bf16.mxu0 0
    %4712 = vmatpush1.bf16.msra.mxu0 %v4451
    %4713 = vmatprep.subr.bf16.mxu0 0
    %4714 = vmatpush1.bf16.msra.mxu0 %v4450
    %4715 = vmatprep.subr.bf16.mxu0 0
    %4716 = vmatpush1.bf16.msra.mxu0 %v4449
    %4717 = vmatprep.subr.bf16.mxu0 0
    %4718 = vmatpush1.bf16.msra.mxu0 %v4448
    %4719 = vmatprep.subr.bf16.mxu0 0
    %4720 = vmatpush1.bf16.msra.mxu0 %v4447
    %4721 = vmatprep.subr.bf16.mxu0 0
    %4722 = vmatpush1.bf16.msra.mxu0 %v4446
    %4723 = vmatprep.subr.bf16.mxu0 0
    %4724 = vmatpush1.bf16.msra.mxu0 %v4445
    %4725 = vmatprep.subr.bf16.mxu0 0
    %4726 = vmatpush1.bf16.msra.mxu0 %v4444
    %4727 = vmatprep.subr.bf16.mxu0 0
    %4728 = vmatpush2.bf16.msra.mxu0 %v4459
    %4729 = vmatprep.subr.bf16.mxu0 0
    %4730 = vmatpush2.bf16.msra.mxu0 %v4458
    %4731 = vmatprep.subr.bf16.mxu0 0
    %4732 = vmatpush2.bf16.msra.mxu0 %v4457
    %4733 = vmatprep.subr.bf16.mxu0 0
    %4734 = vmatpush2.bf16.msra.mxu0 %v4456
    %4735 = vmatprep.subr.bf16.mxu0 0
    %4736 = vmatpush2.bf16.msra.mxu0 %v4455
    %4737 = vmatprep.subr.bf16.mxu0 0
    %4738 = vmatpush2.bf16.msra.mxu0 %v4454
    %4739 = vmatprep.subr.bf16.mxu0 0
    %4740 = vmatpush2.bf16.msra.mxu0 %v4453
    %4741 = vmatprep.subr.bf16.mxu0 0
    %4742 = vmatpush2.bf16.msra.mxu0 %v4452
    %4743 = vmatprep.mubr.bf16.mxu0 %v4139
    %4744 = vmatmul.mubr.bf16.gmra.mxu0 %v4138
    %v4745 = vpop.f32.mrf.mxu0
    %v4746 = vadd.f32 %v4585, %v4745
    %v4747 = vpop.f32.mrf.mxu0
    %v4748 = vpop.f32.mrf.mxu0
    %v4749 = vadd.f32 %v4588, %v4748
    %v4750 = vpop.f32.mrf.mxu0
    %4751 = vmatprep.mubr.bf16.mxu0 %v4144
    %4752 = vmatmul.mubr.bf16.gmra.mxu0 %v4143
    %v4753 = vpop.f32.mrf.mxu0
    %v4754 = vadd.f32 %v4593, %v4753
    %v4755 = vpop.f32.mrf.mxu0
    %v4756 = vpop.f32.mrf.mxu0
    %v4757 = vadd.f32 %v4596, %v4756
    %v4758 = vpop.f32.mrf.mxu0
    %4759 = vmatprep.mubr.bf16.mxu0 %v4149
    %4760 = vmatmul.mubr.bf16.gmra.mxu0 %v4148
    %v4761 = vpop.f32.mrf.mxu0
    %v4762 = vadd.f32 %v4601, %v4761
    %v4763 = vpop.f32.mrf.mxu0
    %v4764 = vpop.f32.mrf.mxu0
    %v4765 = vadd.f32 %v4604, %v4764
    %v4766 = vpop.f32.mrf.mxu0
    %4767 = vmatprep.mubr.bf16.mxu0 %v4154
    %4768 = vmatmul.mubr.bf16.gmra.mxu0 %v4153
    %v4769 = vpop.f32.mrf.mxu0
    %v4770 = vadd.f32 %v4609, %v4769
    %v4771 = vpop.f32.mrf.mxu0
    %v4772 = vpop.f32.mrf.mxu0
    %v4773 = vadd.f32 %v4612, %v4772
    %v4774 = vpop.f32.mrf.mxu0
    %4775 = vmatprep.mubr.bf16.mxu0 %v4159
    %4776 = vmatmul.mubr.bf16.gmra.mxu0 %v4158
    %v4777 = vpop.f32.mrf.mxu0
    %v4778 = vadd.f32 %v4617, %v4777
    %v4779 = vpop.f32.mrf.mxu0
    %v4780 = vpop.f32.mrf.mxu0
    %v4781 = vadd.f32 %v4620, %v4780
    %v4782 = vpop.f32.mrf.mxu0
    %4783 = vmatprep.mubr.bf16.mxu0 %v4164
    %4784 = vmatmul.mubr.bf16.gmra.mxu0 %v4163
    %v4785 = vpop.f32.mrf.mxu0
    %v4786 = vadd.f32 %v4625, %v4785
    %v4787 = vpop.f32.mrf.mxu0
    %v4788 = vpop.f32.mrf.mxu0
    %v4789 = vadd.f32 %v4628, %v4788
    %v4790 = vpop.f32.mrf.mxu0
    %4791 = vmatprep.mubr.bf16.mxu0 %v4169
    %4792 = vmatmul.mubr.bf16.gmra.mxu0 %v4168
    %v4793 = vpop.f32.mrf.mxu0
    %v4794 = vadd.f32 %v4633, %v4793
    %v4795 = vpop.f32.mrf.mxu0
    %v4796 = vpop.f32.mrf.mxu0
    %v4797 = vadd.f32 %v4636, %v4796
    %v4798 = vpop.f32.mrf.mxu0
    %4799 = vmatprep.mubr.bf16.mxu0 %v4174
    %4800 = vmatmul.mubr.bf16.gmra.mxu0 %v4173
    %v4801 = vpop.f32.mrf.mxu0
    %v4802 = vadd.f32 %v4641, %v4801
    %v4803 = vpop.f32.mrf.mxu0
    %v4804 = vpop.f32.mrf.mxu0
    %v4805 = vadd.f32 %v4644, %v4804
    %v4806 = vpop.f32.mrf.mxu0
    %4807 = vmatprep.mubr.bf16.mxu0 %v4179
    %4808 = vmatmul.mubr.bf16.gmra.mxu0 %v4178
    %v4809 = vpop.f32.mrf.mxu0
    %v4810 = vadd.f32 %v4649, %v4809
    %v4811 = vpop.f32.mrf.mxu0
    %v4812 = vpop.f32.mrf.mxu0
    %v4813 = vadd.f32 %v4652, %v4812
    %v4814 = vpop.f32.mrf.mxu0
    %4815 = vmatprep.mubr.bf16.mxu0 %v4184
    %4816 = vmatmul.mubr.bf16.gmra.mxu0 %v4183
    %v4817 = vpop.f32.mrf.mxu0
    %v4818 = vadd.f32 %v4657, %v4817
    %v4819 = vpop.f32.mrf.mxu0
    %v4820 = vpop.f32.mrf.mxu0
    %v4821 = vadd.f32 %v4660, %v4820
    %v4822 = vpop.f32.mrf.mxu0
    %4823 = vmatprep.mubr.bf16.mxu0 %v4189
    %4824 = vmatmul.mubr.bf16.gmra.mxu0 %v4188
    %v4825 = vpop.f32.mrf.mxu0
    %v4826 = vadd.f32 %v4665, %v4825
    %v4827 = vpop.f32.mrf.mxu0
    %v4828 = vpop.f32.mrf.mxu0
    %v4829 = vadd.f32 %v4668, %v4828
    %v4830 = vpop.f32.mrf.mxu0
    %4831 = vmatprep.mubr.bf16.mxu0 %v4194
    %4832 = vmatmul.mubr.bf16.gmra.mxu0 %v4193
    %v4833 = vpop.f32.mrf.mxu0
    %v4834 = vadd.f32 %v4673, %v4833
    %v4835 = vpop.f32.mrf.mxu0
    %v4836 = vpop.f32.mrf.mxu0
    %v4837 = vadd.f32 %v4676, %v4836
    %v4838 = vpop.f32.mrf.mxu0
    %4839 = vmatprep.mubr.bf16.mxu0 %v4199
    %4840 = vmatmul.mubr.bf16.gmra.mxu0 %v4198
    %v4841 = vpop.f32.mrf.mxu0
    %v4842 = vadd.f32 %v4681, %v4841
    %v4843 = vpop.f32.mrf.mxu0
    %v4844 = vpop.f32.mrf.mxu0
    %v4845 = vadd.f32 %v4684, %v4844
    %v4846 = vpop.f32.mrf.mxu0
    %4847 = vmatprep.mubr.bf16.mxu0 %v4204
    %4848 = vmatmul.mubr.bf16.gmra.mxu0 %v4203
    %v4849 = vpop.f32.mrf.mxu0
    %v4850 = vadd.f32 %v4689, %v4849
    %v4851 = vpop.f32.mrf.mxu0
    %v4852 = vpop.f32.mrf.mxu0
    %v4853 = vadd.f32 %v4692, %v4852
    %v4854 = vpop.f32.mrf.mxu0
    %4855 = vmatprep.mubr.bf16.mxu0 %v4209
    %4856 = vmatmul.mubr.bf16.gmra.mxu0 %v4208
    %v4857 = vpop.f32.mrf.mxu0
    %v4858 = vadd.f32 %v4697, %v4857
    %v4859 = vpop.f32.mrf.mxu0
    %v4860 = vpop.f32.mrf.mxu0
    %v4861 = vadd.f32 %v4700, %v4860
    %v4862 = vpop.f32.mrf.mxu0
    %4863 = vmatprep.mubr.bf16.mxu0 %v4214
    %4864 = vmatmul.mubr.bf16.gmra.mxu0 %v4213
    %v4865 = vpop.f32.mrf.mxu0
    %v4866 = vadd.f32 %v4705, %v4865
    %v4867 = vpop.f32.mrf.mxu0
    %v4868 = vpop.f32.mrf.mxu0
    %v4869 = vadd.f32 %v4708, %v4868
    %v4870 = vpop.f32.mrf.mxu0
    %4871 = vdwg.mxu0
    %4872 = vmatprep.subr.bf16.mxu0 0
    %4873 = vmatpush1.bf16.msra.mxu0 0
    %4874 = vmatprep.subr.bf16.mxu0 0
    %4875 = vmatpush1.bf16.msra.mxu0 0
    %4876 = vmatprep.subr.bf16.mxu0 0
    %4877 = vmatpush1.bf16.msra.mxu0 0
    %4878 = vmatprep.subr.bf16.mxu0 0
    %4879 = vmatpush1.bf16.msra.mxu0 %v4464
    %4880 = vmatprep.subr.bf16.mxu0 0
    %4881 = vmatpush1.bf16.msra.mxu0 %v4463
    %4882 = vmatprep.subr.bf16.mxu0 0
    %4883 = vmatpush1.bf16.msra.mxu0 %v4462
    %4884 = vmatprep.subr.bf16.mxu0 0
    %4885 = vmatpush1.bf16.msra.mxu0 %v4461
    %4886 = vmatprep.subr.bf16.mxu0 0
    %4887 = vmatpush1.bf16.msra.mxu0 %v4460
    %4888 = vmatprep.subr.bf16.mxu0 0
    %4889 = vmatpush2.bf16.msra.mxu0 0
    %4890 = vmatprep.subr.bf16.mxu0 0
    %4891 = vmatpush2.bf16.msra.mxu0 0
    %4892 = vmatprep.subr.bf16.mxu0 0
    %4893 = vmatpush2.bf16.msra.mxu0 0
    %4894 = vmatprep.subr.bf16.mxu0 0
    %4895 = vmatpush2.bf16.msra.mxu0 0
    %4896 = vmatprep.subr.bf16.mxu0 0
    %4897 = vmatpush2.bf16.msra.mxu0 0
    %4898 = vmatprep.subr.bf16.mxu0 0
    %4899 = vmatpush2.bf16.msra.mxu0 0
    %4900 = vmatprep.subr.bf16.mxu0 0
    %4901 = vmatpush2.bf16.msra.mxu0 0
    %4902 = vmatprep.subr.bf16.mxu0 0
    %4903 = vmatpush2.bf16.msra.mxu0 0
    %4904 = vmatprep.mubr.bf16.mxu0 0
    %4905 = vmatmul.mubr.bf16.gmra.mxu0 %v4503
    %v4906 = vpop.f32.mrf.mxu0
    %v4907 = vadd.f32 %v4746, %v4906
    %v4908 = vpop.f32.mrf.mxu0
    %v4909 = vpop.f32.mrf.mxu0
    %v4910 = vadd.f32 %v4749, %v4909
    %v4911 = vpop.f32.mrf.mxu0
    %4912 = vmatprep.mubr.bf16.mxu0 0
    %4913 = vmatmul.mubr.bf16.gmra.mxu0 %v4506
    %v4914 = vpop.f32.mrf.mxu0
    %v4915 = vadd.f32 %v4754, %v4914
    %v4916 = vpop.f32.mrf.mxu0
    %v4917 = vpop.f32.mrf.mxu0
    %v4918 = vadd.f32 %v4757, %v4917
    %v4919 = vpop.f32.mrf.mxu0
    %4920 = vmatprep.mubr.bf16.mxu0 0
    %4921 = vmatmul.mubr.bf16.gmra.mxu0 %v4509
    %v4922 = vpop.f32.mrf.mxu0
    %v4923 = vadd.f32 %v4762, %v4922
    %v4924 = vpop.f32.mrf.mxu0
    %v4925 = vpop.f32.mrf.mxu0
    %v4926 = vadd.f32 %v4765, %v4925
    %v4927 = vpop.f32.mrf.mxu0
    %4928 = vmatprep.mubr.bf16.mxu0 0
    %4929 = vmatmul.mubr.bf16.gmra.mxu0 %v4512
    %v4930 = vpop.f32.mrf.mxu0
    %v4931 = vadd.f32 %v4770, %v4930
    %v4932 = vpop.f32.mrf.mxu0
    %v4933 = vpop.f32.mrf.mxu0
    %v4934 = vadd.f32 %v4773, %v4933
    %v4935 = vpop.f32.mrf.mxu0
    %4936 = vmatprep.mubr.bf16.mxu0 0
    %4937 = vmatmul.mubr.bf16.gmra.mxu0 %v4515
    %v4938 = vpop.f32.mrf.mxu0
    %v4939 = vadd.f32 %v4778, %v4938
    %v4940 = vpop.f32.mrf.mxu0
    %v4941 = vpop.f32.mrf.mxu0
    %v4942 = vadd.f32 %v4781, %v4941
    %v4943 = vpop.f32.mrf.mxu0
    %4944 = vmatprep.mubr.bf16.mxu0 0
    %4945 = vmatmul.mubr.bf16.gmra.mxu0 %v4518
    %v4946 = vpop.f32.mrf.mxu0
    %v4947 = vadd.f32 %v4786, %v4946
    %v4948 = vpop.f32.mrf.mxu0
    %v4949 = vpop.f32.mrf.mxu0
    %v4950 = vadd.f32 %v4789, %v4949
    %v4951 = vpop.f32.mrf.mxu0
    %4952 = vmatprep.mubr.bf16.mxu0 0
    %4953 = vmatmul.mubr.bf16.gmra.mxu0 %v4521
    %v4954 = vpop.f32.mrf.mxu0
    %v4955 = vadd.f32 %v4794, %v4954
    %v4956 = vpop.f32.mrf.mxu0
    %v4957 = vpop.f32.mrf.mxu0
    %v4958 = vadd.f32 %v4797, %v4957
    %v4959 = vpop.f32.mrf.mxu0
    %4960 = vmatprep.mubr.bf16.mxu0 0
    %4961 = vmatmul.mubr.bf16.gmra.mxu0 %v4524
    %v4962 = vpop.f32.mrf.mxu0
    %v4963 = vadd.f32 %v4802, %v4962
    %v4964 = vpop.f32.mrf.mxu0
    %v4965 = vpop.f32.mrf.mxu0
    %v4966 = vadd.f32 %v4805, %v4965
    %v4967 = vpop.f32.mrf.mxu0
    %4968 = vmatprep.mubr.bf16.mxu0 0
    %4969 = vmatmul.mubr.bf16.gmra.mxu0 %v4527
    %v4970 = vpop.f32.mrf.mxu0
    %v4971 = vadd.f32 %v4810, %v4970
    %v4972 = vpop.f32.mrf.mxu0
    %v4973 = vpop.f32.mrf.mxu0
    %v4974 = vadd.f32 %v4813, %v4973
    %v4975 = vpop.f32.mrf.mxu0
    %4976 = vmatprep.mubr.bf16.mxu0 0
    %4977 = vmatmul.mubr.bf16.gmra.mxu0 %v4530
    %v4978 = vpop.f32.mrf.mxu0
    %v4979 = vadd.f32 %v4818, %v4978
    %v4980 = vpop.f32.mrf.mxu0
    %v4981 = vpop.f32.mrf.mxu0
    %v4982 = vadd.f32 %v4821, %v4981
    %v4983 = vpop.f32.mrf.mxu0
    %4984 = vmatprep.mubr.bf16.mxu0 0
    %4985 = vmatmul.mubr.bf16.gmra.mxu0 %v4533
    %v4986 = vpop.f32.mrf.mxu0
    %v4987 = vadd.f32 %v4826, %v4986
    %v4988 = vpop.f32.mrf.mxu0
    %v4989 = vpop.f32.mrf.mxu0
    %v4990 = vadd.f32 %v4829, %v4989
    %v4991 = vpop.f32.mrf.mxu0
    %4992 = vmatprep.mubr.bf16.mxu0 0
    %4993 = vmatmul.mubr.bf16.gmra.mxu0 %v4536
    %v4994 = vpop.f32.mrf.mxu0
    %v4995 = vadd.f32 %v4834, %v4994
    %v4996 = vpop.f32.mrf.mxu0
    %v4997 = vpop.f32.mrf.mxu0
    %v4998 = vadd.f32 %v4837, %v4997
    %v4999 = vpop.f32.mrf.mxu0
    %5000 = vmatprep.mubr.bf16.mxu0 0
    %5001 = vmatmul.mubr.bf16.gmra.mxu0 %v4539
    %v5002 = vpop.f32.mrf.mxu0
    %v5003 = vadd.f32 %v4842, %v5002
    %v5004 = vpop.f32.mrf.mxu0
    %v5005 = vpop.f32.mrf.mxu0
    %v5006 = vadd.f32 %v4845, %v5005
    %v5007 = vpop.f32.mrf.mxu0
    %5008 = vmatprep.mubr.bf16.mxu0 0
    %5009 = vmatmul.mubr.bf16.gmra.mxu0 %v4542
    %v5010 = vpop.f32.mrf.mxu0
    %v5011 = vadd.f32 %v4850, %v5010
    %v5012 = vpop.f32.mrf.mxu0
    %v5013 = vpop.f32.mrf.mxu0
    %v5014 = vadd.f32 %v4853, %v5013
    %v5015 = vpop.f32.mrf.mxu0
    %5016 = vmatprep.mubr.bf16.mxu0 0
    %5017 = vmatmul.mubr.bf16.gmra.mxu0 %v4545
    %v5018 = vpop.f32.mrf.mxu0
    %v5019 = vadd.f32 %v4858, %v5018
    %v5020 = vpop.f32.mrf.mxu0
    %v5021 = vpop.f32.mrf.mxu0
    %v5022 = vadd.f32 %v4861, %v5021
    %v5023 = vpop.f32.mrf.mxu0
    %5024 = vmatprep.mubr.bf16.mxu0 0
    %5025 = vmatmul.mubr.bf16.gmra.mxu0 %v4548
    %v5026 = vpop.f32.mrf.mxu0
    %v5027 = vadd.f32 %v4866, %v5026
    %v5028 = vpop.f32.mrf.mxu0
    %v5029 = vpop.f32.mrf.mxu0
    %v5030 = vadd.f32 %v4869, %v5029
    %v5031 = vpop.f32.mrf.mxu0
    %5032 = vdwg.mxu0
    %v5033 = vmax.f32 %v4907, 0.0
    %v5034 = vmax.f32 %v4910, 0.0
    %v5035 = vmax.f32 %v4915, 0.0
    %v5036 = vmax.f32 %v4918, 0.0
    %v5037 = vmax.f32 %v4923, 0.0
    %v5038 = vmax.f32 %v4926, 0.0
    %v5039 = vmax.f32 %v4931, 0.0
    %v5040 = vmax.f32 %v4934, 0.0
    %v5041 = vmax.f32 %v4939, 0.0
    %v5042 = vmax.f32 %v4942, 0.0
    %v5043 = vmax.f32 %v4947, 0.0
    %v5044 = vmax.f32 %v4950, 0.0
    %v5045 = vmax.f32 %v4955, 0.0
    %v5046 = vmax.f32 %v4958, 0.0
    %v5047 = vmax.f32 %v4963, 0.0
    %v5048 = vmax.f32 %v4966, 0.0
    %v5049 = vmax.f32 %v4971, 0.0
    %v5050 = vmax.f32 %v4974, 0.0
    %v5051 = vmax.f32 %v4979, 0.0
    %v5052 = vmax.f32 %v4982, 0.0
    %v5053 = vmax.f32 %v4987, 0.0
    %v5054 = vmax.f32 %v4990, 0.0
    %v5055 = vmax.f32 %v4995, 0.0
    %v5056 = vmax.f32 %v4998, 0.0
    %v5057 = vmax.f32 %v5003, 0.0
    %v5058 = vmax.f32 %v5006, 0.0
    %v5059 = vmax.f32 %v5011, 0.0
    %v5060 = vmax.f32 %v5014, 0.0
    %v5061 = vmax.f32 %v5019, 0.0
    %v5062 = vmax.f32 %v5022, 0.0
    %v5063 = vmax.f32 %v5027, 0.0
    %v5064 = vmax.f32 %v5030, 0.0
    %v5065 = vpack.c.bf16 %v5034, %v5033
    %v5066 = vpack.c.bf16 %v5036, %v5035
    %v5067 = vpack.c.bf16 %v5038, %v5037
    %v5068 = vpack.c.bf16 %v5040, %v5039
    %v5069 = vpack.c.bf16 %v5042, %v5041
    %v5070 = vpack.c.bf16 %v5044, %v5043
    %v5071 = vpack.c.bf16 %v5046, %v5045
    %v5072 = vpack.c.bf16 %v5048, %v5047
    %v5073 = vpack.c.bf16 %v5050, %v5049
    %v5074 = vpack.c.bf16 %v5052, %v5051
    %v5075 = vpack.c.bf16 %v5054, %v5053
    %v5076 = vpack.c.bf16 %v5056, %v5055
    %v5077 = vpack.c.bf16 %v5058, %v5057
    %v5078 = vpack.c.bf16 %v5060, %v5059
    %v5079 = vpack.c.bf16 %v5062, %v5061
    %v5080 = vpack.c.bf16 %v5064, %v5063
    %v5097 = vunpack.c.l.b16 %v5065
    %v5098 = vunpack.c.h.b16 %v5065
    %v5099 = vunpack.c.l.b16 %v5066
    %v5100 = vunpack.c.h.b16 %v5066
    %v5101 = vunpack.c.l.b16 %v5067
    %v5102 = vunpack.c.h.b16 %v5067
    %v5103 = vunpack.c.l.b16 %v5068
    %v5104 = vunpack.c.h.b16 %v5068
    %v5105 = vunpack.c.l.b16 %v5069
    %v5106 = vunpack.c.h.b16 %v5069
    %v5107 = vunpack.c.l.b16 %v5070
    %v5108 = vunpack.c.h.b16 %v5070
    %v5109 = vunpack.c.l.b16 %v5071
    %v5110 = vunpack.c.h.b16 %v5071
    %v5111 = vunpack.c.l.b16 %v5072
    %v5112 = vunpack.c.h.b16 %v5072
    %v5113 = vunpack.c.l.b16 %v5073
    %v5114 = vunpack.c.h.b16 %v5073
    %v5115 = vunpack.c.l.b16 %v5074
    %v5116 = vunpack.c.h.b16 %v5074
    %v5117 = vunpack.c.l.b16 %v5075
    %v5118 = vunpack.c.h.b16 %v5075
    %v5119 = vunpack.c.l.b16 %v5076
    %v5120 = vunpack.c.h.b16 %v5076
    %v5121 = vunpack.c.l.b16 %v5077
    %v5122 = vunpack.c.h.b16 %v5077
    %v5123 = vunpack.c.l.b16 %v5078
    %v5124 = vunpack.c.h.b16 %v5078
    %v5125 = vunpack.c.l.b16 %v5079
    %v5126 = vunpack.c.h.b16 %v5079
    %v5127 = vunpack.c.l.b16 %v5080
    %v5128 = vunpack.c.h.b16 %v5080
    %v5129 = vpack.c.b16 %v5097, %v5097
    %v5130 = vpack.c.b16 %v5098, %v5098
    %v5131 = vpack.c.b16 %v5099, %v5099
    %v5132 = vpack.c.b16 %v5100, %v5100
    %v5133 = vpack.c.b16 %v5101, %v5101
    %v5134 = vpack.c.b16 %v5102, %v5102
    %v5135 = vpack.c.b16 %v5103, %v5103
    %v5136 = vpack.c.b16 %v5104, %v5104
    %v5137 = vpack.c.b16 %v5105, %v5105
    %v5138 = vpack.c.b16 %v5106, %v5106
    %v5139 = vpack.c.b16 %v5107, %v5107
    %v5140 = vpack.c.b16 %v5108, %v5108
    %v5141 = vpack.c.b16 %v5109, %v5109
    %v5142 = vpack.c.b16 %v5110, %v5110
    %v5143 = vpack.c.b16 %v5111, %v5111
    %v5144 = vpack.c.b16 %v5112, %v5112
    %v5145 = vpack.c.b16 %v5113, %v5113
    %v5146 = vpack.c.b16 %v5114, %v5114
    %v5147 = vpack.c.b16 %v5115, %v5115
    %v5148 = vpack.c.b16 %v5116, %v5116
    %v5149 = vpack.c.b16 %v5117, %v5117
    %v5150 = vpack.c.b16 %v5118, %v5118
    %v5151 = vpack.c.b16 %v5119, %v5119
    %v5152 = vpack.c.b16 %v5120, %v5120
    %v5153 = vpack.c.b16 %v5121, %v5121
    %v5154 = vpack.c.b16 %v5122, %v5122
    %v5155 = vpack.c.b16 %v5123, %v5123
    %v5156 = vpack.c.b16 %v5124, %v5124
    %v5157 = vpack.c.b16 %v5125, %v5125
    %v5158 = vpack.c.b16 %v5126, %v5126
    %v5159 = vpack.c.b16 %v5127, %v5127
    %v5160 = vpack.c.b16 %v5128, %v5128
    %5193 = vst [vmem:[#allocation2 + $0x28] sm:$0xf] %v5129
    %5194 = vst [vmem:[#allocation2 + $0x2c] sm:$0xf] %v5130
    %5195 = vst [vmem:[#allocation2 + $0x30] sm:$0xf] %v5131
    %5196 = vst [vmem:[#allocation2 + $0x34] sm:$0xf] %v5132
    %5197 = vst [vmem:[#allocation2 + $0x38] sm:$0xf] %v5133
    %5198 = vst [vmem:[#allocation2 + $0x3c] sm:$0xf] %v5134
    %5199 = vst [vmem:[#allocation2 + $0x40] sm:$0xf] %v5135
    %5200 = vst [vmem:[#allocation2 + $0x44] sm:$0xf] %v5136
    %5201 = vst [vmem:[#allocation2 + $0x48] sm:$0xf] %v5137
    %5202 = vst [vmem:[#allocation2 + $0x4c] sm:$0xf] %v5138
    %5203 = vst [vmem:[#allocation2 + $0x50] sm:$0xf] %v5139
    %5204 = vst [vmem:[#allocation2 + $0x54] sm:$0xf] %v5140
    %5205 = vst [vmem:[#allocation2 + $0x58] sm:$0xf] %v5141
    %5206 = vst [vmem:[#allocation2 + $0x5c] sm:$0xf] %v5142
    %5207 = vst [vmem:[#allocation2 + $0x60] sm:$0xf] %v5143
    %5208 = vst [vmem:[#allocation2 + $0x64] sm:$0xf] %v5144
    %5209 = vst [vmem:[#allocation2 + $0x68] sm:$0xf] %v5145
    %5210 = vst [vmem:[#allocation2 + $0x6c] sm:$0xf] %v5146
    %5211 = vst [vmem:[#allocation2 + $0x70] sm:$0xf] %v5147
    %5212 = vst [vmem:[#allocation2 + $0x74] sm:$0xf] %v5148
    %5213 = vst [vmem:[#allocation2 + $0x78] sm:$0xf] %v5149
    %5214 = vst [vmem:[#allocation2 + $0x7c] sm:$0xf] %v5150
    %5215 = vst [vmem:[#allocation2 + $0x80] sm:$0xf] %v5151
    %5216 = vst [vmem:[#allocation2 + $0x84] sm:$0xf] %v5152
    %5217 = vst [vmem:[#allocation2 + $0x88] sm:$0xf] %v5153
    %5218 = vst [vmem:[#allocation2 + $0x8c] sm:$0xf] %v5154
    %5219 = vst [vmem:[#allocation2 + $0x90] sm:$0xf] %v5155
    %5220 = vst [vmem:[#allocation2 + $0x94] sm:$0xf] %v5156
    %5221 = vst [vmem:[#allocation2 + $0x98] sm:$0xf] %v5157
    %5222 = vst [vmem:[#allocation2 + $0x9c] sm:$0xf] %v5158
    %5223 = vst [vmem:[#allocation2 + $0xa0] sm:$0xf] %v5159
    %5224 = vst [vmem:[#allocation2 + $0xa4] sm:$0xf] %v5160
    %v5225 = vld [vmem:[#allocation2] sm:$0xf]
    %v5226 = vld [vmem:[#allocation2 + $0x4] sm:$0xf]
    %v5227 = vld [vmem:[#allocation2 + $0x8] sm:$0xf]
    %v5228 = vld [vmem:[#allocation2 + $0xc] sm:$0xf]
    %v5229 = vld [vmem:[#allocation2 + $0x10] sm:$0xf]
    %v5230 = vld [vmem:[#allocation2 + $0x14] sm:$0xf]
    %v5231 = vld [vmem:[#allocation2 + $0x18] sm:$0xf]
    %v5232 = vld [vmem:[#allocation2 + $0x1c] sm:$0xf]
    %v5233 = vld [vmem:[#allocation2 + $0x20] sm:$0xf]
    %v5234 = vld [vmem:[#allocation2 + $0x24] sm:$0xf]
    %v5235 = vld [vmem:[#allocation2 + $0x28] sm:$0xf]
    %v5236 = vld [vmem:[#allocation2 + $0x2c] sm:$0xf]
    %v5237 = vld [vmem:[#allocation2 + $0x30] sm:$0xf]
    %v5238 = vld [vmem:[#allocation2 + $0x34] sm:$0xf]
    %v5239 = vld [vmem:[#allocation2 + $0x38] sm:$0xf]
    %v5240 = vld [vmem:[#allocation2 + $0x3c] sm:$0xf]
    %v5241 = vld [vmem:[#allocation2 + $0x40] sm:$0xf]
    %v5242 = vld [vmem:[#allocation2 + $0x44] sm:$0xf]
    %v5243 = vld [vmem:[#allocation2 + $0x48] sm:$0xf]
    %v5244 = vld [vmem:[#allocation2 + $0x4c] sm:$0xf]
    %v5245 = vld [vmem:[#allocation2 + $0x50] sm:$0xf]
    %v5246 = vld [vmem:[#allocation2 + $0x54] sm:$0xf]
    %v5247 = vld [vmem:[#allocation2 + $0x58] sm:$0xf]
    %v5248 = vld [vmem:[#allocation2 + $0x5c] sm:$0xf]
    %v5249 = vld [vmem:[#allocation2 + $0x60] sm:$0xf]
    %v5250 = vld [vmem:[#allocation2 + $0x64] sm:$0xf]
    %v5251 = vld [vmem:[#allocation2 + $0x68] sm:$0xf]
    %v5252 = vld [vmem:[#allocation2 + $0x6c] sm:$0xf]
    %v5253 = vld [vmem:[#allocation2 + $0x70] sm:$0xf]
    %v5254 = vld [vmem:[#allocation2 + $0x74] sm:$0xf]
    %v5255 = vld [vmem:[#allocation2 + $0x78] sm:$0xf]
    %v5256 = vld [vmem:[#allocation2 + $0x7c] sm:$0xf]
    %v5257 = vld [vmem:[#allocation2 + $0x80] sm:$0xf]
    %v5258 = vld [vmem:[#allocation2 + $0x84] sm:$0xf]
    %v5259 = vld [vmem:[#allocation2 + $0x88] sm:$0xf]
    %v5260 = vld [vmem:[#allocation2 + $0x8c] sm:$0xf]
    %v5261 = vld [vmem:[#allocation2 + $0x90] sm:$0xf]
    %v5262 = vld [vmem:[#allocation2 + $0x94] sm:$0xf]
    %v5263 = vld [vmem:[#allocation2 + $0x98] sm:$0xf]
    %v5264 = vld [vmem:[#allocation2 + $0x9c] sm:$0xf]
    %v5265 = vld [vmem:[#allocation2 + $0xa0] sm:$0xf]
    %v5266 = vld [vmem:[#allocation2 + $0xa4] sm:$0xf]
    %v5267 = vld [vmem:[%s4] sm:$0xff]
    %v5268 = vld [vmem:[%s4 + $0x8] sm:$0xf]
    %v5269 = vld [vmem:[%s4 + $0xc] sm:$0xff]
    %v5270 = vld [vmem:[%s4 + $0x14] sm:$0xf]
    %v5271 = vld [vmem:[%s4 + $0x18] sm:$0xff]
    %v5272 = vld [vmem:[%s4 + $0x20] sm:$0xf]
    %v5273 = vld [vmem:[%s4 + $0x24] sm:$0xff]
    %v5274 = vld [vmem:[%s4 + $0x2c] sm:$0xf]
    %v5275 = vld [vmem:[%s4 + $0x30] sm:$0xff]
    %v5276 = vld [vmem:[%s4 + $0x38] sm:$0xf]
    %v5277 = vld [vmem:[%s4 + $0x3c] sm:$0xff]
    %v5278 = vld [vmem:[%s4 + $0x44] sm:$0xf]
    %v5279 = vld [vmem:[%s4 + $0x48] sm:$0xff]
    %v5280 = vld [vmem:[%s4 + $0x50] sm:$0xf]
    %v5281 = vld [vmem:[%s4 + $0x54] sm:$0xff]
    %v5282 = vld [vmem:[%s4 + $0x5c] sm:$0xf]
    %v5299 = vunpack.c.l.b16 %v5267
    %v5300 = vunpack.c.h.b16 %v5267
    %v5301 = vunpack.c.l.b16 %v5268
    %v5302 = vunpack.c.l.b16 %v5269
    %v5303 = vunpack.c.h.b16 %v5269
    %v5304 = vunpack.c.l.b16 %v5270
    %v5305 = vunpack.c.l.b16 %v5271
    %v5306 = vunpack.c.h.b16 %v5271
    %v5307 = vunpack.c.l.b16 %v5272
    %v5308 = vunpack.c.l.b16 %v5273
    %v5309 = vunpack.c.h.b16 %v5273
    %v5310 = vunpack.c.l.b16 %v5274
    %v5311 = vunpack.c.l.b16 %v5275
    %v5312 = vunpack.c.h.b16 %v5275
    %v5313 = vunpack.c.l.b16 %v5276
    %v5314 = vunpack.c.l.b16 %v5277
    %v5315 = vunpack.c.h.b16 %v5277
    %v5316 = vunpack.c.l.b16 %v5278
    %v5317 = vunpack.c.l.b16 %v5279
    %v5318 = vunpack.c.h.b16 %v5279
    %v5319 = vunpack.c.l.b16 %v5280
    %v5320 = vunpack.c.l.b16 %v5281
    %v5321 = vunpack.c.h.b16 %v5281
    %v5322 = vunpack.c.l.b16 %v5282
    %v5323 = vpack.c.b16 %v5302, %v5299
    %v5324 = vpack.c.b16 %v5303, %v5300
    %v5325 = vpack.c.b16 %v5304, %v5301
    %v5326 = vpack.c.b16 %v5308, %v5305
    %v5327 = vpack.c.b16 %v5309, %v5306
    %v5328 = vpack.c.b16 %v5310, %v5307
    %v5329 = vpack.c.b16 %v5314, %v5311
    %v5330 = vpack.c.b16 %v5315, %v5312
    %v5331 = vpack.c.b16 %v5316, %v5313
    %v5332 = vpack.c.b16 %v5320, %v5317
    %v5333 = vpack.c.b16 %v5321, %v5318
    %v5334 = vpack.c.b16 %v5322, %v5319
    %v5385 = vunpack.c.l.b16 %v5225
    %v5386 = vunpack.c.l.b16 %v5226
    %v5387 = vunpack.c.l.b16 %v5227
    %v5388 = vunpack.c.l.b16 %v5228
    %v5389 = vunpack.c.l.b16 %v5229
    %v5390 = vunpack.c.l.b16 %v5230
    %v5391 = vunpack.c.l.b16 %v5231
    %v5392 = vunpack.c.l.b16 %v5232
    %v5393 = vunpack.c.l.b16 %v5233
    %v5394 = vunpack.c.l.b16 %v5234
    %v5395 = vunpack.c.l.b16 %v5235
    %v5396 = vunpack.c.l.b16 %v5236
    %v5397 = vunpack.c.l.b16 %v5237
    %v5398 = vunpack.c.l.b16 %v5238
    %v5399 = vunpack.c.l.b16 %v5239
    %v5400 = vunpack.c.l.b16 %v5240
    %v5401 = vunpack.c.l.b16 %v5241
    %v5402 = vunpack.c.l.b16 %v5242
    %v5403 = vunpack.c.l.b16 %v5243
    %v5404 = vunpack.c.l.b16 %v5244
    %v5405 = vunpack.c.l.b16 %v5245
    %v5406 = vunpack.c.l.b16 %v5246
    %v5407 = vunpack.c.l.b16 %v5247
    %v5408 = vunpack.c.l.b16 %v5248
    %v5409 = vunpack.c.l.b16 %v5249
    %v5410 = vunpack.c.l.b16 %v5250
    %v5411 = vunpack.c.l.b16 %v5251
    %v5412 = vunpack.c.l.b16 %v5252
    %v5413 = vunpack.c.l.b16 %v5253
    %v5414 = vunpack.c.l.b16 %v5254
    %v5415 = vunpack.c.l.b16 %v5255
    %v5416 = vunpack.c.l.b16 %v5256
    %v5417 = vunpack.c.l.b16 %v5257
    %v5418 = vunpack.c.l.b16 %v5258
    %v5419 = vunpack.c.l.b16 %v5259
    %v5420 = vunpack.c.l.b16 %v5260
    %v5421 = vunpack.c.l.b16 %v5261
    %v5422 = vunpack.c.l.b16 %v5262
    %v5423 = vunpack.c.l.b16 %v5263
    %v5424 = vunpack.c.l.b16 %v5264
    %v5425 = vunpack.c.l.b16 %v5265
    %v5426 = vunpack.c.l.b16 %v5266
    %v5427 = vpack.c.b16 %v5386, %v5385
    %v5428 = vpack.c.b16 %v5388, %v5387
    %v5429 = vpack.c.b16 %v5390, %v5389
    %v5430 = vpack.c.b16 %v5392, %v5391
    %v5431 = vpack.c.b16 %v5394, %v5393
    %v5432 = vpack.c.b16 %v5396, %v5395
    %v5433 = vpack.c.b16 %v5398, %v5397
    %v5434 = vpack.c.b16 %v5400, %v5399
    %v5435 = vpack.c.b16 %v5402, %v5401
    %v5436 = vpack.c.b16 %v5404, %v5403
    %v5437 = vpack.c.b16 %v5406, %v5405
    %v5438 = vpack.c.b16 %v5408, %v5407
    %v5439 = vpack.c.b16 %v5410, %v5409
    %v5440 = vpack.c.b16 %v5412, %v5411
    %v5441 = vpack.c.b16 %v5414, %v5413
    %v5442 = vpack.c.b16 %v5416, %v5415
    %v5443 = vpack.c.b16 %v5418, %v5417
    %v5444 = vpack.c.b16 %v5420, %v5419
    %v5445 = vpack.c.b16 %v5422, %v5421
    %v5446 = vpack.c.b16 %v5424, %v5423
    %v5447 = vpack.c.b16 %v5426, %v5425
    %v5470 = vsel %vm305, %v5325, 0
    %v5473 = vsel %vm305, %v5328, 0
    %v5476 = vsel %vm305, %v5331, 0
    %v5479 = vsel %vm305, %v5334, 0
    %5481 = vmatprep.subr.bf16.mxu0 0
    %5482 = vmatpush1.bf16.msra.mxu0 %v5434
    %5483 = vmatprep.subr.bf16.mxu0 0
    %5484 = vmatpush1.bf16.msra.mxu0 %v5433
    %5485 = vmatprep.subr.bf16.mxu0 0
    %5486 = vmatpush1.bf16.msra.mxu0 %v5432
    %5487 = vmatprep.subr.bf16.mxu0 0
    %5488 = vmatpush1.bf16.msra.mxu0 %v5431
    %5489 = vmatprep.subr.bf16.mxu0 0
    %5490 = vmatpush1.bf16.msra.mxu0 %v5430
    %5491 = vmatprep.subr.bf16.mxu0 0
    %5492 = vmatpush1.bf16.msra.mxu0 %v5429
    %5493 = vmatprep.subr.bf16.mxu0 0
    %5494 = vmatpush1.bf16.msra.mxu0 %v5428
    %5495 = vmatprep.subr.bf16.mxu0 0
    %5496 = vmatpush1.bf16.msra.mxu0 %v5427
    %5497 = vmatprep.subr.bf16.mxu0 0
    %5498 = vmatpush2.bf16.msra.mxu0 %v5442
    %5499 = vmatprep.subr.bf16.mxu0 0
    %5500 = vmatpush2.bf16.msra.mxu0 %v5441
    %5501 = vmatprep.subr.bf16.mxu0 0
    %5502 = vmatpush2.bf16.msra.mxu0 %v5440
    %5503 = vmatprep.subr.bf16.mxu0 0
    %5504 = vmatpush2.bf16.msra.mxu0 %v5439
    %5505 = vmatprep.subr.bf16.mxu0 0
    %5506 = vmatpush2.bf16.msra.mxu0 %v5438
    %5507 = vmatprep.subr.bf16.mxu0 0
    %5508 = vmatpush2.bf16.msra.mxu0 %v5437
    %5509 = vmatprep.subr.bf16.mxu0 0
    %5510 = vmatpush2.bf16.msra.mxu0 %v5436
    %5511 = vmatprep.subr.bf16.mxu0 0
    %5512 = vmatpush2.bf16.msra.mxu0 %v5435
    %5513 = vmatprep.mubr.bf16.mxu0 %v5324
    %5514 = vmatmul.mubr.bf16.gmra.mxu0 %v5323
    %v5515 = vpop.f32.mrf.mxu0
    %v5516 = vadd.f32 0.0, %v5515
    %v5517 = vpop.f32.mrf.mxu0
    %v5518 = vpop.f32.mrf.mxu0
    %v5519 = vadd.f32 0.0, %v5518
    %v5520 = vpop.f32.mrf.mxu0
    %5521 = vmatprep.mubr.bf16.mxu0 %v5327
    %5522 = vmatmul.mubr.bf16.gmra.mxu0 %v5326
    %v5523 = vpop.f32.mrf.mxu0
    %v5524 = vadd.f32 0.0, %v5523
    %v5525 = vpop.f32.mrf.mxu0
    %v5526 = vpop.f32.mrf.mxu0
    %v5527 = vadd.f32 0.0, %v5526
    %v5528 = vpop.f32.mrf.mxu0
    %5529 = vmatprep.mubr.bf16.mxu0 %v5330
    %5530 = vmatmul.mubr.bf16.gmra.mxu0 %v5329
    %v5531 = vpop.f32.mrf.mxu0
    %v5532 = vadd.f32 0.0, %v5531
    %v5533 = vpop.f32.mrf.mxu0
    %v5534 = vpop.f32.mrf.mxu0
    %v5535 = vadd.f32 0.0, %v5534
    %v5536 = vpop.f32.mrf.mxu0
    %5537 = vmatprep.mubr.bf16.mxu0 %v5333
    %5538 = vmatmul.mubr.bf16.gmra.mxu0 %v5332
    %v5539 = vpop.f32.mrf.mxu0
    %v5540 = vadd.f32 0.0, %v5539
    %v5541 = vpop.f32.mrf.mxu0
    %v5542 = vpop.f32.mrf.mxu0
    %v5543 = vadd.f32 0.0, %v5542
    %v5544 = vpop.f32.mrf.mxu0
    %5545 = vdwg.mxu0
    %5546 = vmatprep.subr.bf16.mxu0 0
    %5547 = vmatpush1.bf16.msra.mxu0 0
    %5548 = vmatprep.subr.bf16.mxu0 0
    %5549 = vmatpush1.bf16.msra.mxu0 0
    %5550 = vmatprep.subr.bf16.mxu0 0
    %5551 = vmatpush1.bf16.msra.mxu0 0
    %5552 = vmatprep.subr.bf16.mxu0 0
    %5553 = vmatpush1.bf16.msra.mxu0 %v5447
    %5554 = vmatprep.subr.bf16.mxu0 0
    %5555 = vmatpush1.bf16.msra.mxu0 %v5446
    %5556 = vmatprep.subr.bf16.mxu0 0
    %5557 = vmatpush1.bf16.msra.mxu0 %v5445
    %5558 = vmatprep.subr.bf16.mxu0 0
    %5559 = vmatpush1.bf16.msra.mxu0 %v5444
    %5560 = vmatprep.subr.bf16.mxu0 0
    %5561 = vmatpush1.bf16.msra.mxu0 %v5443
    %5562 = vmatprep.subr.bf16.mxu0 0
    %5563 = vmatpush2.bf16.msra.mxu0 0
    %5564 = vmatprep.subr.bf16.mxu0 0
    %5565 = vmatpush2.bf16.msra.mxu0 0
    %5566 = vmatprep.subr.bf16.mxu0 0
    %5567 = vmatpush2.bf16.msra.mxu0 0
    %5568 = vmatprep.subr.bf16.mxu0 0
    %5569 = vmatpush2.bf16.msra.mxu0 0
    %5570 = vmatprep.subr.bf16.mxu0 0
    %5571 = vmatpush2.bf16.msra.mxu0 0
    %5572 = vmatprep.subr.bf16.mxu0 0
    %5573 = vmatpush2.bf16.msra.mxu0 0
    %5574 = vmatprep.subr.bf16.mxu0 0
    %5575 = vmatpush2.bf16.msra.mxu0 0
    %5576 = vmatprep.subr.bf16.mxu0 0
    %5577 = vmatpush2.bf16.msra.mxu0 0
    %5578 = vmatprep.mubr.bf16.mxu0 0
    %5579 = vmatmul.mubr.bf16.gmra.mxu0 %v5470
    %v5580 = vpop.f32.mrf.mxu0
    %v5581 = vadd.f32 %v5516, %v5580
    %v5582 = vpop.f32.mrf.mxu0
    %v5583 = vpop.f32.mrf.mxu0
    %v5584 = vadd.f32 %v5519, %v5583
    %v5585 = vpop.f32.mrf.mxu0
    %5586 = vmatprep.mubr.bf16.mxu0 0
    %5587 = vmatmul.mubr.bf16.gmra.mxu0 %v5473
    %v5588 = vpop.f32.mrf.mxu0
    %v5589 = vadd.f32 %v5524, %v5588
    %v5590 = vpop.f32.mrf.mxu0
    %v5591 = vpop.f32.mrf.mxu0
    %v5592 = vadd.f32 %v5527, %v5591
    %v5593 = vpop.f32.mrf.mxu0
    %5594 = vmatprep.mubr.bf16.mxu0 0
    %5595 = vmatmul.mubr.bf16.gmra.mxu0 %v5476
    %v5596 = vpop.f32.mrf.mxu0
    %v5597 = vadd.f32 %v5532, %v5596
    %v5598 = vpop.f32.mrf.mxu0
    %v5599 = vpop.f32.mrf.mxu0
    %v5600 = vadd.f32 %v5535, %v5599
    %v5601 = vpop.f32.mrf.mxu0
    %5602 = vmatprep.mubr.bf16.mxu0 0
    %5603 = vmatmul.mubr.bf16.gmra.mxu0 %v5479
    %v5604 = vpop.f32.mrf.mxu0
    %v5605 = vadd.f32 %v5540, %v5604
    %v5606 = vpop.f32.mrf.mxu0
    %v5607 = vpop.f32.mrf.mxu0
    %v5608 = vadd.f32 %v5543, %v5607
    %v5609 = vpop.f32.mrf.mxu0
    %5610 = vdwg.mxu0
    %v5611 = vmax.f32 %v5581, 0.0
    %v5612 = vmax.f32 %v5584, 0.0
    %v5613 = vmax.f32 %v5589, 0.0
    %v5614 = vmax.f32 %v5592, 0.0
    %v5615 = vmax.f32 %v5597, 0.0
    %v5616 = vmax.f32 %v5600, 0.0
    %v5617 = vmax.f32 %v5605, 0.0
    %v5618 = vmax.f32 %v5608, 0.0
    %v5619 = vpack.c.bf16 %v5612, %v5611
    %v5620 = vpack.c.bf16 %v5614, %v5613
    %v5621 = vpack.c.bf16 %v5616, %v5615
    %v5622 = vpack.c.bf16 %v5618, %v5617
    %v5627 = vunpack.c.l.b16 %v5619
    %v5628 = vunpack.c.h.b16 %v5619
    %v5629 = vunpack.c.l.b16 %v5620
    %v5630 = vunpack.c.h.b16 %v5620
    %v5631 = vunpack.c.l.b16 %v5621
    %v5632 = vunpack.c.h.b16 %v5621
    %v5633 = vunpack.c.l.b16 %v5622
    %v5634 = vunpack.c.h.b16 %v5622
    %v5635 = vpack.c.b16 %v5627, %v5627
    %v5636 = vpack.c.b16 %v5628, %v5628
    %v5637 = vpack.c.b16 %v5629, %v5629
    %v5638 = vpack.c.b16 %v5630, %v5630
    %v5639 = vpack.c.b16 %v5631, %v5631
    %v5640 = vpack.c.b16 %v5632, %v5632
    %v5641 = vpack.c.b16 %v5633, %v5633
    %v5642 = vpack.c.b16 %v5634, %v5634
    %5651 = vst [vmem:[#allocation2 + $0x28] sm:$0xf] %v5635
    %5652 = vst [vmem:[#allocation2 + $0x2c] sm:$0xf] %v5636
    %5653 = vst [vmem:[#allocation2 + $0x30] sm:$0xf] %v5637
    %5654 = vst [vmem:[#allocation2 + $0x34] sm:$0xf] %v5638
    %5655 = vst [vmem:[#allocation2 + $0x38] sm:$0xf] %v5639
    %5656 = vst [vmem:[#allocation2 + $0x3c] sm:$0xf] %v5640
    %5657 = vst [vmem:[#allocation2 + $0x40] sm:$0xf] %v5641
    %5658 = vst [vmem:[#allocation2 + $0x44] sm:$0xf] %v5642
    %v5659 = vld [vmem:[#allocation2] sm:$0xf]
    %v5660 = vld [vmem:[#allocation2 + $0x4] sm:$0xf]
    %v5661 = vld [vmem:[#allocation2 + $0x8] sm:$0xf]
    %v5662 = vld [vmem:[#allocation2 + $0xc] sm:$0xf]
    %v5663 = vld [vmem:[#allocation2 + $0x10] sm:$0xf]
    %v5664 = vld [vmem:[#allocation2 + $0x14] sm:$0xf]
    %v5665 = vld [vmem:[#allocation2 + $0x18] sm:$0xf]
    %v5666 = vld [vmem:[#allocation2 + $0x1c] sm:$0xf]
    %v5667 = vld [vmem:[#allocation2 + $0x20] sm:$0xf]
    %v5668 = vld [vmem:[#allocation2 + $0x24] sm:$0xf]
    %v5669 = vld [vmem:[#allocation2 + $0x28] sm:$0xf]
    %v5670 = vld [vmem:[#allocation2 + $0x2c] sm:$0xf]
    %v5671 = vld [vmem:[#allocation2 + $0x30] sm:$0xf]
    %v5672 = vld [vmem:[#allocation2 + $0x34] sm:$0xf]
    %v5673 = vld [vmem:[#allocation2 + $0x38] sm:$0xf]
    %v5674 = vld [vmem:[#allocation2 + $0x3c] sm:$0xf]
    %v5675 = vld [vmem:[#allocation2 + $0x40] sm:$0xf]
    %v5676 = vld [vmem:[#allocation2 + $0x44] sm:$0xf]
    %v5677 = vld [vmem:[%s5] sm:$0xff]
    %v5678 = vld [vmem:[%s5 + $0x8] sm:$0xff]
    %v5681 = vunpack.c.l.b16 %v5677
    %v5682 = vunpack.c.h.b16 %v5677
    %v5683 = vunpack.c.l.b16 %v5678
    %v5684 = vunpack.c.h.b16 %v5678
    %v5685 = vpack.c.b16 %v5683, %v5681
    %v5686 = vpack.c.b16 %v5684, %v5682
    %v5706 = vunpack.c.l.b16 %v5659
    %v5707 = vunpack.c.l.b16 %v5660
    %v5708 = vunpack.c.l.b16 %v5661
    %v5709 = vunpack.c.l.b16 %v5662
    %v5710 = vunpack.c.l.b16 %v5663
    %v5711 = vunpack.c.l.b16 %v5664
    %v5712 = vunpack.c.l.b16 %v5665
    %v5713 = vunpack.c.l.b16 %v5666
    %v5714 = vunpack.c.l.b16 %v5667
    %v5715 = vunpack.c.l.b16 %v5668
    %v5716 = vunpack.c.l.b16 %v5669
    %v5717 = vunpack.c.l.b16 %v5670
    %v5718 = vunpack.c.l.b16 %v5671
    %v5719 = vunpack.c.l.b16 %v5672
    %v5720 = vunpack.c.l.b16 %v5673
    %v5721 = vunpack.c.l.b16 %v5674
    %v5722 = vunpack.c.l.b16 %v5675
    %v5723 = vunpack.c.l.b16 %v5676
    %v5724 = vpack.c.b16 %v5707, %v5706
    %v5725 = vpack.c.b16 %v5709, %v5708
    %v5726 = vpack.c.b16 %v5711, %v5710
    %v5727 = vpack.c.b16 %v5713, %v5712
    %v5728 = vpack.c.b16 %v5715, %v5714
    %v5729 = vpack.c.b16 %v5717, %v5716
    %v5730 = vpack.c.b16 %v5719, %v5718
    %v5731 = vpack.c.b16 %v5721, %v5720
    %v5732 = vpack.c.b16 %v5723, %v5722
    %vm5742 = vcmask 130048
    %v5744 = vsel %vm5742, %v5686, 0
    %5746 = vmatprep.subr.bf16.mxu0 0
    %5747 = vmatpush1.bf16.msra.mxu0 %v5731
    %5748 = vmatprep.subr.bf16.mxu0 0
    %5749 = vmatpush1.bf16.msra.mxu0 %v5730
    %5750 = vmatprep.subr.bf16.mxu0 0
    %5751 = vmatpush1.bf16.msra.mxu0 %v5729
    %5752 = vmatprep.subr.bf16.mxu0 0
    %5753 = vmatpush1.bf16.msra.mxu0 %v5728
    %5754 = vmatprep.subr.bf16.mxu0 0
    %5755 = vmatpush1.bf16.msra.mxu0 %v5727
    %5756 = vmatprep.subr.bf16.mxu0 0
    %5757 = vmatpush1.bf16.msra.mxu0 %v5726
    %5758 = vmatprep.subr.bf16.mxu0 0
    %5759 = vmatpush1.bf16.msra.mxu0 %v5725
    %5760 = vmatprep.subr.bf16.mxu0 0
    %5761 = vmatpush1.bf16.msra.mxu0 %v5724
    %5762 = vmatprep.subr.bf16.mxu0 0
    %5763 = vmatpush2.bf16.msra.mxu0 0
    %5764 = vmatprep.subr.bf16.mxu0 0
    %5765 = vmatpush2.bf16.msra.mxu0 0
    %5766 = vmatprep.subr.bf16.mxu0 0
    %5767 = vmatpush2.bf16.msra.mxu0 0
    %5768 = vmatprep.subr.bf16.mxu0 0
    %5769 = vmatpush2.bf16.msra.mxu0 0
    %5770 = vmatprep.subr.bf16.mxu0 0
    %5771 = vmatpush2.bf16.msra.mxu0 0
    %5772 = vmatprep.subr.bf16.mxu0 0
    %5773 = vmatpush2.bf16.msra.mxu0 0
    %5774 = vmatprep.subr.bf16.mxu0 0
    %5775 = vmatpush2.bf16.msra.mxu0 0
    %5776 = vmatprep.subr.bf16.mxu0 0
    %5777 = vmatpush2.bf16.msra.mxu0 %v5732
    %5778 = vmatprep.mubr.bf16.mxu0 %v5744
    %5779 = vmatmul.mubr.bf16.gmra.mxu0 %v5685
    %v5780 = vpop.f32.mrf.mxu0
    %v5781 = vadd.f32 0.0, %v5780
    %v5782 = vpop.f32.mrf.mxu0
    %v5783 = vpop.f32.mrf.mxu0
    %v5784 = vadd.f32 0.0, %v5783
    %v5785 = vpop.f32.mrf.mxu0
    %5786 = vdwg.mxu0
    %v5787 = vmax.f32 %v5781, 0.0
    %v5788 = vmax.f32 %v5784, 0.0
    %v5789 = vld [vmem:[%s6] sm:$0xff]
    %v5790 = vld [vmem:[%s6 + $0x8] sm:$0xff]
    %v5791 = vld [vmem:[%s6 + $0x10] sm:$0xff]
    %v5792 = vld [vmem:[%s6 + $0x18] sm:$0xff]
    %v5793 = vld [vmem:[%s6 + $0x20] sm:$0xff]
    %v5794 = vld [vmem:[%s6 + $0x28] sm:$0xff]
    %v5795 = vld [vmem:[%s6 + $0x30] sm:$0xff]
    %v5796 = vld [vmem:[%s6 + $0x38] sm:$0xff]
    %v5797 = vld [vmem:[%s6 + $0x40] sm:$0xff]
    %v5798 = vld [vmem:[%s6 + $0x48] sm:$0xff]
    %v5799 = vunpack.c.l.bf16 %v31
    %v5800 = vunpack.c.l.bf16 %v32
    %v5801 = vunpack.c.l.bf16 %v33
    %v5802 = vunpack.c.l.bf16 %v34
    %v5803 = vunpack.c.l.bf16 %v35
    %v5804 = vunpack.c.l.bf16 %v36
    %v5805 = vunpack.c.l.bf16 %v37
    %v5806 = vunpack.c.l.bf16 %v38
    %v5807 = vunpack.c.l.bf16 %v39
    %v5808 = vunpack.c.l.bf16 %v40
    %5810 = vset.pattern.permute.xlu0 0
    %5811 = vperm.xlu0 %5810, %v5789
    %v5812 = vpop.permute.xlu0 %5811
    %5815 = vset.pattern.permute.xlu0 0
    %5816 = vperm.xlu0 %5815, %v5790
    %v5817 = vpop.permute.xlu0 %5816
    %5820 = vset.pattern.permute.xlu0 0
    %5821 = vperm.xlu0 %5820, %v5791
    %v5822 = vpop.permute.xlu0 %5821
    %5825 = vset.pattern.permute.xlu0 0
    %5826 = vperm.xlu0 %5825, %v5792
    %v5827 = vpop.permute.xlu0 %5826
    %5830 = vset.pattern.permute.xlu0 0
    %5831 = vperm.xlu0 %5830, %v5793
    %v5832 = vpop.permute.xlu0 %5831
    %5835 = vset.pattern.permute.xlu0 0
    %5836 = vperm.xlu0 %5835, %v5794
    %v5837 = vpop.permute.xlu0 %5836
    %5840 = vset.pattern.permute.xlu0 0
    %5841 = vperm.xlu0 %5840, %v5795
    %v5842 = vpop.permute.xlu0 %5841
    %5845 = vset.pattern.permute.xlu0 0
    %5846 = vperm.xlu0 %5845, %v5796
    %v5847 = vpop.permute.xlu0 %5846
    %5850 = vset.pattern.permute.xlu0 0
    %5851 = vperm.xlu0 %5850, %v5797
    %v5852 = vpop.permute.xlu0 %5851
    %5855 = vset.pattern.permute.xlu0 0
    %5856 = vperm.xlu0 %5855, %v5798
    %v5857 = vpop.permute.xlu0 %5856
    %v5859 = vmul.f32 %v5812, %v5799
    %v5860 = vmul.f32 %v5817, %v5800
    %v5861 = vmul.f32 %v5822, %v5801
    %v5862 = vmul.f32 %v5827, %v5802
    %v5863 = vmul.f32 %v5832, %v5803
    %v5864 = vmul.f32 %v5837, %v5804
    %v5865 = vmul.f32 %v5842, %v5805
    %v5866 = vmul.f32 %v5847, %v5806
    %v5867 = vmul.f32 %v5852, %v5807
    %v5868 = vmul.f32 %v5857, %v5808
    %v5869 = vadd.f32 %v5859, %v5860
    %v5870 = vadd.f32 %v5869, %v5861
    %v5871 = vadd.f32 %v5870, %v5862
    %v5872 = vadd.f32 %v5871, %v5863
    %v5873 = vadd.f32 %v5872, %v5864
    %v5874 = vadd.f32 %v5873, %v5865
    %v5875 = vadd.f32 %v5874, %v5866
    %v5876 = vadd.f32 %v5875, %v5867
    %v5877 = vadd.f32 %v5876, %v5868
    %v5878 = vrot.slane %v5877, 4
    %v5879 = vadd.f32 %v5877, %v5878
    %v5880 = vrot.slane %v5879, 2
    %v5881 = vadd.f32 %v5879, %v5880
    %v5882 = vrot.slane %v5881, 1
    %v5883 = vadd.f32 %v5881, %v5882
    %v5884 = vld [vmem:[%s7] sm:$0xff]
    %v5885 = vld [vmem:[%s7 + $0x8] sm:$0xff]
    %5887 = vset.pattern.permute.xlu0 0
    %5888 = vperm.xlu0 %5887, %v5884
    %v5889 = vpop.permute.xlu0 %5888
    %5892 = vset.pattern.permute.xlu0 0
    %5893 = vperm.xlu0 %5892, %v5885
    %v5894 = vpop.permute.xlu0 %5893
    %v5896 = vmul.f32 %v5889, %v5787
    %v5897 = vmul.f32 %v5894, %v5788
    %v5898 = vadd.f32 %v5896, %v5897
    %v5899 = vrot.slane %v5898, 4
    %v5900 = vadd.f32 %v5898, %v5899
    %v5901 = vrot.slane %v5900, 2
    %v5902 = vadd.f32 %v5900, %v5901
    %v5903 = vrot.slane %v5902, 1
    %v5904 = vadd.f32 %v5902, %v5903
    %v5905 = vadd.f32 %v5883, %v5904
    %5906 = vst [vmem:[#allocation3] sm:$0x1] %v5905
    // Predicated region
    $region34: #{tpu_custom_call.1} parent=1 // pred_check
      _
    $region35: #{tpu_custom_call.1} parent=1 // pred_check_branch
      %5908 = sbr.rel (0) target = $region37
    $region36: #{tpu_custom_call.1} parent=1 // pred_region
      %s5910 = ssub.s32 16, 16
      %5911 = vsyncadd [#allocation4], %s5910
      %s5913 = sshll.u32 [#allocation3], 4
      %s5914 = int_to_ptr.vmem [resolvable:$true] %s5913
      %5916 = dma.vmem_to_hbm [thread:$0]  %s5914, 16, %s8, [#allocation4]
    $region37: #{tpu_custom_call.1} parent=1 // pred_fallthru
      _
    // Predicated region
    $region38: #{tpu_custom_call.1} parent=1 // pred_check
      _
    $region39: #{tpu_custom_call.1} parent=1 // pred_check_branch
      %5918 = sbr.rel (0) target = $region41
    $region40: #{tpu_custom_call.1} parent=1 // pred_region
      %5919 = dma.done [#allocation4], 16
    $region41: #{tpu_custom_call.1} parent=1 // pred_fallthru
      _
    %5920 = vsyncpa [#allocation4], 1

</llo_original>
